<compile_context>
chip_gen: v5e
topology: v5e:2x2
jax: 0.10.0
libtpu: 0.0.40
codegen_flags: <defaults>
</compile_context>

<pallas_src>
import functools

import jax
import jax.numpy as jnp
from jax.experimental import pallas as pl
from jax.experimental.pallas import tpu as pltpu

LRELU_SLOPE = 0.2
BN_EPS = 1e-5
LANE = 128


def _round_up(x, m):
    return ((x + m - 1) // m) * m


def _pad_rows(p, m_pad):
    m = p.shape[0]
    if m == m_pad:
        return p
    return jnp.pad(p, ((0, m_pad - m), (0, 0)))


# ----------------------------------------------------------------------------
# Pallas kernels
# ----------------------------------------------------------------------------
def _conv_act_kernel(p_ref, w_ref, o_ref, *, act):
    """One M-tile of the im2col matmul (bf16 in, f32 acc) + fused activation."""
    x = jnp.dot(p_ref[...], w_ref[...], preferred_element_type=jnp.float32)
    if act == "lrelu":
        x = jnp.where(x >= 0.0, x, LRELU_SLOPE * x)
    elif act == "sigmoid":
        x = 1.0 / (1.0 + jnp.exp(-x))          # exact sigmoid (exp on the EUP)
    o_ref[...] = x.astype(o_ref.dtype)


def _conv_bn_lrelu_kernel(p_ref, w_ref, g_ref, b_ref, o_ref, *, m_valid):
    """Conv matmul + BatchNorm2d (batch statistics) + LeakyReLU, fully fused.

    The entire (m_pad, C) conv result stays on-chip; only the normalized bf16
    activation is written back to HBM.  Statistics use the biased variance
    (matching PyTorch BN normalization).  Padded output channels have zero
    gamma/beta, so they normalize to exactly zero.
    """
    x = jnp.dot(p_ref[...], w_ref[...], preferred_element_type=jnp.float32)
    m_pad = x.shape[0]
    inv_m = 1.0 / float(m_valid)
    if m_valid != m_pad:                    # static branch: mask padded rows
        rows = jax.lax.broadcasted_iota(jnp.int32, (m_pad, 1), 0)
        mask = (rows < m_valid).astype(jnp.float32)
        mean = jnp.sum(x * mask, axis=0, keepdims=True) * inv_m
        d = (x - mean) * mask
    else:
        mean = jnp.sum(x, axis=0, keepdims=True) * inv_m
        d = x - mean
    var = jnp.sum(d * d, axis=0, keepdims=True) * inv_m
    scale = g_ref[...] * jax.lax.rsqrt(var + BN_EPS)
    shift = b_ref[...] - mean * scale
    y = x * scale + shift
    o_ref[...] = jnp.where(y >= 0.0, y, LRELU_SLOPE * y).astype(o_ref.dtype)


# ----------------------------------------------------------------------------
# pallas_call wrappers
# ----------------------------------------------------------------------------
def conv_act(patches, w_mat, act, out_dtype):
    """patches (M, K) bf16 @ w_mat (K, 128) bf16 -> (m_pad, 128) + activation."""
    M, K = patches.shape
    _, c_pad = w_mat.shape
    m_pad = _round_up(M, 8)
    # Two evenly-split "parallel" tiles only when M is large (layer 1): gives
    # both v7x TensorCores work; on v5e/v6e the extra grid step is negligible.
    tm = m_pad // 2 if (m_pad >= 1024 and m_pad % 16 == 0) else m_pad
    grid_m = m_pad // tm
    p = _pad_rows(patches, m_pad)
    out = pl.pallas_call(
        functools.partial(_conv_act_kernel, act=act),
        grid=(grid_m,),
        in_specs=[
            pl.BlockSpec((tm, K), lambda i: (i, 0)),
            pl.BlockSpec((K, c_pad), lambda i: (0, 0)),
        ],
        out_specs=pl.BlockSpec((tm, c_pad), lambda i: (i, 0)),
        out_shape=jax.ShapeDtypeStruct((m_pad, c_pad), out_dtype),
        compiler_params=pltpu.CompilerParams(
            dimension_semantics=("parallel",)),
    )(p, w_mat)
    return out, M


def conv_bn_lrelu(patches, w_mat, gamma_pad, beta_pad):
    """Conv (im2col matmul) + BatchNorm2d (batch stats) + LeakyReLU(0.2).

    Single pallas_call, single tile: M <= 512 for every BN layer at this model
    size, so the whole working set (<1 MiB) fits trivially in VMEM.
    """
    M, K = patches.shape
    _, c_pad = w_mat.shape
    m_pad = _round_up(M, 8)
    p = _pad_rows(patches, m_pad)
    out = pl.pallas_call(
        functools.partial(_conv_bn_lrelu_kernel, m_valid=M),
        grid=(1,),
        in_specs=[
            pl.BlockSpec((m_pad, K), lambda i: (0, 0)),
            pl.BlockSpec((K, c_pad), lambda i: (0, 0)),
            pl.BlockSpec((1, c_pad), lambda i: (0, 0)),
            pl.BlockSpec((1, c_pad), lambda i: (0, 0)),
        ],
        out_specs=pl.BlockSpec((m_pad, c_pad), lambda i: (0, 0)),
        out_shape=jax.ShapeDtypeStruct((m_pad, c_pad), jnp.bfloat16),
        compiler_params=pltpu.CompilerParams(
            dimension_semantics=("arbitrary",)),
    )(p, w_mat, gamma_pad, beta_pad)
    return out, M


# ----------------------------------------------------------------------------
# Plain-JAX glue: im2col, weight layout, parameters, model driver
# ----------------------------------------------------------------------------
def im2col(x_nhwc, kh, kw, stride, pad):
    N, H, W, C = x_nhwc.shape
    if pad > 0:
        x_nhwc = jnp.pad(x_nhwc, ((0, 0), (pad, pad), (pad, pad), (0, 0)))
    oh = (H + 2 * pad - kh) // stride + 1
    ow = (W + 2 * pad - kw) // stride + 1
    cols = []
    for i in range(kh):
        for j in range(kw):
            cols.append(
                x_nhwc[:, i:i + stride * oh:stride, j:j + stride * ow:stride, :])
    patches = jnp.stack(cols, axis=3)                  # (N, OH, OW, KH*KW, C)
    return patches.reshape(N * oh * ow, kh * kw * C), N, oh, ow


def torch_weight_to_mat(w, cin_pad, cout_pad):
    """(Cout, Cin, KH, KW) torch layout -> padded bf16 (KH*KW*cin_pad, cout_pad)."""
    cout, cin, kh, kw = w.shape
    w = jnp.transpose(w, (2, 3, 1, 0))                 # (KH, KW, Cin, Cout)
    w = jnp.pad(w, ((0, 0), (0, 0), (0, cin_pad - cin), (0, cout_pad - cout)))
    return w.reshape(kh * kw * cin_pad, cout_pad).astype(jnp.bfloat16)


def make_params(nc, ndf, key):
    ks = jax.random.split(key, 16)
    chans = [(nc, ndf), (ndf, ndf * 2), (ndf * 2, ndf * 4),
             (ndf * 4, ndf * 8), (ndf * 8, 1)]
    # Layer 1: cin padded 3 -> 8 so K = 4*4*8 = 128 is lane-dense.
    # Layers 2-5: activations carry their real channel count (a multiple of 8),
    # so K = 16*cin is already a multiple of 128 -- no cin padding needed.
    cin_pads = [_round_up(nc, 8)] + [cin for (cin, _) in chans[1:]]
    params = {}
    for li, ((cin, cout), cin_pad) in enumerate(zip(chans, cin_pads), start=1):
        w = 0.02 * jax.random.normal(ks[li - 1], (cout, cin, 4, 4), jnp.float32)
        params[f"w{li}"] = torch_weight_to_mat(w, cin_pad, _round_up(cout, LANE))
    for idx, (li, cout) in enumerate(zip((2, 3, 4), (ndf * 2, ndf * 4, ndf * 8))):
        c_pad = _round_up(cout, LANE)
        g = 1.0 + 0.1 * jax.random.normal(ks[5 + idx], (cout,), jnp.float32)
        b = 0.1 * jax.random.normal(ks[8 + idx], (cout,), jnp.float32)
        # zero-padded beyond `cout` so padded channels normalize to exactly 0
        params[f"g{li}"] = jnp.zeros((1, c_pad), jnp.float32).at[0, :cout].set(g)
        params[f"b{li}"] = jnp.zeros((1, c_pad), jnp.float32).at[0, :cout].set(b)
    return params


def discriminator_forward(x_nchw, params, *, ndf):
    x = jnp.transpose(x_nchw, (0, 2, 3, 1))                      # NHWC
    nc = x.shape[-1]
    nc_pad = params["w1"].shape[0] // 16                         # 4*4*cin_pad
    # Pad input channels once (3 -> 8) for a lane-dense layer-1 K; bf16 MXU feed.
    x = jnp.pad(x, ((0, 0), (0, 0), (0, 0), (0, nc_pad - nc))).astype(jnp.bfloat16)

    # TODO(synk): fold the im2col gather into the conv kernels (16 shifted-tap
    # accumulation over a VMEM-resident NHWC tile) so the expanded patches
    # never round-trip HBM; at this model size the remaining cost is launch
    # overhead rather than bandwidth, so it is left to XLA for now.

    couts = (ndf, ndf * 2, ndf * 4, ndf * 8)

    # Layer 1: Conv(nc -> ndf, 4, 2, 1) + LeakyReLU (fused epilogue), bf16 out.
    p, n, oh, ow = im2col(x, 4, 4, 2, 1)
    y, m = conv_act(p, params["w1"], act="lrelu", out_dtype=jnp.bfloat16)
    x = y[:m, :couts[0]].reshape(n, oh, ow, couts[0])

    # Layers 2-4: Conv + BatchNorm2d (batch statistics) + LeakyReLU, one fused
    # kernel per layer; the carried activation keeps its real channel count.
    for li in (2, 3, 4):
        p, n, oh, ow = im2col(x, 4, 4, 2, 1)
        y, m = conv_bn_lrelu(p, params[f"w{li}"],
                             params[f"g{li}"], params[f"b{li}"])
        x = y[:m, :couts[li - 1]].reshape(n, oh, ow, couts[li - 1])

    # Layer 5: Conv(ndf*8 -> 1, 4, 1, 0) + Sigmoid.
    p, n, oh, ow = im2col(x, 4, 4, 1, 0)
    y, m = conv_act(p, params["w5"], act="sigmoid", out_dtype=jnp.float32)
    out = y[:m, :1].reshape(n, oh, ow, 1)
    return jnp.transpose(out, (0, 3, 1, 2))                      # (N, 1, 1, 1)


if __name__ == "__main__":
    # Small config consistent with the module: nc=3 channels, ndf=8 feature
    # maps, 64x64 input (so the final 4x4/s1/p0 conv reduces to a 1x1 logit).
    N, NC, NDF, H, W = 2, 3, 8, 64, 64
    key = jax.random.PRNGKey(0)
    k_x, k_p = jax.random.split(key)
    x = jax.random.normal(k_x, (N, NC, H, W), jnp.float32)
    params = make_params(NC, NDF, k_p)

    fwd = jax.jit(functools.partial(discriminator_forward, ndf=NDF))
    y = jax.block_until_ready(fwd(x, params))

    assert y.shape == (N, 1, 1, 1), y.shape
    assert bool(jnp.all(jnp.isfinite(y)))
    assert bool(jnp.all((y >= 0.0) & (y <= 1.0)))  # sigmoid range
    print("KERNEL_OK")
</pallas_src>

<mosaic_0001>
module attributes {stable_mosaic.version = 11 : i64} {
  func.func @_conv_act_kernel(%arg0: i32, %arg1: memref<1024x128xbf16, #tpu.memory_space<vmem>>, %arg2: memref<128x128xbf16, #tpu.memory_space<vmem>>, %arg3: memref<1024x128xbf16, #tpu.memory_space<vmem>>) attributes {dimension_semantics = [#tpu.dimension_semantics<parallel>], iteration_bounds = array<i64: 2>, scalar_prefetch = 0 : i64, scratch_operands = 0 : i64, tpu.core_type = #tpu.core_type<tc>, window_params = [{transform_indices = @transform_0, window_bounds = array<i64: 1024, 128>}, {pipeline_mode = #tpu.pipeline_mode<synchronous>, transform_indices = @transform_1, window_bounds = array<i64: 128, 128>}, {transform_indices = @transform_2, window_bounds = array<i64: 1024, 128>}]} {
    %c0 = arith.constant 0 : index
    %c0_0 = arith.constant 0 : index
    %0 = vector.load %arg1[%c0, %c0_0] : memref<1024x128xbf16, #tpu.memory_space<vmem>>, vector<1024x128xbf16>
    %c0_1 = arith.constant 0 : index
    %c0_2 = arith.constant 0 : index
    %1 = vector.load %arg2[%c0_1, %c0_2] : memref<128x128xbf16, #tpu.memory_space<vmem>>, vector<128x128xbf16>
    %cst = arith.constant dense<0.000000e+00> : vector<1024x128xf32>
    %2 = tpu.matmul %0, %1, %cst {dimension_numbers = #tpu.dot_dimension_numbers<[1], [0], [0], [1], [0, 0, 1, 1], [], []>} : vector<1024x128xbf16>, vector<128x128xbf16>, vector<1024x128xf32> -> vector<1024x128xf32>
    %cst_3 = arith.constant 0.000000e+00 : f32
    %3 = vector.broadcast %cst_3 : f32 to vector<1024x128xf32>
    %4 = arith.cmpf oge, %2, %3 : vector<1024x128xf32>
    %cst_4 = arith.constant 2.000000e-01 : f32
    %5 = vector.broadcast %cst_4 : f32 to vector<1024x128xf32>
    %6 = arith.mulf %5, %2 : vector<1024x128xf32>
    %7 = arith.select %4, %2, %6 : vector<1024x128xi1>, vector<1024x128xf32>
    %8 = arith.truncf %7 : vector<1024x128xf32> to vector<1024x128xbf16>
    %c0_5 = arith.constant 0 : index
    %c0_6 = arith.constant 0 : index
    %9 = vector.load %arg3[%c0_5, %c0_6] : memref<1024x128xbf16, #tpu.memory_space<vmem>>, vector<1024x128xbf16>
    tpu.vector_store %arg3[%c0_5, %c0_6], %8 {strides = array<i32>} : memref<1024x128xbf16, #tpu.memory_space<vmem>>, vector<1024x128xbf16>,
    return
  }
  func.func @transform_0(%arg0: i32) -> (i32, i32) {
    %c0_i32 = arith.constant 0 : i32
    %c0_i32_0 = arith.constant 0 : i32
    return %arg0, %c0_i32 : i32, i32
  }
  func.func @transform_1(%arg0: i32) -> (i32, i32) {
    %c0_i32 = arith.constant 0 : i32
    %c0_i32_0 = arith.constant 0 : i32
    %c0_i32_1 = arith.constant 0 : i32
    return %c0_i32, %c0_i32_0 : i32, i32
  }
  func.func @transform_2(%arg0: i32) -> (i32, i32) {
    %c0_i32 = arith.constant 0 : i32
    %c0_i32_0 = arith.constant 0 : i32
    return %arg0, %c0_i32 : i32, i32
  }
}

module attributes {stable_mosaic.version = 11 : i64} {
  func.func @_conv_bn_lrelu_kernel(%arg0: i32, %arg1: memref<512x128xbf16, #tpu.memory_space<vmem>>, %arg2: memref<128x128xbf16, #tpu.memory_space<vmem>>, %arg3: memref<1x128xf32, #tpu.memory_space<vmem>>, %arg4: memref<1x128xf32, #tpu.memory_space<vmem>>, %arg5: memref<512x128xbf16, #tpu.memory_space<vmem>>) attributes {dimension_semantics = [#tpu.dimension_semantics<arbitrary>], iteration_bounds = array<i64: 1>, scalar_prefetch = 0 : i64, scratch_operands = 0 : i64, tpu.core_type = #tpu.core_type<tc>, window_params = [{pipeline_mode = #tpu.pipeline_mode<synchronous>, transform_indices = @transform_0, window_bounds = array<i64: 512, 128>}, {pipeline_mode = #tpu.pipeline_mode<synchronous>, transform_indices = @transform_1, window_bounds = array<i64: 128, 128>}, {pipeline_mode = #tpu.pipeline_mode<synchronous>, transform_indices = @transform_2, window_bounds = array<i64: 1, 128>}, {pipeline_mode = #tpu.pipeline_mode<synchronous>, transform_indices = @transform_3, window_bounds = array<i64: 1, 128>}, {pipeline_mode = #tpu.pipeline_mode<synchronous>, transform_indices = @transform_4, window_bounds = array<i64: 512, 128>}]} {
    %c0 = arith.constant 0 : index
    %c0_0 = arith.constant 0 : index
    %0 = vector.load %arg1[%c0, %c0_0] : memref<512x128xbf16, #tpu.memory_space<vmem>>, vector<512x128xbf16>
    %c0_1 = arith.constant 0 : index
    %c0_2 = arith.constant 0 : index
    %1 = vector.load %arg2[%c0_1, %c0_2] : memref<128x128xbf16, #tpu.memory_space<vmem>>, vector<128x128xbf16>
    %cst = arith.constant dense<0.000000e+00> : vector<512x128xf32>
    %2 = tpu.matmul %0, %1, %cst {dimension_numbers = #tpu.dot_dimension_numbers<[1], [0], [0], [1], [0, 0, 1, 1], [], []>} : vector<512x128xbf16>, vector<128x128xbf16>, vector<512x128xf32> -> vector<512x128xf32>
    %cst_3 = arith.constant dense<0.000000e+00> : vector<128xf32>
    %3 = vector.multi_reduction <add>, %2, %cst_3 [0] : vector<512x128xf32> to vector<128xf32>
    %4 = vector.shape_cast %3 : vector<128xf32> to vector<1x128xf32>
    %cst_4 = arith.constant 0.001953125 : f32
    %5 = vector.broadcast %cst_4 : f32 to vector<1x128xf32>
    %6 = arith.mulf %4, %5 : vector<1x128xf32>
    %7 = vector.broadcast %6 : vector<1x128xf32> to vector<512x128xf32>
    %8 = arith.subf %2, %7 : vector<512x128xf32>
    %9 = arith.mulf %8, %8 : vector<512x128xf32>
    %cst_5 = arith.constant dense<0.000000e+00> : vector<128xf32>
    %10 = vector.multi_reduction <add>, %9, %cst_5 [0] : vector<512x128xf32> to vector<128xf32>
    %11 = vector.shape_cast %10 : vector<128xf32> to vector<1x128xf32>
    %cst_6 = arith.constant 0.001953125 : f32
    %12 = vector.broadcast %cst_6 : f32 to vector<1x128xf32>
    %13 = arith.mulf %11, %12 : vector<1x128xf32>
    %c0_7 = arith.constant 0 : index
    %c0_8 = arith.constant 0 : index
    %14 = vector.load %arg3[%c0_7, %c0_8] : memref<1x128xf32, #tpu.memory_space<vmem>>, vector<1x128xf32>
    %cst_9 = arith.constant 9.99999974E-6 : f32
    %15 = vector.broadcast %cst_9 : f32 to vector<1x128xf32>
    %16 = arith.addf %13, %15 : vector<1x128xf32>
    %17 = math.rsqrt %16 : vector<1x128xf32>
    %18 = arith.mulf %14, %17 : vector<1x128xf32>
    %c0_10 = arith.constant 0 : index
    %c0_11 = arith.constant 0 : index
    %19 = vector.load %arg4[%c0_10, %c0_11] : memref<1x128xf32, #tpu.memory_space<vmem>>, vector<1x128xf32>
    %20 = arith.mulf %6, %18 : vector<1x128xf32>
    %21 = arith.subf %19, %20 : vector<1x128xf32>
    %22 = vector.broadcast %18 : vector<1x128xf32> to vector<512x128xf32>
    %23 = arith.mulf %2, %22 : vector<512x128xf32>
    %24 = vector.broadcast %21 : vector<1x128xf32> to vector<512x128xf32>
    %25 = arith.addf %23, %24 : vector<512x128xf32>
    %cst_12 = arith.constant 0.000000e+00 : f32
    %26 = vector.broadcast %cst_12 : f32 to vector<512x128xf32>
    %27 = arith.cmpf oge, %25, %26 : vector<512x128xf32>
    %cst_13 = arith.constant 2.000000e-01 : f32
    %28 = vector.broadcast %cst_13 : f32 to vector<512x128xf32>
    %29 = arith.mulf %28, %25 : vector<512x128xf32>
    %30 = arith.select %27, %25, %29 : vector<512x128xi1>, vector<512x128xf32>
    %31 = arith.truncf %30 : vector<512x128xf32> to vector<512x128xbf16>
    %c0_14 = arith.constant 0 : index
    %c0_15 = arith.constant 0 : index
    %32 = vector.load %arg5[%c0_14, %c0_15] : memref<512x128xbf16, #tpu.memory_space<vmem>>, vector<512x128xbf16>
    tpu.vector_store %arg5[%c0_14, %c0_15], %31 {strides = array<i32>} : memref<512x128xbf16, #tpu.memory_space<vmem>>, vector<512x128xbf16>,
    return
  }
  func.func @transform_0(%arg0: i32) -> (i32, i32) {
    %c0_i32 = arith.constant 0 : i32
    %c0_i32_0 = arith.constant 0 : i32
    %c0_i32_1 = arith.constant 0 : i32
    return %c0_i32, %c0_i32_0 : i32, i32
  }
  func.func @transform_1(%arg0: i32) -> (i32, i32) {
    %c0_i32 = arith.constant 0 : i32
    %c0_i32_0 = arith.constant 0 : i32
    %c0_i32_1 = arith.constant 0 : i32
    return %c0_i32, %c0_i32_0 : i32, i32
  }
  func.func @transform_2(%arg0: i32) -> (i32, i32) {
    %c0_i32 = arith.constant 0 : i32
    %c0_i32_0 = arith.constant 0 : i32
    %c0_i32_1 = arith.constant 0 : i32
    return %c0_i32, %c0_i32_0 : i32, i32
  }
  func.func @transform_3(%arg0: i32) -> (i32, i32) {
    %c0_i32 = arith.constant 0 : i32
    %c0_i32_0 = arith.constant 0 : i32
    %c0_i32_1 = arith.constant 0 : i32
    return %c0_i32, %c0_i32_0 : i32, i32
  }
  func.func @transform_4(%arg0: i32) -> (i32, i32) {
    %c0_i32 = arith.constant 0 : i32
    %c0_i32_0 = arith.constant 0 : i32
    %c0_i32_1 = arith.constant 0 : i32
    return %c0_i32, %c0_i32_0 : i32, i32
  }
}

module attributes {stable_mosaic.version = 11 : i64} {
  func.func @_conv_bn_lrelu_kernel(%arg0: i32, %arg1: memref<128x256xbf16, #tpu.memory_space<vmem>>, %arg2: memref<256x128xbf16, #tpu.memory_space<vmem>>, %arg3: memref<1x128xf32, #tpu.memory_space<vmem>>, %arg4: memref<1x128xf32, #tpu.memory_space<vmem>>, %arg5: memref<128x128xbf16, #tpu.memory_space<vmem>>) attributes {dimension_semantics = [#tpu.dimension_semantics<arbitrary>], iteration_bounds = array<i64: 1>, scalar_prefetch = 0 : i64, scratch_operands = 0 : i64, tpu.core_type = #tpu.core_type<tc>, window_params = [{pipeline_mode = #tpu.pipeline_mode<synchronous>, transform_indices = @transform_0, window_bounds = array<i64: 128, 256>}, {pipeline_mode = #tpu.pipeline_mode<synchronous>, transform_indices = @transform_1, window_bounds = array<i64: 256, 128>}, {pipeline_mode = #tpu.pipeline_mode<synchronous>, transform_indices = @transform_2, window_bounds = array<i64: 1, 128>}, {pipeline_mode = #tpu.pipeline_mode<synchronous>, transform_indices = @transform_3, window_bounds = array<i64: 1, 128>}, {pipeline_mode = #tpu.pipeline_mode<synchronous>, transform_indices = @transform_4, window_bounds = array<i64: 128, 128>}]} {
    %c0 = arith.constant 0 : index
    %c0_0 = arith.constant 0 : index
    %0 = vector.load %arg1[%c0, %c0_0] : memref<128x256xbf16, #tpu.memory_space<vmem>>, vector<128x256xbf16>
    %c0_1 = arith.constant 0 : index
    %c0_2 = arith.constant 0 : index
    %1 = vector.load %arg2[%c0_1, %c0_2] : memref<256x128xbf16, #tpu.memory_space<vmem>>, vector<256x128xbf16>
    %cst = arith.constant dense<0.000000e+00> : vector<128x128xf32>
    %2 = tpu.matmul %0, %1, %cst {dimension_numbers = #tpu.dot_dimension_numbers<[1], [0], [0], [1], [0, 0, 1, 1], [], []>} : vector<128x256xbf16>, vector<256x128xbf16>, vector<128x128xf32> -> vector<128x128xf32>
    %cst_3 = arith.constant dense<0.000000e+00> : vector<128xf32>
    %3 = vector.multi_reduction <add>, %2, %cst_3 [0] : vector<128x128xf32> to vector<128xf32>
    %4 = vector.shape_cast %3 : vector<128xf32> to vector<1x128xf32>
    %cst_4 = arith.constant 7.812500e-03 : f32
    %5 = vector.broadcast %cst_4 : f32 to vector<1x128xf32>
    %6 = arith.mulf %4, %5 : vector<1x128xf32>
    %7 = vector.broadcast %6 : vector<1x128xf32> to vector<128x128xf32>
    %8 = arith.subf %2, %7 : vector<128x128xf32>
    %9 = arith.mulf %8, %8 : vector<128x128xf32>
    %cst_5 = arith.constant dense<0.000000e+00> : vector<128xf32>
    %10 = vector.multi_reduction <add>, %9, %cst_5 [0] : vector<128x128xf32> to vector<128xf32>
    %11 = vector.shape_cast %10 : vector<128xf32> to vector<1x128xf32>
    %cst_6 = arith.constant 7.812500e-03 : f32
    %12 = vector.broadcast %cst_6 : f32 to vector<1x128xf32>
    %13 = arith.mulf %11, %12 : vector<1x128xf32>
    %c0_7 = arith.constant 0 : index
    %c0_8 = arith.constant 0 : index
    %14 = vector.load %arg3[%c0_7, %c0_8] : memref<1x128xf32, #tpu.memory_space<vmem>>, vector<1x128xf32>
    %cst_9 = arith.constant 9.99999974E-6 : f32
    %15 = vector.broadcast %cst_9 : f32 to vector<1x128xf32>
    %16 = arith.addf %13, %15 : vector<1x128xf32>
    %17 = math.rsqrt %16 : vector<1x128xf32>
    %18 = arith.mulf %14, %17 : vector<1x128xf32>
    %c0_10 = arith.constant 0 : index
    %c0_11 = arith.constant 0 : index
    %19 = vector.load %arg4[%c0_10, %c0_11] : memref<1x128xf32, #tpu.memory_space<vmem>>, vector<1x128xf32>
    %20 = arith.mulf %6, %18 : vector<1x128xf32>
    %21 = arith.subf %19, %20 : vector<1x128xf32>
    %22 = vector.broadcast %18 : vector<1x128xf32> to vector<128x128xf32>
    %23 = arith.mulf %2, %22 : vector<128x128xf32>
    %24 = vector.broadcast %21 : vector<1x128xf32> to vector<128x128xf32>
    %25 = arith.addf %23, %24 : vector<128x128xf32>
    %cst_12 = arith.constant 0.000000e+00 : f32
    %26 = vector.broadcast %cst_12 : f32 to vector<128x128xf32>
    %27 = arith.cmpf oge, %25, %26 : vector<128x128xf32>
    %cst_13 = arith.constant 2.000000e-01 : f32
    %28 = vector.broadcast %cst_13 : f32 to vector<128x128xf32>
    %29 = arith.mulf %28, %25 : vector<128x128xf32>
    %30 = arith.select %27, %25, %29 : vector<128x128xi1>, vector<128x128xf32>
    %31 = arith.truncf %30 : vector<128x128xf32> to vector<128x128xbf16>
    %c0_14 = arith.constant 0 : index
    %c0_15 = arith.constant 0 : index
    %32 = vector.load %arg5[%c0_14, %c0_15] : memref<128x128xbf16, #tpu.memory_space<vmem>>, vector<128x128xbf16>
    tpu.vector_store %arg5[%c0_14, %c0_15], %31 {strides = array<i32>} : memref<128x128xbf16, #tpu.memory_space<vmem>>, vector<128x128xbf16>,
    return
  }
  func.func @transform_0(%arg0: i32) -> (i32, i32) {
    %c0_i32 = arith.constant 0 : i32
    %c0_i32_0 = arith.constant 0 : i32
    %c0_i32_1 = arith.constant 0 : i32
    return %c0_i32, %c0_i32_0 : i32, i32
  }
  func.func @transform_1(%arg0: i32) -> (i32, i32) {
    %c0_i32 = arith.constant 0 : i32
    %c0_i32_0 = arith.constant 0 : i32
    %c0_i32_1 = arith.constant 0 : i32
    return %c0_i32, %c0_i32_0 : i32, i32
  }
  func.func @transform_2(%arg0: i32) -> (i32, i32) {
    %c0_i32 = arith.constant 0 : i32
    %c0_i32_0 = arith.constant 0 : i32
    %c0_i32_1 = arith.constant 0 : i32
    return %c0_i32, %c0_i32_0 : i32, i32
  }
  func.func @transform_3(%arg0: i32) -> (i32, i32) {
    %c0_i32 = arith.constant 0 : i32
    %c0_i32_0 = arith.constant 0 : i32
    %c0_i32_1 = arith.constant 0 : i32
    return %c0_i32, %c0_i32_0 : i32, i32
  }
  func.func @transform_4(%arg0: i32) -> (i32, i32) {
    %c0_i32 = arith.constant 0 : i32
    %c0_i32_0 = arith.constant 0 : i32
    %c0_i32_1 = arith.constant 0 : i32
    return %c0_i32, %c0_i32_0 : i32, i32
  }
}

module attributes {stable_mosaic.version = 11 : i64} {
  func.func @_conv_bn_lrelu_kernel(%arg0: i32, %arg1: memref<32x512xbf16, #tpu.memory_space<vmem>>, %arg2: memref<512x128xbf16, #tpu.memory_space<vmem>>, %arg3: memref<1x128xf32, #tpu.memory_space<vmem>>, %arg4: memref<1x128xf32, #tpu.memory_space<vmem>>, %arg5: memref<32x128xbf16, #tpu.memory_space<vmem>>) attributes {dimension_semantics = [#tpu.dimension_semantics<arbitrary>], iteration_bounds = array<i64: 1>, scalar_prefetch = 0 : i64, scratch_operands = 0 : i64, tpu.core_type = #tpu.core_type<tc>, window_params = [{pipeline_mode = #tpu.pipeline_mode<synchronous>, transform_indices = @transform_0, window_bounds = array<i64: 32, 512>}, {pipeline_mode = #tpu.pipeline_mode<synchronous>, transform_indices = @transform_1, window_bounds = array<i64: 512, 128>}, {pipeline_mode = #tpu.pipeline_mode<synchronous>, transform_indices = @transform_2, window_bounds = array<i64: 1, 128>}, {pipeline_mode = #tpu.pipeline_mode<synchronous>, transform_indices = @transform_3, window_bounds = array<i64: 1, 128>}, {pipeline_mode = #tpu.pipeline_mode<synchronous>, transform_indices = @transform_4, window_bounds = array<i64: 32, 128>}]} {
    %c0 = arith.constant 0 : index
    %c0_0 = arith.constant 0 : index
    %0 = vector.load %arg1[%c0, %c0_0] : memref<32x512xbf16, #tpu.memory_space<vmem>>, vector<32x512xbf16>
    %c0_1 = arith.constant 0 : index
    %c0_2 = arith.constant 0 : index
    %1 = vector.load %arg2[%c0_1, %c0_2] : memref<512x128xbf16, #tpu.memory_space<vmem>>, vector<512x128xbf16>
    %cst = arith.constant dense<0.000000e+00> : vector<32x128xf32>
    %2 = tpu.matmul %0, %1, %cst {dimension_numbers = #tpu.dot_dimension_numbers<[1], [0], [0], [1], [0, 0, 1, 1], [], []>} : vector<32x512xbf16>, vector<512x128xbf16>, vector<32x128xf32> -> vector<32x128xf32>
    %cst_3 = arith.constant dense<0.000000e+00> : vector<128xf32>
    %3 = vector.multi_reduction <add>, %2, %cst_3 [0] : vector<32x128xf32> to vector<128xf32>
    %4 = vector.shape_cast %3 : vector<128xf32> to vector<1x128xf32>
    %cst_4 = arith.constant 3.125000e-02 : f32
    %5 = vector.broadcast %cst_4 : f32 to vector<1x128xf32>
    %6 = arith.mulf %4, %5 : vector<1x128xf32>
    %7 = vector.broadcast %6 : vector<1x128xf32> to vector<32x128xf32>
    %8 = arith.subf %2, %7 : vector<32x128xf32>
    %9 = arith.mulf %8, %8 : vector<32x128xf32>
    %cst_5 = arith.constant dense<0.000000e+00> : vector<128xf32>
    %10 = vector.multi_reduction <add>, %9, %cst_5 [0] : vector<32x128xf32> to vector<128xf32>
    %11 = vector.shape_cast %10 : vector<128xf32> to vector<1x128xf32>
    %cst_6 = arith.constant 3.125000e-02 : f32
    %12 = vector.broadcast %cst_6 : f32 to vector<1x128xf32>
    %13 = arith.mulf %11, %12 : vector<1x128xf32>
    %c0_7 = arith.constant 0 : index
    %c0_8 = arith.constant 0 : index
    %14 = vector.load %arg3[%c0_7, %c0_8] : memref<1x128xf32, #tpu.memory_space<vmem>>, vector<1x128xf32>
    %cst_9 = arith.constant 9.99999974E-6 : f32
    %15 = vector.broadcast %cst_9 : f32 to vector<1x128xf32>
    %16 = arith.addf %13, %15 : vector<1x128xf32>
    %17 = math.rsqrt %16 : vector<1x128xf32>
    %18 = arith.mulf %14, %17 : vector<1x128xf32>
    %c0_10 = arith.constant 0 : index
    %c0_11 = arith.constant 0 : index
    %19 = vector.load %arg4[%c0_10, %c0_11] : memref<1x128xf32, #tpu.memory_space<vmem>>, vector<1x128xf32>
    %20 = arith.mulf %6, %18 : vector<1x128xf32>
    %21 = arith.subf %19, %20 : vector<1x128xf32>
    %22 = vector.broadcast %18 : vector<1x128xf32> to vector<32x128xf32>
    %23 = arith.mulf %2, %22 : vector<32x128xf32>
    %24 = vector.broadcast %21 : vector<1x128xf32> to vector<32x128xf32>
    %25 = arith.addf %23, %24 : vector<32x128xf32>
    %cst_12 = arith.constant 0.000000e+00 : f32
    %26 = vector.broadcast %cst_12 : f32 to vector<32x128xf32>
    %27 = arith.cmpf oge, %25, %26 : vector<32x128xf32>
    %cst_13 = arith.constant 2.000000e-01 : f32
    %28 = vector.broadcast %cst_13 : f32 to vector<32x128xf32>
    %29 = arith.mulf %28, %25 : vector<32x128xf32>
    %30 = arith.select %27, %25, %29 : vector<32x128xi1>, vector<32x128xf32>
    %31 = arith.truncf %30 : vector<32x128xf32> to vector<32x128xbf16>
    %c0_14 = arith.constant 0 : index
    %c0_15 = arith.constant 0 : index
    %32 = vector.load %arg5[%c0_14, %c0_15] : memref<32x128xbf16, #tpu.memory_space<vmem>>, vector<32x128xbf16>
    tpu.vector_store %arg5[%c0_14, %c0_15], %31 {strides = array<i32>} : memref<32x128xbf16, #tpu.memory_space<vmem>>, vector<32x128xbf16>,
    return
  }
  func.func @transform_0(%arg0: i32) -> (i32, i32) {
    %c0_i32 = arith.constant 0 : i32
    %c0_i32_0 = arith.constant 0 : i32
    %c0_i32_1 = arith.constant 0 : i32
    return %c0_i32, %c0_i32_0 : i32, i32
  }
  func.func @transform_1(%arg0: i32) -> (i32, i32) {
    %c0_i32 = arith.constant 0 : i32
    %c0_i32_0 = arith.constant 0 : i32
    %c0_i32_1 = arith.constant 0 : i32
    return %c0_i32, %c0_i32_0 : i32, i32
  }
  func.func @transform_2(%arg0: i32) -> (i32, i32) {
    %c0_i32 = arith.constant 0 : i32
    %c0_i32_0 = arith.constant 0 : i32
    %c0_i32_1 = arith.constant 0 : i32
    return %c0_i32, %c0_i32_0 : i32, i32
  }
  func.func @transform_3(%arg0: i32) -> (i32, i32) {
    %c0_i32 = arith.constant 0 : i32
    %c0_i32_0 = arith.constant 0 : i32
    %c0_i32_1 = arith.constant 0 : i32
    return %c0_i32, %c0_i32_0 : i32, i32
  }
  func.func @transform_4(%arg0: i32) -> (i32, i32) {
    %c0_i32 = arith.constant 0 : i32
    %c0_i32_0 = arith.constant 0 : i32
    %c0_i32_1 = arith.constant 0 : i32
    return %c0_i32, %c0_i32_0 : i32, i32
  }
}

module attributes {stable_mosaic.version = 11 : i64} {
  func.func @_conv_act_kernel(%arg0: i32, %arg1: memref<8x1024xbf16, #tpu.memory_space<vmem>>, %arg2: memref<1024x128xbf16, #tpu.memory_space<vmem>>, %arg3: memref<8x128xf32, #tpu.memory_space<vmem>>) attributes {dimension_semantics = [#tpu.dimension_semantics<parallel>], iteration_bounds = array<i64: 1>, scalar_prefetch = 0 : i64, scratch_operands = 0 : i64, tpu.core_type = #tpu.core_type<tc>, window_params = [{transform_indices = @transform_0, window_bounds = array<i64: 8, 1024>}, {pipeline_mode = #tpu.pipeline_mode<synchronous>, transform_indices = @transform_1, window_bounds = array<i64: 1024, 128>}, {transform_indices = @transform_2, window_bounds = array<i64: 8, 128>}]} {
    %c0 = arith.constant 0 : index
    %c0_0 = arith.constant 0 : index
    %0 = vector.load %arg1[%c0, %c0_0] : memref<8x1024xbf16, #tpu.memory_space<vmem>>, vector<8x1024xbf16>
    %c0_1 = arith.constant 0 : index
    %c0_2 = arith.constant 0 : index
    %1 = vector.load %arg2[%c0_1, %c0_2] : memref<1024x128xbf16, #tpu.memory_space<vmem>>, vector<1024x128xbf16>
    %cst = arith.constant dense<0.000000e+00> : vector<8x128xf32>
    %2 = tpu.matmul %0, %1, %cst {dimension_numbers = #tpu.dot_dimension_numbers<[1], [0], [0], [1], [0, 0, 1, 1], [], []>} : vector<8x1024xbf16>, vector<1024x128xbf16>, vector<8x128xf32> -> vector<8x128xf32>
    %cst_3 = arith.constant 0.000000e+00 : f32
    %3 = vector.broadcast %cst_3 : f32 to vector<8x128xf32>
    %4 = arith.subf %3, %2 : vector<8x128xf32>
    %5 = math.exp %4 : vector<8x128xf32>
    %cst_4 = arith.constant 1.000000e+00 : f32
    %6 = vector.broadcast %cst_4 : f32 to vector<8x128xf32>
    %7 = arith.addf %6, %5 : vector<8x128xf32>
    %cst_5 = arith.constant 1.000000e+00 : f32
    %8 = vector.broadcast %cst_5 : f32 to vector<8x128xf32>
    %9 = arith.divf %8, %7 : vector<8x128xf32>
    %c0_6 = arith.constant 0 : index
    %c0_7 = arith.constant 0 : index
    %10 = vector.load %arg3[%c0_6, %c0_7] : memref<8x128xf32, #tpu.memory_space<vmem>>, vector<8x128xf32>
    tpu.vector_store %arg3[%c0_6, %c0_7], %9 {strides = array<i32>} : memref<8x128xf32, #tpu.memory_space<vmem>>, vector<8x128xf32>,
    return
  }
  func.func @transform_0(%arg0: i32) -> (i32, i32) {
    %c0_i32 = arith.constant 0 : i32
    %c0_i32_0 = arith.constant 0 : i32
    return %arg0, %c0_i32 : i32, i32
  }
  func.func @transform_1(%arg0: i32) -> (i32, i32) {
    %c0_i32 = arith.constant 0 : i32
    %c0_i32_0 = arith.constant 0 : i32
    %c0_i32_1 = arith.constant 0 : i32
    return %c0_i32, %c0_i32_0 : i32, i32
  }
  func.func @transform_2(%arg0: i32) -> (i32, i32) {
    %c0_i32 = arith.constant 0 : i32
    %c0_i32_0 = arith.constant 0 : i32
    return %arg0, %c0_i32 : i32, i32
  }
}

</mosaic_0001>

<llo_original>
// kernel: discriminator_forward.5
$region0: #{discriminator_forward.5}
  #allocation0 [shape = 'u32[]', space=smem, size = 0x4, offset = 0x4, fixed_abs, tag = 'smem constant byte address 0x4 - core index']
  #allocation1 [shape = 'u32[72,128]{1,0:T(1,128)}', space=vmem, size = 0x9000, scoped, tag = 'internal scratch']
  %s0 = inlined_call_operand.vmem [shape: bf16[2048,128], index: 0, kind: input, shape index: {}]
  %s1 = inlined_call_operand.vmem [shape: bf16[128,128], index: 1, kind: input, shape index: {}]
  %s2 = inlined_call_operand.vmem [shape: bf16[2048,128], index: 2, kind: output, shape index: {}]
  %s3 = sld [smem:[#allocation0]]
  $region41: #{discriminator_forward.5} parent=0
    _
  %s5 = ssub.s32 1, %s3
  %s6 = scalar_select 0, %s5, %s3
  loop: start=0, step=1, limit=4
  $region2: #{discriminator_forward.5} parent=0 // loop_pre_header
    _
  $region3: #{discriminator_forward.5} parent=0 // loop_header
    %s8 = sphi 0, %s12
    %p9 = scmp.ge.s32.totalorder %s8, 4
    %s18 = sphi 0, %s20
    %s21 = sphi 0, %s18
    %s22 = sphi 0, %s21
    %s38 = sphi 0, %s22
    %s42 = sphi 0, %s42
    %s44 = sphi 0, %s42
    %s45 = sphi 0, %s44
    %s59 = sphi 0, %s45
    %s65 = sphi 0, %s67
    %s68 = sphi 0, %s65
    %s69 = sphi 0, %s68
    %s85 = sphi 0, %s69
  $region4: #{discriminator_forward.5} parent=0 // loop_header_branch
    %11 = sbr.rel (%p9) target = $region8
  $region5: #{discriminator_forward.5} parent=0 // loop_body
    %s13 = ssub.s32 %s8, 1
    %s14 = ssub.s32 %s8, 2
    %s15 = sadd.s32 %s8, 1
    %s16 = ssub.s32 %s8, %s15
    %p17 = scmp.eq.s32.totalorder %s16, 0
    %s19 = sadd.s32 %s18, 1
    %s20 = scalar_select %p17, %s18, %s19
    %p23 = pneg %p17
    %p24 = scmp.eq.s32.totalorder %s8, 1
    %p25 = por %p23, %p24
    %p26 = scmp.ne.s32.totalorder %s18, %s21
    %p27 = scmp.eq.s32.totalorder %s8, 0
    %p28 = por %p26, %p27
    %p29 = scmp.ne.s32.totalorder %s18, %s21
    %p30 = scmp.eq.s32.totalorder %s13, 1
    %p31 = por %p29, %p30
    %p32 = scmp.ne.s32.totalorder %s21, %s22
    %p33 = scmp.eq.s32.totalorder %s13, 0
    %p34 = por %p32, %p33
    %p35 = scmp.ne.s32.totalorder %s21, %s22
    %p36 = scmp.eq.s32.totalorder %s14, 1
    %p37 = por %p35, %p36
    %p39 = scmp.ne.s32.totalorder %s22, %s38
    %p40 = scmp.eq.s32.totalorder %s14, 0
    %p41 = por %p39, %p40
    %s43 = sadd.s32 %s42, 1
    %p46 = scmp.eq.s32.totalorder %s8, 1
    %p47 = scmp.ne.s32.totalorder %s42, %s44
    %p48 = scmp.eq.s32.totalorder %s8, 0
    %p49 = por %p47, %p48
    %p50 = scmp.ne.s32.totalorder %s42, %s44
    %p51 = scmp.eq.s32.totalorder %s13, 1
    %p52 = por %p50, %p51
    %p53 = scmp.ne.s32.totalorder %s44, %s45
    %p54 = scmp.eq.s32.totalorder %s13, 0
    %p55 = por %p53, %p54
    %p56 = scmp.ne.s32.totalorder %s44, %s45
    %p57 = scmp.eq.s32.totalorder %s14, 1
    %p58 = por %p56, %p57
    %p60 = scmp.ne.s32.totalorder %s45, %s59
    %p61 = scmp.eq.s32.totalorder %s14, 0
    %p62 = por %p60, %p61
    %s63 = ssub.s32 %s8, %s15
    %p64 = scmp.eq.s32.totalorder %s63, 0
    %s66 = sadd.s32 %s65, 1
    %s67 = scalar_select %p64, %s65, %s66
    %p70 = pneg %p64
    %p71 = scmp.eq.s32.totalorder %s8, 1
    %p72 = por %p70, %p71
    %p73 = scmp.ne.s32.totalorder %s65, %s68
    %p74 = scmp.eq.s32.totalorder %s8, 0
    %p75 = por %p73, %p74
    %p76 = scmp.ne.s32.totalorder %s65, %s68
    %p77 = scmp.eq.s32.totalorder %s13, 1
    %p78 = por %p76, %p77
    %p79 = scmp.ne.s32.totalorder %s68, %s69
    %p80 = scmp.eq.s32.totalorder %s13, 0
    %p81 = por %p79, %p80
    %p82 = scmp.ne.s32.totalorder %s68, %s69
    %p83 = scmp.eq.s32.totalorder %s14, 1
    %p84 = por %p82, %p83
    %p86 = scmp.ne.s32.totalorder %s69, %s85
    %p87 = scmp.eq.s32.totalorder %s14, 0
    %p88 = por %p86, %p87
    %p89 = scmp.le.s32.totalorder 1, %s8
    %p90 = scmp.lt.s32.totalorder %s8, 3
    %p91 = pnand %p89, %p90
    %p92 = pneg %p91
    // Predicated region
    $region9: #{discriminator_forward.5} parent=5 // pred_check
      _
    $region10: #{discriminator_forward.5} parent=5 // pred_check_branch
      %94 = sbr.rel (%p91) target = $region12
    $region11: #{discriminator_forward.5} parent=5 // pred_region
      %s95 = ssub.s32 %s8, 1
      // Predicated region
      $region13: #{discriminator_forward.5} parent=11 // pred_check
        %p96 = pneg %p55
      $region14: #{discriminator_forward.5} parent=11 // pred_check_branch
        %98 = sbr.rel (%p96) target = $region16
      $region15: #{discriminator_forward.5} parent=11 // pred_region
        _
      $region16: #{discriminator_forward.5} parent=11 // pred_fallthru
        _
    $region12: #{discriminator_forward.5} parent=5 // pred_fallthru
      _
    %p99 = scmp.lt.s32.totalorder %s8, 2
    // Predicated region
    $region17: #{discriminator_forward.5} parent=5 // pred_check
      %p100 = pneg %p99
    $region18: #{discriminator_forward.5} parent=5 // pred_check_branch
      %102 = sbr.rel (%p100) target = $region20
    $region19: #{discriminator_forward.5} parent=5 // pred_region
      // Predicated region
      $region21: #{discriminator_forward.5} parent=19 // pred_check
        %p103 = pneg %p28
      $region22: #{discriminator_forward.5} parent=19 // pred_check_branch
        %105 = sbr.rel (%p103) target = $region24
      $region23: #{discriminator_forward.5} parent=19 // pred_region
        %s106 = smul.u32 128, %s8
        %p107 = scmp.lt.s32.totalorder %s106, 255
        %s108 = scalar_select %p107, %s106, 255
        %s109 = smul.addr %s108, 4
        %s110 = scalar_lea.vmem %s0, %s109
        %s111 = smul.u32 128, %s8
      $region24: #{discriminator_forward.5} parent=19 // pred_fallthru
        _
    $region20: #{discriminator_forward.5} parent=5 // pred_fallthru
      _
    %p112 = scmp.le.s32.totalorder 1, %s8
    %p113 = scmp.lt.s32.totalorder %s8, 3
    %p114 = pnand %p112, %p113
    %p115 = pneg %p114
    // Predicated region
    $region25: #{discriminator_forward.5} parent=5 // pred_check
      _
    $region26: #{discriminator_forward.5} parent=5 // pred_check_branch
      %117 = sbr.rel (%p114) target = $region28
    $region27: #{discriminator_forward.5} parent=5 // pred_region
      %s118 = ssub.s32 %s8, 1
      %s119 = smul.u32 128, %s13
      %p120 = scmp.lt.s32.totalorder %s119, 255
      %s121 = scalar_select %p120, %s119, 255
      %s122 = smul.addr %s121, 4
      %s123 = scalar_lea.vmem %s0, %s122
      %p124 = pneg %p34
      %p125 = pneg %p31
      %p126 = pneg %p55
      %p127 = pneg %p52
      %p128 = pneg %p81
      %p129 = pneg %p78
      %s130 = smul.u32 128, %s13
      %p131 = scmp.lt.s32.totalorder %s130, 255
      %s132 = scalar_select %p131, %s130, 255
      %s133 = smul.addr %s132, 4
      %s134 = scalar_lea.vmem %s2, %s133
      %s135 = smul.u32 128, %s13
      %p136 = scmp.lt.s32.totalorder %s135, 255
      %s137 = scalar_select %p136, %s135, 255
      %s138 = smul.addr %s137, 4
      %s139 = scalar_lea.vmem %s0, %s138
      %s140 = smul.u32 128, %s13
      %s141 = smul.u32 128, %s13
      %p142 = scmp.lt.s32.totalorder %s141, 255
      %s143 = scalar_select %p142, %s141, 255
      %s144 = smul.addr %s143, 4
      %s145 = scalar_lea.vmem %s2, %s144
      %s146 = smul.u32 128, %s13
      %v147 = vld [vmem:[%s139] sm:$0xf]
      %v148 = vld [vmem:[%s139 + $0x4] sm:$0xf]
      %v149 = vld [vmem:[%s139 + $0x8] sm:$0xf]
      %v150 = vld [vmem:[%s139 + $0xc] sm:$0xf]
      %v151 = vld [vmem:[%s139 + $0x10] sm:$0xf]
      %v152 = vld [vmem:[%s139 + $0x14] sm:$0xf]
      %v153 = vld [vmem:[%s139 + $0x18] sm:$0xf]
      %v154 = vld [vmem:[%s139 + $0x1c] sm:$0xf]
      %v155 = vld [vmem:[%s139 + $0x20] sm:$0xf]
      %v156 = vld [vmem:[%s139 + $0x24] sm:$0xf]
      %v157 = vld [vmem:[%s139 + $0x28] sm:$0xf]
      %v158 = vld [vmem:[%s139 + $0x2c] sm:$0xf]
      %v159 = vld [vmem:[%s139 + $0x30] sm:$0xf]
      %v160 = vld [vmem:[%s139 + $0x34] sm:$0xf]
      %v161 = vld [vmem:[%s139 + $0x38] sm:$0xf]
      %v162 = vld [vmem:[%s139 + $0x3c] sm:$0xf]
      %v163 = vld [vmem:[%s139 + $0x40] sm:$0xf]
      %v164 = vld [vmem:[%s139 + $0x44] sm:$0xf]
      %v165 = vld [vmem:[%s139 + $0x48] sm:$0xf]
      %v166 = vld [vmem:[%s139 + $0x4c] sm:$0xf]
      %v167 = vld [vmem:[%s139 + $0x50] sm:$0xf]
      %v168 = vld [vmem:[%s139 + $0x54] sm:$0xf]
      %v169 = vld [vmem:[%s139 + $0x58] sm:$0xf]
      %v170 = vld [vmem:[%s139 + $0x5c] sm:$0xf]
      %v171 = vld [vmem:[%s139 + $0x60] sm:$0xf]
      %v172 = vld [vmem:[%s139 + $0x64] sm:$0xf]
      %v173 = vld [vmem:[%s139 + $0x68] sm:$0xf]
      %v174 = vld [vmem:[%s139 + $0x6c] sm:$0xf]
      %v175 = vld [vmem:[%s139 + $0x70] sm:$0xf]
      %v176 = vld [vmem:[%s139 + $0x74] sm:$0xf]
      %v177 = vld [vmem:[%s139 + $0x78] sm:$0xf]
      %v178 = vld [vmem:[%s139 + $0x7c] sm:$0xf]
      %v179 = vld [vmem:[%s139 + $0x80] sm:$0xf]
      %v180 = vld [vmem:[%s139 + $0x84] sm:$0xf]
      %v181 = vld [vmem:[%s139 + $0x88] sm:$0xf]
      %v182 = vld [vmem:[%s139 + $0x8c] sm:$0xf]
      %v183 = vld [vmem:[%s139 + $0x90] sm:$0xf]
      %v184 = vld [vmem:[%s139 + $0x94] sm:$0xf]
      %v185 = vld [vmem:[%s139 + $0x98] sm:$0xf]
      %v186 = vld [vmem:[%s139 + $0x9c] sm:$0xf]
      %v187 = vld [vmem:[%s139 + $0xa0] sm:$0xf]
      %v188 = vld [vmem:[%s139 + $0xa4] sm:$0xf]
      %v189 = vld [vmem:[%s139 + $0xa8] sm:$0xf]
      %v190 = vld [vmem:[%s139 + $0xac] sm:$0xf]
      %v191 = vld [vmem:[%s139 + $0xb0] sm:$0xf]
      %v192 = vld [vmem:[%s139 + $0xb4] sm:$0xf]
      %v193 = vld [vmem:[%s139 + $0xb8] sm:$0xf]
      %v194 = vld [vmem:[%s139 + $0xbc] sm:$0xf]
      %v195 = vld [vmem:[%s139 + $0xc0] sm:$0xf]
      %v196 = vld [vmem:[%s139 + $0xc4] sm:$0xf]
      %v197 = vld [vmem:[%s139 + $0xc8] sm:$0xf]
      %v198 = vld [vmem:[%s139 + $0xcc] sm:$0xf]
      %v199 = vld [vmem:[%s139 + $0xd0] sm:$0xf]
      %v200 = vld [vmem:[%s139 + $0xd4] sm:$0xf]
      %v201 = vld [vmem:[%s139 + $0xd8] sm:$0xf]
      %v202 = vld [vmem:[%s139 + $0xdc] sm:$0xf]
      %v203 = vld [vmem:[%s139 + $0xe0] sm:$0xf]
      %v204 = vld [vmem:[%s139 + $0xe4] sm:$0xf]
      %v205 = vld [vmem:[%s139 + $0xe8] sm:$0xf]
      %v206 = vld [vmem:[%s139 + $0xec] sm:$0xf]
      %v207 = vld [vmem:[%s139 + $0xf0] sm:$0xf]
      %v208 = vld [vmem:[%s139 + $0xf4] sm:$0xf]
      %v209 = vld [vmem:[%s139 + $0xf8] sm:$0xf]
      %v210 = vld [vmem:[%s139 + $0xfc] sm:$0xf]
      %v211 = vld [vmem:[%s139 + $0x100] sm:$0xf]
      %v212 = vld [vmem:[%s139 + $0x104] sm:$0xf]
      %v213 = vld [vmem:[%s139 + $0x108] sm:$0xf]
      %v214 = vld [vmem:[%s139 + $0x10c] sm:$0xf]
      %v215 = vld [vmem:[%s139 + $0x110] sm:$0xf]
      %v216 = vld [vmem:[%s139 + $0x114] sm:$0xf]
      %v217 = vld [vmem:[%s139 + $0x118] sm:$0xf]
      %v218 = vld [vmem:[%s139 + $0x11c] sm:$0xf]
      %v219 = vld [vmem:[%s139 + $0x120] sm:$0xf]
      %v220 = vld [vmem:[%s139 + $0x124] sm:$0xf]
      %v221 = vld [vmem:[%s139 + $0x128] sm:$0xf]
      %v222 = vld [vmem:[%s139 + $0x12c] sm:$0xf]
      %v223 = vld [vmem:[%s139 + $0x130] sm:$0xf]
      %v224 = vld [vmem:[%s139 + $0x134] sm:$0xf]
      %v225 = vld [vmem:[%s139 + $0x138] sm:$0xf]
      %v226 = vld [vmem:[%s139 + $0x13c] sm:$0xf]
      %v227 = vld [vmem:[%s139 + $0x140] sm:$0xf]
      %v228 = vld [vmem:[%s139 + $0x144] sm:$0xf]
      %v229 = vld [vmem:[%s139 + $0x148] sm:$0xf]
      %v230 = vld [vmem:[%s139 + $0x14c] sm:$0xf]
      %v231 = vld [vmem:[%s139 + $0x150] sm:$0xf]
      %v232 = vld [vmem:[%s139 + $0x154] sm:$0xf]
      %v233 = vld [vmem:[%s139 + $0x158] sm:$0xf]
      %v234 = vld [vmem:[%s139 + $0x15c] sm:$0xf]
      %v235 = vld [vmem:[%s139 + $0x160] sm:$0xf]
      %v236 = vld [vmem:[%s139 + $0x164] sm:$0xf]
      %v237 = vld [vmem:[%s139 + $0x168] sm:$0xf]
      %v238 = vld [vmem:[%s139 + $0x16c] sm:$0xf]
      %v239 = vld [vmem:[%s139 + $0x170] sm:$0xf]
      %v240 = vld [vmem:[%s139 + $0x174] sm:$0xf]
      %v241 = vld [vmem:[%s139 + $0x178] sm:$0xf]
      %v242 = vld [vmem:[%s139 + $0x17c] sm:$0xf]
      %v243 = vld [vmem:[%s139 + $0x180] sm:$0xf]
      %v244 = vld [vmem:[%s139 + $0x184] sm:$0xf]
      %v245 = vld [vmem:[%s139 + $0x188] sm:$0xf]
      %v246 = vld [vmem:[%s139 + $0x18c] sm:$0xf]
      %v247 = vld [vmem:[%s139 + $0x190] sm:$0xf]
      %v248 = vld [vmem:[%s139 + $0x194] sm:$0xf]
      %v249 = vld [vmem:[%s139 + $0x198] sm:$0xf]
      %v250 = vld [vmem:[%s139 + $0x19c] sm:$0xf]
      %v251 = vld [vmem:[%s139 + $0x1a0] sm:$0xf]
      %v252 = vld [vmem:[%s139 + $0x1a4] sm:$0xf]
      %v253 = vld [vmem:[%s139 + $0x1a8] sm:$0xf]
      %v254 = vld [vmem:[%s139 + $0x1ac] sm:$0xf]
      %v255 = vld [vmem:[%s139 + $0x1b0] sm:$0xf]
      %v256 = vld [vmem:[%s139 + $0x1b4] sm:$0xf]
      %v257 = vld [vmem:[%s139 + $0x1b8] sm:$0xf]
      %v258 = vld [vmem:[%s139 + $0x1bc] sm:$0xf]
      %v259 = vld [vmem:[%s139 + $0x1c0] sm:$0xf]
      %v260 = vld [vmem:[%s139 + $0x1c4] sm:$0xf]
      %v261 = vld [vmem:[%s139 + $0x1c8] sm:$0xf]
      %v262 = vld [vmem:[%s139 + $0x1cc] sm:$0xf]
      %v263 = vld [vmem:[%s139 + $0x1d0] sm:$0xf]
      %v264 = vld [vmem:[%s139 + $0x1d4] sm:$0xf]
      %v265 = vld [vmem:[%s139 + $0x1d8] sm:$0xf]
      %v266 = vld [vmem:[%s139 + $0x1dc] sm:$0xf]
      %v267 = vld [vmem:[%s139 + $0x1e0] sm:$0xf]
      %v268 = vld [vmem:[%s139 + $0x1e4] sm:$0xf]
      %v269 = vld [vmem:[%s139 + $0x1e8] sm:$0xf]
      %v270 = vld [vmem:[%s139 + $0x1ec] sm:$0xf]
      %v271 = vld [vmem:[%s139 + $0x1f0] sm:$0xf]
      %v272 = vld [vmem:[%s139 + $0x1f4] sm:$0xf]
      %v273 = vld [vmem:[%s139 + $0x1f8] sm:$0xf]
      %v274 = vld [vmem:[%s139 + $0x1fc] sm:$0xf]
      %v275 = vld [vmem:[%s1] sm:$0xf]
      %v276 = vld [vmem:[%s1 + $0x4] sm:$0xf]
      %v277 = vld [vmem:[%s1 + $0x8] sm:$0xf]
      %v278 = vld [vmem:[%s1 + $0xc] sm:$0xf]
      %v279 = vld [vmem:[%s1 + $0x10] sm:$0xf]
      %v280 = vld [vmem:[%s1 + $0x14] sm:$0xf]
      %v281 = vld [vmem:[%s1 + $0x18] sm:$0xf]
      %v282 = vld [vmem:[%s1 + $0x1c] sm:$0xf]
      %v283 = vld [vmem:[%s1 + $0x20] sm:$0xf]
      %v284 = vld [vmem:[%s1 + $0x24] sm:$0xf]
      %v285 = vld [vmem:[%s1 + $0x28] sm:$0xf]
      %v286 = vld [vmem:[%s1 + $0x2c] sm:$0xf]
      %v287 = vld [vmem:[%s1 + $0x30] sm:$0xf]
      %v288 = vld [vmem:[%s1 + $0x34] sm:$0xf]
      %v289 = vld [vmem:[%s1 + $0x38] sm:$0xf]
      %v290 = vld [vmem:[%s1 + $0x3c] sm:$0xf]
      %v419 = vunpack.c.l.b16 %v147
      %v420 = vunpack.c.l.b16 %v148
      %v421 = vunpack.c.l.b16 %v149
      %v422 = vunpack.c.l.b16 %v150
      %v423 = vunpack.c.l.b16 %v151
      %v424 = vunpack.c.l.b16 %v152
      %v425 = vunpack.c.l.b16 %v153
      %v426 = vunpack.c.l.b16 %v154
      %v427 = vunpack.c.l.b16 %v155
      %v428 = vunpack.c.l.b16 %v156
      %v429 = vunpack.c.l.b16 %v157
      %v430 = vunpack.c.l.b16 %v158
      %v431 = vunpack.c.l.b16 %v159
      %v432 = vunpack.c.l.b16 %v160
      %v433 = vunpack.c.l.b16 %v161
      %v434 = vunpack.c.l.b16 %v162
      %v435 = vunpack.c.l.b16 %v163
      %v436 = vunpack.c.l.b16 %v164
      %v437 = vunpack.c.l.b16 %v165
      %v438 = vunpack.c.l.b16 %v166
      %v439 = vunpack.c.l.b16 %v167
      %v440 = vunpack.c.l.b16 %v168
      %v441 = vunpack.c.l.b16 %v169
      %v442 = vunpack.c.l.b16 %v170
      %v443 = vunpack.c.l.b16 %v171
      %v444 = vunpack.c.l.b16 %v172
      %v445 = vunpack.c.l.b16 %v173
      %v446 = vunpack.c.l.b16 %v174
      %v447 = vunpack.c.l.b16 %v175
      %v448 = vunpack.c.l.b16 %v176
      %v449 = vunpack.c.l.b16 %v177
      %v450 = vunpack.c.l.b16 %v178
      %v451 = vunpack.c.l.b16 %v179
      %v452 = vunpack.c.l.b16 %v180
      %v453 = vunpack.c.l.b16 %v181
      %v454 = vunpack.c.l.b16 %v182
      %v455 = vunpack.c.l.b16 %v183
      %v456 = vunpack.c.l.b16 %v184
      %v457 = vunpack.c.l.b16 %v185
      %v458 = vunpack.c.l.b16 %v186
      %v459 = vunpack.c.l.b16 %v187
      %v460 = vunpack.c.l.b16 %v188
      %v461 = vunpack.c.l.b16 %v189
      %v462 = vunpack.c.l.b16 %v190
      %v463 = vunpack.c.l.b16 %v191
      %v464 = vunpack.c.l.b16 %v192
      %v465 = vunpack.c.l.b16 %v193
      %v466 = vunpack.c.l.b16 %v194
      %v467 = vunpack.c.l.b16 %v195
      %v468 = vunpack.c.l.b16 %v196
      %v469 = vunpack.c.l.b16 %v197
      %v470 = vunpack.c.l.b16 %v198
      %v471 = vunpack.c.l.b16 %v199
      %v472 = vunpack.c.l.b16 %v200
      %v473 = vunpack.c.l.b16 %v201
      %v474 = vunpack.c.l.b16 %v202
      %v475 = vunpack.c.l.b16 %v203
      %v476 = vunpack.c.l.b16 %v204
      %v477 = vunpack.c.l.b16 %v205
      %v478 = vunpack.c.l.b16 %v206
      %v479 = vunpack.c.l.b16 %v207
      %v480 = vunpack.c.l.b16 %v208
      %v481 = vunpack.c.l.b16 %v209
      %v482 = vunpack.c.l.b16 %v210
      %v483 = vunpack.c.l.b16 %v211
      %v484 = vunpack.c.l.b16 %v212
      %v485 = vunpack.c.l.b16 %v213
      %v486 = vunpack.c.l.b16 %v214
      %v487 = vunpack.c.l.b16 %v215
      %v488 = vunpack.c.l.b16 %v216
      %v489 = vunpack.c.l.b16 %v217
      %v490 = vunpack.c.l.b16 %v218
      %v491 = vunpack.c.l.b16 %v219
      %v492 = vunpack.c.l.b16 %v220
      %v493 = vunpack.c.l.b16 %v221
      %v494 = vunpack.c.l.b16 %v222
      %v495 = vunpack.c.l.b16 %v223
      %v496 = vunpack.c.l.b16 %v224
      %v497 = vunpack.c.l.b16 %v225
      %v498 = vunpack.c.l.b16 %v226
      %v499 = vunpack.c.l.b16 %v227
      %v500 = vunpack.c.l.b16 %v228
      %v501 = vunpack.c.l.b16 %v229
      %v502 = vunpack.c.l.b16 %v230
      %v503 = vunpack.c.l.b16 %v231
      %v504 = vunpack.c.l.b16 %v232
      %v505 = vunpack.c.l.b16 %v233
      %v506 = vunpack.c.l.b16 %v234
      %v507 = vunpack.c.l.b16 %v235
      %v508 = vunpack.c.l.b16 %v236
      %v509 = vunpack.c.l.b16 %v237
      %v510 = vunpack.c.l.b16 %v238
      %v511 = vunpack.c.l.b16 %v239
      %v512 = vunpack.c.l.b16 %v240
      %v513 = vunpack.c.l.b16 %v241
      %v514 = vunpack.c.l.b16 %v242
      %v515 = vunpack.c.l.b16 %v243
      %v516 = vunpack.c.l.b16 %v244
      %v517 = vunpack.c.l.b16 %v245
      %v518 = vunpack.c.l.b16 %v246
      %v519 = vunpack.c.l.b16 %v247
      %v520 = vunpack.c.l.b16 %v248
      %v521 = vunpack.c.l.b16 %v249
      %v522 = vunpack.c.l.b16 %v250
      %v523 = vunpack.c.l.b16 %v251
      %v524 = vunpack.c.l.b16 %v252
      %v525 = vunpack.c.l.b16 %v253
      %v526 = vunpack.c.l.b16 %v254
      %v527 = vunpack.c.l.b16 %v255
      %v528 = vunpack.c.l.b16 %v256
      %v529 = vunpack.c.l.b16 %v257
      %v530 = vunpack.c.l.b16 %v258
      %v531 = vunpack.c.l.b16 %v259
      %v532 = vunpack.c.l.b16 %v260
      %v533 = vunpack.c.l.b16 %v261
      %v534 = vunpack.c.l.b16 %v262
      %v535 = vunpack.c.l.b16 %v263
      %v536 = vunpack.c.l.b16 %v264
      %v537 = vunpack.c.l.b16 %v265
      %v538 = vunpack.c.l.b16 %v266
      %v539 = vunpack.c.l.b16 %v267
      %v540 = vunpack.c.l.b16 %v268
      %v541 = vunpack.c.l.b16 %v269
      %v542 = vunpack.c.l.b16 %v270
      %v543 = vunpack.c.l.b16 %v271
      %v544 = vunpack.c.l.b16 %v272
      %v545 = vunpack.c.l.b16 %v273
      %v546 = vunpack.c.l.b16 %v274
      %v547 = vpack.c.b16 %v420, %v419
      %v548 = vpack.c.b16 %v422, %v421
      %v549 = vpack.c.b16 %v424, %v423
      %v550 = vpack.c.b16 %v426, %v425
      %v551 = vpack.c.b16 %v428, %v427
      %v552 = vpack.c.b16 %v430, %v429
      %v553 = vpack.c.b16 %v432, %v431
      %v554 = vpack.c.b16 %v434, %v433
      %v555 = vpack.c.b16 %v436, %v435
      %v556 = vpack.c.b16 %v438, %v437
      %v557 = vpack.c.b16 %v440, %v439
      %v558 = vpack.c.b16 %v442, %v441
      %v559 = vpack.c.b16 %v444, %v443
      %v560 = vpack.c.b16 %v446, %v445
      %v561 = vpack.c.b16 %v448, %v447
      %v562 = vpack.c.b16 %v450, %v449
      %v563 = vpack.c.b16 %v452, %v451
      %v564 = vpack.c.b16 %v454, %v453
      %v565 = vpack.c.b16 %v456, %v455
      %v566 = vpack.c.b16 %v458, %v457
      %v567 = vpack.c.b16 %v460, %v459
      %v568 = vpack.c.b16 %v462, %v461
      %v569 = vpack.c.b16 %v464, %v463
      %v570 = vpack.c.b16 %v466, %v465
      %v571 = vpack.c.b16 %v468, %v467
      %v572 = vpack.c.b16 %v470, %v469
      %v573 = vpack.c.b16 %v472, %v471
      %v574 = vpack.c.b16 %v474, %v473
      %v575 = vpack.c.b16 %v476, %v475
      %v576 = vpack.c.b16 %v478, %v477
      %v577 = vpack.c.b16 %v480, %v479
      %v578 = vpack.c.b16 %v482, %v481
      %v579 = vpack.c.b16 %v484, %v483
      %v580 = vpack.c.b16 %v486, %v485
      %v581 = vpack.c.b16 %v488, %v487
      %v582 = vpack.c.b16 %v490, %v489
      %v583 = vpack.c.b16 %v492, %v491
      %v584 = vpack.c.b16 %v494, %v493
      %v585 = vpack.c.b16 %v496, %v495
      %v586 = vpack.c.b16 %v498, %v497
      %v587 = vpack.c.b16 %v500, %v499
      %v588 = vpack.c.b16 %v502, %v501
      %v589 = vpack.c.b16 %v504, %v503
      %v590 = vpack.c.b16 %v506, %v505
      %v591 = vpack.c.b16 %v508, %v507
      %v592 = vpack.c.b16 %v510, %v509
      %v593 = vpack.c.b16 %v512, %v511
      %v594 = vpack.c.b16 %v514, %v513
      %v595 = vpack.c.b16 %v516, %v515
      %v596 = vpack.c.b16 %v518, %v517
      %v597 = vpack.c.b16 %v520, %v519
      %v598 = vpack.c.b16 %v522, %v521
      %v599 = vpack.c.b16 %v524, %v523
      %v600 = vpack.c.b16 %v526, %v525
      %v601 = vpack.c.b16 %v528, %v527
      %v602 = vpack.c.b16 %v530, %v529
      %v603 = vpack.c.b16 %v532, %v531
      %v604 = vpack.c.b16 %v534, %v533
      %v605 = vpack.c.b16 %v536, %v535
      %v606 = vpack.c.b16 %v538, %v537
      %v607 = vpack.c.b16 %v540, %v539
      %v608 = vpack.c.b16 %v542, %v541
      %v609 = vpack.c.b16 %v544, %v543
      %v610 = vpack.c.b16 %v546, %v545
      %v691 = vunpack.c.l.b16 %v275
      %v692 = vunpack.c.l.b16 %v276
      %v693 = vunpack.c.l.b16 %v277
      %v694 = vunpack.c.l.b16 %v278
      %v695 = vunpack.c.l.b16 %v279
      %v696 = vunpack.c.l.b16 %v280
      %v697 = vunpack.c.l.b16 %v281
      %v698 = vunpack.c.l.b16 %v282
      %v699 = vunpack.c.l.b16 %v283
      %v700 = vunpack.c.l.b16 %v284
      %v701 = vunpack.c.l.b16 %v285
      %v702 = vunpack.c.l.b16 %v286
      %v703 = vunpack.c.l.b16 %v287
      %v704 = vunpack.c.l.b16 %v288
      %v705 = vunpack.c.l.b16 %v289
      %v706 = vunpack.c.l.b16 %v290
      %v707 = vpack.c.b16 %v692, %v691
      %v708 = vpack.c.b16 %v694, %v693
      %v709 = vpack.c.b16 %v696, %v695
      %v710 = vpack.c.b16 %v698, %v697
      %v711 = vpack.c.b16 %v700, %v699
      %v712 = vpack.c.b16 %v702, %v701
      %v713 = vpack.c.b16 %v704, %v703
      %v714 = vpack.c.b16 %v706, %v705
      %723 = vmatpush.bf16.msra.mxu0 %v714
      %724 = vmatpush.bf16.msra.mxu0 %v713
      %725 = vmatpush.bf16.msra.mxu0 %v712
      %726 = vmatpush.bf16.msra.mxu0 %v711
      %727 = vmatpush.bf16.msra.mxu0 %v710
      %728 = vmatpush.bf16.msra.mxu0 %v709
      %729 = vmatpush.bf16.msra.mxu0 %v708
      %730 = vmatpush.bf16.msra.mxu0 %v707
      %731 = vmatmul.bf16.gmra.mxu0 %v547
      %v732 = vpop.f32.mrf.mxu0
      %v733 = vadd.f32 0.0, %v732
      %v734 = vpop.f32.mrf.mxu0
      %v735 = vadd.f32 0.0, %v734
      %736 = vmatmul.bf16.gmra.mxu0 %v548
      %v737 = vpop.f32.mrf.mxu0
      %v738 = vadd.f32 0.0, %v737
      %v739 = vpop.f32.mrf.mxu0
      %v740 = vadd.f32 0.0, %v739
      %741 = vmatmul.bf16.gmra.mxu0 %v549
      %v742 = vpop.f32.mrf.mxu0
      %v743 = vadd.f32 0.0, %v742
      %v744 = vpop.f32.mrf.mxu0
      %v745 = vadd.f32 0.0, %v744
      %746 = vmatmul.bf16.gmra.mxu0 %v550
      %v747 = vpop.f32.mrf.mxu0
      %v748 = vadd.f32 0.0, %v747
      %v749 = vpop.f32.mrf.mxu0
      %v750 = vadd.f32 0.0, %v749
      %751 = vmatmul.bf16.gmra.mxu0 %v551
      %v752 = vpop.f32.mrf.mxu0
      %v753 = vadd.f32 0.0, %v752
      %v754 = vpop.f32.mrf.mxu0
      %v755 = vadd.f32 0.0, %v754
      %756 = vmatmul.bf16.gmra.mxu0 %v552
      %v757 = vpop.f32.mrf.mxu0
      %v758 = vadd.f32 0.0, %v757
      %v759 = vpop.f32.mrf.mxu0
      %v760 = vadd.f32 0.0, %v759
      %761 = vmatmul.bf16.gmra.mxu0 %v553
      %v762 = vpop.f32.mrf.mxu0
      %v763 = vadd.f32 0.0, %v762
      %v764 = vpop.f32.mrf.mxu0
      %v765 = vadd.f32 0.0, %v764
      %766 = vmatmul.bf16.gmra.mxu0 %v554
      %v767 = vpop.f32.mrf.mxu0
      %v768 = vadd.f32 0.0, %v767
      %v769 = vpop.f32.mrf.mxu0
      %v770 = vadd.f32 0.0, %v769
      %771 = vmatmul.bf16.gmra.mxu0 %v555
      %v772 = vpop.f32.mrf.mxu0
      %v773 = vadd.f32 0.0, %v772
      %v774 = vpop.f32.mrf.mxu0
      %v775 = vadd.f32 0.0, %v774
      %776 = vmatmul.bf16.gmra.mxu0 %v556
      %v777 = vpop.f32.mrf.mxu0
      %v778 = vadd.f32 0.0, %v777
      %v779 = vpop.f32.mrf.mxu0
      %v780 = vadd.f32 0.0, %v779
      %781 = vmatmul.bf16.gmra.mxu0 %v557
      %v782 = vpop.f32.mrf.mxu0
      %v783 = vadd.f32 0.0, %v782
      %v784 = vpop.f32.mrf.mxu0
      %v785 = vadd.f32 0.0, %v784
      %786 = vmatmul.bf16.gmra.mxu0 %v558
      %v787 = vpop.f32.mrf.mxu0
      %v788 = vadd.f32 0.0, %v787
      %v789 = vpop.f32.mrf.mxu0
      %v790 = vadd.f32 0.0, %v789
      %791 = vmatmul.bf16.gmra.mxu0 %v559
      %v792 = vpop.f32.mrf.mxu0
      %v793 = vadd.f32 0.0, %v792
      %v794 = vpop.f32.mrf.mxu0
      %v795 = vadd.f32 0.0, %v794
      %796 = vmatmul.bf16.gmra.mxu0 %v560
      %v797 = vpop.f32.mrf.mxu0
      %v798 = vadd.f32 0.0, %v797
      %v799 = vpop.f32.mrf.mxu0
      %v800 = vadd.f32 0.0, %v799
      %801 = vmatmul.bf16.gmra.mxu0 %v561
      %v802 = vpop.f32.mrf.mxu0
      %v803 = vadd.f32 0.0, %v802
      %v804 = vpop.f32.mrf.mxu0
      %v805 = vadd.f32 0.0, %v804
      %806 = vmatmul.bf16.gmra.mxu0 %v562
      %v807 = vpop.f32.mrf.mxu0
      %v808 = vadd.f32 0.0, %v807
      %v809 = vpop.f32.mrf.mxu0
      %v810 = vadd.f32 0.0, %v809
      %811 = vmatmul.bf16.gmra.mxu0 %v563
      %v812 = vpop.f32.mrf.mxu0
      %v813 = vadd.f32 0.0, %v812
      %v814 = vpop.f32.mrf.mxu0
      %v815 = vadd.f32 0.0, %v814
      %816 = vmatmul.bf16.gmra.mxu0 %v564
      %v817 = vpop.f32.mrf.mxu0
      %v818 = vadd.f32 0.0, %v817
      %v819 = vpop.f32.mrf.mxu0
      %v820 = vadd.f32 0.0, %v819
      %821 = vmatmul.bf16.gmra.mxu0 %v565
      %v822 = vpop.f32.mrf.mxu0
      %v823 = vadd.f32 0.0, %v822
      %v824 = vpop.f32.mrf.mxu0
      %v825 = vadd.f32 0.0, %v824
      %826 = vmatmul.bf16.gmra.mxu0 %v566
      %v827 = vpop.f32.mrf.mxu0
      %v828 = vadd.f32 0.0, %v827
      %v829 = vpop.f32.mrf.mxu0
      %v830 = vadd.f32 0.0, %v829
      %831 = vmatmul.bf16.gmra.mxu0 %v567
      %v832 = vpop.f32.mrf.mxu0
      %v833 = vadd.f32 0.0, %v832
      %v834 = vpop.f32.mrf.mxu0
      %v835 = vadd.f32 0.0, %v834
      %836 = vmatmul.bf16.gmra.mxu0 %v568
      %v837 = vpop.f32.mrf.mxu0
      %v838 = vadd.f32 0.0, %v837
      %v839 = vpop.f32.mrf.mxu0
      %v840 = vadd.f32 0.0, %v839
      %841 = vmatmul.bf16.gmra.mxu0 %v569
      %v842 = vpop.f32.mrf.mxu0
      %v843 = vadd.f32 0.0, %v842
      %v844 = vpop.f32.mrf.mxu0
      %v845 = vadd.f32 0.0, %v844
      %846 = vmatmul.bf16.gmra.mxu0 %v570
      %v847 = vpop.f32.mrf.mxu0
      %v848 = vadd.f32 0.0, %v847
      %v849 = vpop.f32.mrf.mxu0
      %v850 = vadd.f32 0.0, %v849
      %851 = vmatmul.bf16.gmra.mxu0 %v571
      %v852 = vpop.f32.mrf.mxu0
      %v853 = vadd.f32 0.0, %v852
      %v854 = vpop.f32.mrf.mxu0
      %v855 = vadd.f32 0.0, %v854
      %856 = vmatmul.bf16.gmra.mxu0 %v572
      %v857 = vpop.f32.mrf.mxu0
      %v858 = vadd.f32 0.0, %v857
      %v859 = vpop.f32.mrf.mxu0
      %v860 = vadd.f32 0.0, %v859
      %861 = vmatmul.bf16.gmra.mxu0 %v573
      %v862 = vpop.f32.mrf.mxu0
      %v863 = vadd.f32 0.0, %v862
      %v864 = vpop.f32.mrf.mxu0
      %v865 = vadd.f32 0.0, %v864
      %866 = vmatmul.bf16.gmra.mxu0 %v574
      %v867 = vpop.f32.mrf.mxu0
      %v868 = vadd.f32 0.0, %v867
      %v869 = vpop.f32.mrf.mxu0
      %v870 = vadd.f32 0.0, %v869
      %871 = vmatmul.bf16.gmra.mxu0 %v575
      %v872 = vpop.f32.mrf.mxu0
      %v873 = vadd.f32 0.0, %v872
      %v874 = vpop.f32.mrf.mxu0
      %v875 = vadd.f32 0.0, %v874
      %876 = vmatmul.bf16.gmra.mxu0 %v576
      %v877 = vpop.f32.mrf.mxu0
      %v878 = vadd.f32 0.0, %v877
      %v879 = vpop.f32.mrf.mxu0
      %v880 = vadd.f32 0.0, %v879
      %881 = vmatmul.bf16.gmra.mxu0 %v577
      %v882 = vpop.f32.mrf.mxu0
      %v883 = vadd.f32 0.0, %v882
      %v884 = vpop.f32.mrf.mxu0
      %v885 = vadd.f32 0.0, %v884
      %886 = vmatmul.bf16.gmra.mxu0 %v578
      %v887 = vpop.f32.mrf.mxu0
      %v888 = vadd.f32 0.0, %v887
      %v889 = vpop.f32.mrf.mxu0
      %v890 = vadd.f32 0.0, %v889
      %891 = vmatmul.bf16.gmra.mxu0 %v579
      %v892 = vpop.f32.mrf.mxu0
      %v893 = vadd.f32 0.0, %v892
      %v894 = vpop.f32.mrf.mxu0
      %v895 = vadd.f32 0.0, %v894
      %896 = vmatmul.bf16.gmra.mxu0 %v580
      %v897 = vpop.f32.mrf.mxu0
      %v898 = vadd.f32 0.0, %v897
      %v899 = vpop.f32.mrf.mxu0
      %v900 = vadd.f32 0.0, %v899
      %901 = vmatmul.bf16.gmra.mxu0 %v581
      %v902 = vpop.f32.mrf.mxu0
      %v903 = vadd.f32 0.0, %v902
      %v904 = vpop.f32.mrf.mxu0
      %v905 = vadd.f32 0.0, %v904
      %906 = vmatmul.bf16.gmra.mxu0 %v582
      %v907 = vpop.f32.mrf.mxu0
      %v908 = vadd.f32 0.0, %v907
      %v909 = vpop.f32.mrf.mxu0
      %v910 = vadd.f32 0.0, %v909
      %911 = vmatmul.bf16.gmra.mxu0 %v583
      %v912 = vpop.f32.mrf.mxu0
      %v913 = vadd.f32 0.0, %v912
      %v914 = vpop.f32.mrf.mxu0
      %v915 = vadd.f32 0.0, %v914
      %916 = vmatmul.bf16.gmra.mxu0 %v584
      %v917 = vpop.f32.mrf.mxu0
      %v918 = vadd.f32 0.0, %v917
      %v919 = vpop.f32.mrf.mxu0
      %v920 = vadd.f32 0.0, %v919
      %921 = vmatmul.bf16.gmra.mxu0 %v585
      %v922 = vpop.f32.mrf.mxu0
      %v923 = vadd.f32 0.0, %v922
      %v924 = vpop.f32.mrf.mxu0
      %v925 = vadd.f32 0.0, %v924
      %926 = vmatmul.bf16.gmra.mxu0 %v586
      %v927 = vpop.f32.mrf.mxu0
      %v928 = vadd.f32 0.0, %v927
      %v929 = vpop.f32.mrf.mxu0
      %v930 = vadd.f32 0.0, %v929
      %931 = vmatmul.bf16.gmra.mxu0 %v587
      %v932 = vpop.f32.mrf.mxu0
      %v933 = vadd.f32 0.0, %v932
      %v934 = vpop.f32.mrf.mxu0
      %v935 = vadd.f32 0.0, %v934
      %936 = vmatmul.bf16.gmra.mxu0 %v588
      %v937 = vpop.f32.mrf.mxu0
      %v938 = vadd.f32 0.0, %v937
      %v939 = vpop.f32.mrf.mxu0
      %v940 = vadd.f32 0.0, %v939
      %941 = vmatmul.bf16.gmra.mxu0 %v589
      %v942 = vpop.f32.mrf.mxu0
      %v943 = vadd.f32 0.0, %v942
      %v944 = vpop.f32.mrf.mxu0
      %v945 = vadd.f32 0.0, %v944
      %946 = vmatmul.bf16.gmra.mxu0 %v590
      %v947 = vpop.f32.mrf.mxu0
      %v948 = vadd.f32 0.0, %v947
      %v949 = vpop.f32.mrf.mxu0
      %v950 = vadd.f32 0.0, %v949
      %951 = vmatmul.bf16.gmra.mxu0 %v591
      %v952 = vpop.f32.mrf.mxu0
      %v953 = vadd.f32 0.0, %v952
      %v954 = vpop.f32.mrf.mxu0
      %v955 = vadd.f32 0.0, %v954
      %956 = vmatmul.bf16.gmra.mxu0 %v592
      %v957 = vpop.f32.mrf.mxu0
      %v958 = vadd.f32 0.0, %v957
      %v959 = vpop.f32.mrf.mxu0
      %v960 = vadd.f32 0.0, %v959
      %961 = vmatmul.bf16.gmra.mxu0 %v593
      %v962 = vpop.f32.mrf.mxu0
      %v963 = vadd.f32 0.0, %v962
      %v964 = vpop.f32.mrf.mxu0
      %v965 = vadd.f32 0.0, %v964
      %966 = vmatmul.bf16.gmra.mxu0 %v594
      %v967 = vpop.f32.mrf.mxu0
      %v968 = vadd.f32 0.0, %v967
      %v969 = vpop.f32.mrf.mxu0
      %v970 = vadd.f32 0.0, %v969
      %971 = vmatmul.bf16.gmra.mxu0 %v595
      %v972 = vpop.f32.mrf.mxu0
      %v973 = vadd.f32 0.0, %v972
      %v974 = vpop.f32.mrf.mxu0
      %v975 = vadd.f32 0.0, %v974
      %976 = vmatmul.bf16.gmra.mxu0 %v596
      %v977 = vpop.f32.mrf.mxu0
      %v978 = vadd.f32 0.0, %v977
      %v979 = vpop.f32.mrf.mxu0
      %v980 = vadd.f32 0.0, %v979
      %981 = vmatmul.bf16.gmra.mxu0 %v597
      %v982 = vpop.f32.mrf.mxu0
      %v983 = vadd.f32 0.0, %v982
      %v984 = vpop.f32.mrf.mxu0
      %v985 = vadd.f32 0.0, %v984
      %986 = vmatmul.bf16.gmra.mxu0 %v598
      %v987 = vpop.f32.mrf.mxu0
      %v988 = vadd.f32 0.0, %v987
      %v989 = vpop.f32.mrf.mxu0
      %v990 = vadd.f32 0.0, %v989
      %991 = vmatmul.bf16.gmra.mxu0 %v599
      %v992 = vpop.f32.mrf.mxu0
      %v993 = vadd.f32 0.0, %v992
      %v994 = vpop.f32.mrf.mxu0
      %v995 = vadd.f32 0.0, %v994
      %996 = vmatmul.bf16.gmra.mxu0 %v600
      %v997 = vpop.f32.mrf.mxu0
      %v998 = vadd.f32 0.0, %v997
      %v999 = vpop.f32.mrf.mxu0
      %v1000 = vadd.f32 0.0, %v999
      %1001 = vmatmul.bf16.gmra.mxu0 %v601
      %v1002 = vpop.f32.mrf.mxu0
      %v1003 = vadd.f32 0.0, %v1002
      %v1004 = vpop.f32.mrf.mxu0
      %v1005 = vadd.f32 0.0, %v1004
      %1006 = vmatmul.bf16.gmra.mxu0 %v602
      %v1007 = vpop.f32.mrf.mxu0
      %v1008 = vadd.f32 0.0, %v1007
      %v1009 = vpop.f32.mrf.mxu0
      %v1010 = vadd.f32 0.0, %v1009
      %1011 = vmatmul.bf16.gmra.mxu0 %v603
      %v1012 = vpop.f32.mrf.mxu0
      %v1013 = vadd.f32 0.0, %v1012
      %v1014 = vpop.f32.mrf.mxu0
      %v1015 = vadd.f32 0.0, %v1014
      %1016 = vmatmul.bf16.gmra.mxu0 %v604
      %v1017 = vpop.f32.mrf.mxu0
      %v1018 = vadd.f32 0.0, %v1017
      %v1019 = vpop.f32.mrf.mxu0
      %v1020 = vadd.f32 0.0, %v1019
      %1021 = vmatmul.bf16.gmra.mxu0 %v605
      %v1022 = vpop.f32.mrf.mxu0
      %v1023 = vadd.f32 0.0, %v1022
      %v1024 = vpop.f32.mrf.mxu0
      %v1025 = vadd.f32 0.0, %v1024
      %1026 = vmatmul.bf16.gmra.mxu0 %v606
      %v1027 = vpop.f32.mrf.mxu0
      %v1028 = vadd.f32 0.0, %v1027
      %v1029 = vpop.f32.mrf.mxu0
      %v1030 = vadd.f32 0.0, %v1029
      %1031 = vmatmul.bf16.gmra.mxu0 %v607
      %v1032 = vpop.f32.mrf.mxu0
      %v1033 = vadd.f32 0.0, %v1032
      %v1034 = vpop.f32.mrf.mxu0
      %v1035 = vadd.f32 0.0, %v1034
      %1036 = vmatmul.bf16.gmra.mxu0 %v608
      %v1037 = vpop.f32.mrf.mxu0
      %v1038 = vadd.f32 0.0, %v1037
      %v1039 = vpop.f32.mrf.mxu0
      %v1040 = vadd.f32 0.0, %v1039
      %1041 = vmatmul.bf16.gmra.mxu0 %v609
      %v1042 = vpop.f32.mrf.mxu0
      %v1043 = vadd.f32 0.0, %v1042
      %v1044 = vpop.f32.mrf.mxu0
      %v1045 = vadd.f32 0.0, %v1044
      %1046 = vmatmul.bf16.gmra.mxu0 %v610
      %v1047 = vpop.f32.mrf.mxu0
      %v1048 = vadd.f32 0.0, %v1047
      %v1049 = vpop.f32.mrf.mxu0
      %v1050 = vadd.f32 0.0, %v1049
      %1051 = vdwg.mxu0
      %vm1052 = vcmp.ge.f32.partialorder %v733, 0.0
      %vm1053 = vcmp.ge.f32.partialorder %v735, 0.0
      %vm1054 = vcmp.ge.f32.partialorder %v738, 0.0
      %vm1055 = vcmp.ge.f32.partialorder %v740, 0.0
      %vm1056 = vcmp.ge.f32.partialorder %v743, 0.0
      %vm1057 = vcmp.ge.f32.partialorder %v745, 0.0
      %vm1058 = vcmp.ge.f32.partialorder %v748, 0.0
      %vm1059 = vcmp.ge.f32.partialorder %v750, 0.0
      %vm1060 = vcmp.ge.f32.partialorder %v753, 0.0
      %vm1061 = vcmp.ge.f32.partialorder %v755, 0.0
      %vm1062 = vcmp.ge.f32.partialorder %v758, 0.0
      %vm1063 = vcmp.ge.f32.partialorder %v760, 0.0
      %vm1064 = vcmp.ge.f32.partialorder %v763, 0.0
      %vm1065 = vcmp.ge.f32.partialorder %v765, 0.0
      %vm1066 = vcmp.ge.f32.partialorder %v768, 0.0
      %vm1067 = vcmp.ge.f32.partialorder %v770, 0.0
      %vm1068 = vcmp.ge.f32.partialorder %v773, 0.0
      %vm1069 = vcmp.ge.f32.partialorder %v775, 0.0
      %vm1070 = vcmp.ge.f32.partialorder %v778, 0.0
      %vm1071 = vcmp.ge.f32.partialorder %v780, 0.0
      %vm1072 = vcmp.ge.f32.partialorder %v783, 0.0
      %vm1073 = vcmp.ge.f32.partialorder %v785, 0.0
      %vm1074 = vcmp.ge.f32.partialorder %v788, 0.0
      %vm1075 = vcmp.ge.f32.partialorder %v790, 0.0
      %vm1076 = vcmp.ge.f32.partialorder %v793, 0.0
      %vm1077 = vcmp.ge.f32.partialorder %v795, 0.0
      %vm1078 = vcmp.ge.f32.partialorder %v798, 0.0
      %vm1079 = vcmp.ge.f32.partialorder %v800, 0.0
      %vm1080 = vcmp.ge.f32.partialorder %v803, 0.0
      %vm1081 = vcmp.ge.f32.partialorder %v805, 0.0
      %vm1082 = vcmp.ge.f32.partialorder %v808, 0.0
      %vm1083 = vcmp.ge.f32.partialorder %v810, 0.0
      %vm1084 = vcmp.ge.f32.partialorder %v813, 0.0
      %vm1085 = vcmp.ge.f32.partialorder %v815, 0.0
      %vm1086 = vcmp.ge.f32.partialorder %v818, 0.0
      %vm1087 = vcmp.ge.f32.partialorder %v820, 0.0
      %vm1088 = vcmp.ge.f32.partialorder %v823, 0.0
      %vm1089 = vcmp.ge.f32.partialorder %v825, 0.0
      %vm1090 = vcmp.ge.f32.partialorder %v828, 0.0
      %vm1091 = vcmp.ge.f32.partialorder %v830, 0.0
      %vm1092 = vcmp.ge.f32.partialorder %v833, 0.0
      %vm1093 = vcmp.ge.f32.partialorder %v835, 0.0
      %vm1094 = vcmp.ge.f32.partialorder %v838, 0.0
      %vm1095 = vcmp.ge.f32.partialorder %v840, 0.0
      %vm1096 = vcmp.ge.f32.partialorder %v843, 0.0
      %vm1097 = vcmp.ge.f32.partialorder %v845, 0.0
      %vm1098 = vcmp.ge.f32.partialorder %v848, 0.0
      %vm1099 = vcmp.ge.f32.partialorder %v850, 0.0
      %vm1100 = vcmp.ge.f32.partialorder %v853, 0.0
      %vm1101 = vcmp.ge.f32.partialorder %v855, 0.0
      %vm1102 = vcmp.ge.f32.partialorder %v858, 0.0
      %vm1103 = vcmp.ge.f32.partialorder %v860, 0.0
      %vm1104 = vcmp.ge.f32.partialorder %v863, 0.0
      %vm1105 = vcmp.ge.f32.partialorder %v865, 0.0
      %vm1106 = vcmp.ge.f32.partialorder %v868, 0.0
      %vm1107 = vcmp.ge.f32.partialorder %v870, 0.0
      %vm1108 = vcmp.ge.f32.partialorder %v873, 0.0
      %vm1109 = vcmp.ge.f32.partialorder %v875, 0.0
      %vm1110 = vcmp.ge.f32.partialorder %v878, 0.0
      %vm1111 = vcmp.ge.f32.partialorder %v880, 0.0
      %vm1112 = vcmp.ge.f32.partialorder %v883, 0.0
      %vm1113 = vcmp.ge.f32.partialorder %v885, 0.0
      %vm1114 = vcmp.ge.f32.partialorder %v888, 0.0
      %vm1115 = vcmp.ge.f32.partialorder %v890, 0.0
      %vm1116 = vcmp.ge.f32.partialorder %v893, 0.0
      %vm1117 = vcmp.ge.f32.partialorder %v895, 0.0
      %vm1118 = vcmp.ge.f32.partialorder %v898, 0.0
      %vm1119 = vcmp.ge.f32.partialorder %v900, 0.0
      %vm1120 = vcmp.ge.f32.partialorder %v903, 0.0
      %vm1121 = vcmp.ge.f32.partialorder %v905, 0.0
      %vm1122 = vcmp.ge.f32.partialorder %v908, 0.0
      %vm1123 = vcmp.ge.f32.partialorder %v910, 0.0
      %vm1124 = vcmp.ge.f32.partialorder %v913, 0.0
      %vm1125 = vcmp.ge.f32.partialorder %v915, 0.0
      %vm1126 = vcmp.ge.f32.partialorder %v918, 0.0
      %vm1127 = vcmp.ge.f32.partialorder %v920, 0.0
      %vm1128 = vcmp.ge.f32.partialorder %v923, 0.0
      %vm1129 = vcmp.ge.f32.partialorder %v925, 0.0
      %vm1130 = vcmp.ge.f32.partialorder %v928, 0.0
      %vm1131 = vcmp.ge.f32.partialorder %v930, 0.0
      %vm1132 = vcmp.ge.f32.partialorder %v933, 0.0
      %vm1133 = vcmp.ge.f32.partialorder %v935, 0.0
      %vm1134 = vcmp.ge.f32.partialorder %v938, 0.0
      %vm1135 = vcmp.ge.f32.partialorder %v940, 0.0
      %vm1136 = vcmp.ge.f32.partialorder %v943, 0.0
      %vm1137 = vcmp.ge.f32.partialorder %v945, 0.0
      %vm1138 = vcmp.ge.f32.partialorder %v948, 0.0
      %vm1139 = vcmp.ge.f32.partialorder %v950, 0.0
      %vm1140 = vcmp.ge.f32.partialorder %v953, 0.0
      %vm1141 = vcmp.ge.f32.partialorder %v955, 0.0
      %vm1142 = vcmp.ge.f32.partialorder %v958, 0.0
      %vm1143 = vcmp.ge.f32.partialorder %v960, 0.0
      %vm1144 = vcmp.ge.f32.partialorder %v963, 0.0
      %vm1145 = vcmp.ge.f32.partialorder %v965, 0.0
      %vm1146 = vcmp.ge.f32.partialorder %v968, 0.0
      %vm1147 = vcmp.ge.f32.partialorder %v970, 0.0
      %vm1148 = vcmp.ge.f32.partialorder %v973, 0.0
      %vm1149 = vcmp.ge.f32.partialorder %v975, 0.0
      %vm1150 = vcmp.ge.f32.partialorder %v978, 0.0
      %vm1151 = vcmp.ge.f32.partialorder %v980, 0.0
      %vm1152 = vcmp.ge.f32.partialorder %v983, 0.0
      %vm1153 = vcmp.ge.f32.partialorder %v985, 0.0
      %vm1154 = vcmp.ge.f32.partialorder %v988, 0.0
      %vm1155 = vcmp.ge.f32.partialorder %v990, 0.0
      %vm1156 = vcmp.ge.f32.partialorder %v993, 0.0
      %vm1157 = vcmp.ge.f32.partialorder %v995, 0.0
      %vm1158 = vcmp.ge.f32.partialorder %v998, 0.0
      %vm1159 = vcmp.ge.f32.partialorder %v1000, 0.0
      %vm1160 = vcmp.ge.f32.partialorder %v1003, 0.0
      %vm1161 = vcmp.ge.f32.partialorder %v1005, 0.0
      %vm1162 = vcmp.ge.f32.partialorder %v1008, 0.0
      %vm1163 = vcmp.ge.f32.partialorder %v1010, 0.0
      %vm1164 = vcmp.ge.f32.partialorder %v1013, 0.0
      %vm1165 = vcmp.ge.f32.partialorder %v1015, 0.0
      %vm1166 = vcmp.ge.f32.partialorder %v1018, 0.0
      %vm1167 = vcmp.ge.f32.partialorder %v1020, 0.0
      %vm1168 = vcmp.ge.f32.partialorder %v1023, 0.0
      %vm1169 = vcmp.ge.f32.partialorder %v1025, 0.0
      %vm1170 = vcmp.ge.f32.partialorder %v1028, 0.0
      %vm1171 = vcmp.ge.f32.partialorder %v1030, 0.0
      %vm1172 = vcmp.ge.f32.partialorder %v1033, 0.0
      %vm1173 = vcmp.ge.f32.partialorder %v1035, 0.0
      %vm1174 = vcmp.ge.f32.partialorder %v1038, 0.0
      %vm1175 = vcmp.ge.f32.partialorder %v1040, 0.0
      %vm1176 = vcmp.ge.f32.partialorder %v1043, 0.0
      %vm1177 = vcmp.ge.f32.partialorder %v1045, 0.0
      %vm1178 = vcmp.ge.f32.partialorder %v1048, 0.0
      %vm1179 = vcmp.ge.f32.partialorder %v1050, 0.0
      %v1180 = vmul.f32 %v733, 0.2
      %v1181 = vmul.f32 %v735, 0.2
      %v1182 = vmul.f32 %v738, 0.2
      %v1183 = vmul.f32 %v740, 0.2
      %v1184 = vmul.f32 %v743, 0.2
      %v1185 = vmul.f32 %v745, 0.2
      %v1186 = vmul.f32 %v748, 0.2
      %v1187 = vmul.f32 %v750, 0.2
      %v1188 = vmul.f32 %v753, 0.2
      %v1189 = vmul.f32 %v755, 0.2
      %v1190 = vmul.f32 %v758, 0.2
      %v1191 = vmul.f32 %v760, 0.2
      %v1192 = vmul.f32 %v763, 0.2
      %v1193 = vmul.f32 %v765, 0.2
      %v1194 = vmul.f32 %v768, 0.2
      %v1195 = vmul.f32 %v770, 0.2
      %v1196 = vmul.f32 %v773, 0.2
      %v1197 = vmul.f32 %v775, 0.2
      %v1198 = vmul.f32 %v778, 0.2
      %v1199 = vmul.f32 %v780, 0.2
      %v1200 = vmul.f32 %v783, 0.2
      %v1201 = vmul.f32 %v785, 0.2
      %v1202 = vmul.f32 %v788, 0.2
      %v1203 = vmul.f32 %v790, 0.2
      %v1204 = vmul.f32 %v793, 0.2
      %v1205 = vmul.f32 %v795, 0.2
      %v1206 = vmul.f32 %v798, 0.2
      %v1207 = vmul.f32 %v800, 0.2
      %v1208 = vmul.f32 %v803, 0.2
      %v1209 = vmul.f32 %v805, 0.2
      %v1210 = vmul.f32 %v808, 0.2
      %v1211 = vmul.f32 %v810, 0.2
      %v1212 = vmul.f32 %v813, 0.2
      %v1213 = vmul.f32 %v815, 0.2
      %v1214 = vmul.f32 %v818, 0.2
      %v1215 = vmul.f32 %v820, 0.2
      %v1216 = vmul.f32 %v823, 0.2
      %v1217 = vmul.f32 %v825, 0.2
      %v1218 = vmul.f32 %v828, 0.2
      %v1219 = vmul.f32 %v830, 0.2
      %v1220 = vmul.f32 %v833, 0.2
      %v1221 = vmul.f32 %v835, 0.2
      %v1222 = vmul.f32 %v838, 0.2
      %v1223 = vmul.f32 %v840, 0.2
      %v1224 = vmul.f32 %v843, 0.2
      %v1225 = vmul.f32 %v845, 0.2
      %v1226 = vmul.f32 %v848, 0.2
      %v1227 = vmul.f32 %v850, 0.2
      %v1228 = vmul.f32 %v853, 0.2
      %v1229 = vmul.f32 %v855, 0.2
      %v1230 = vmul.f32 %v858, 0.2
      %v1231 = vmul.f32 %v860, 0.2
      %v1232 = vmul.f32 %v863, 0.2
      %v1233 = vmul.f32 %v865, 0.2
      %v1234 = vmul.f32 %v868, 0.2
      %v1235 = vmul.f32 %v870, 0.2
      %v1236 = vmul.f32 %v873, 0.2
      %v1237 = vmul.f32 %v875, 0.2
      %v1238 = vmul.f32 %v878, 0.2
      %v1239 = vmul.f32 %v880, 0.2
      %v1240 = vmul.f32 %v883, 0.2
      %v1241 = vmul.f32 %v885, 0.2
      %v1242 = vmul.f32 %v888, 0.2
      %v1243 = vmul.f32 %v890, 0.2
      %v1244 = vmul.f32 %v893, 0.2
      %v1245 = vmul.f32 %v895, 0.2
      %v1246 = vmul.f32 %v898, 0.2
      %v1247 = vmul.f32 %v900, 0.2
      %v1248 = vmul.f32 %v903, 0.2
      %v1249 = vmul.f32 %v905, 0.2
      %v1250 = vmul.f32 %v908, 0.2
      %v1251 = vmul.f32 %v910, 0.2
      %v1252 = vmul.f32 %v913, 0.2
      %v1253 = vmul.f32 %v915, 0.2
      %v1254 = vmul.f32 %v918, 0.2
      %v1255 = vmul.f32 %v920, 0.2
      %v1256 = vmul.f32 %v923, 0.2
      %v1257 = vmul.f32 %v925, 0.2
      %v1258 = vmul.f32 %v928, 0.2
      %v1259 = vmul.f32 %v930, 0.2
      %v1260 = vmul.f32 %v933, 0.2
      %v1261 = vmul.f32 %v935, 0.2
      %v1262 = vmul.f32 %v938, 0.2
      %v1263 = vmul.f32 %v940, 0.2
      %v1264 = vmul.f32 %v943, 0.2
      %v1265 = vmul.f32 %v945, 0.2
      %v1266 = vmul.f32 %v948, 0.2
      %v1267 = vmul.f32 %v950, 0.2
      %v1268 = vmul.f32 %v953, 0.2
      %v1269 = vmul.f32 %v955, 0.2
      %v1270 = vmul.f32 %v958, 0.2
      %v1271 = vmul.f32 %v960, 0.2
      %v1272 = vmul.f32 %v963, 0.2
      %v1273 = vmul.f32 %v965, 0.2
      %v1274 = vmul.f32 %v968, 0.2
      %v1275 = vmul.f32 %v970, 0.2
      %v1276 = vmul.f32 %v973, 0.2
      %v1277 = vmul.f32 %v975, 0.2
      %v1278 = vmul.f32 %v978, 0.2
      %v1279 = vmul.f32 %v980, 0.2
      %v1280 = vmul.f32 %v983, 0.2
      %v1281 = vmul.f32 %v985, 0.2
      %v1282 = vmul.f32 %v988, 0.2
      %v1283 = vmul.f32 %v990, 0.2
      %v1284 = vmul.f32 %v993, 0.2
      %v1285 = vmul.f32 %v995, 0.2
      %v1286 = vmul.f32 %v998, 0.2
      %v1287 = vmul.f32 %v1000, 0.2
      %v1288 = vmul.f32 %v1003, 0.2
      %v1289 = vmul.f32 %v1005, 0.2
      %v1290 = vmul.f32 %v1008, 0.2
      %v1291 = vmul.f32 %v1010, 0.2
      %v1292 = vmul.f32 %v1013, 0.2
      %v1293 = vmul.f32 %v1015, 0.2
      %v1294 = vmul.f32 %v1018, 0.2
      %v1295 = vmul.f32 %v1020, 0.2
      %v1296 = vmul.f32 %v1023, 0.2
      %v1297 = vmul.f32 %v1025, 0.2
      %v1298 = vmul.f32 %v1028, 0.2
      %v1299 = vmul.f32 %v1030, 0.2
      %v1300 = vmul.f32 %v1033, 0.2
      %v1301 = vmul.f32 %v1035, 0.2
      %v1302 = vmul.f32 %v1038, 0.2
      %v1303 = vmul.f32 %v1040, 0.2
      %v1304 = vmul.f32 %v1043, 0.2
      %v1305 = vmul.f32 %v1045, 0.2
      %v1306 = vmul.f32 %v1048, 0.2
      %v1307 = vmul.f32 %v1050, 0.2
      %v1308 = vsel %vm1052, %v733, %v1180
      %v1309 = vsel %vm1053, %v735, %v1181
      %v1310 = vsel %vm1054, %v738, %v1182
      %v1311 = vsel %vm1055, %v740, %v1183
      %v1312 = vsel %vm1056, %v743, %v1184
      %v1313 = vsel %vm1057, %v745, %v1185
      %v1314 = vsel %vm1058, %v748, %v1186
      %v1315 = vsel %vm1059, %v750, %v1187
      %v1316 = vsel %vm1060, %v753, %v1188
      %v1317 = vsel %vm1061, %v755, %v1189
      %v1318 = vsel %vm1062, %v758, %v1190
      %v1319 = vsel %vm1063, %v760, %v1191
      %v1320 = vsel %vm1064, %v763, %v1192
      %v1321 = vsel %vm1065, %v765, %v1193
      %v1322 = vsel %vm1066, %v768, %v1194
      %v1323 = vsel %vm1067, %v770, %v1195
      %v1324 = vsel %vm1068, %v773, %v1196
      %v1325 = vsel %vm1069, %v775, %v1197
      %v1326 = vsel %vm1070, %v778, %v1198
      %v1327 = vsel %vm1071, %v780, %v1199
      %v1328 = vsel %vm1072, %v783, %v1200
      %v1329 = vsel %vm1073, %v785, %v1201
      %v1330 = vsel %vm1074, %v788, %v1202
      %v1331 = vsel %vm1075, %v790, %v1203
      %v1332 = vsel %vm1076, %v793, %v1204
      %v1333 = vsel %vm1077, %v795, %v1205
      %v1334 = vsel %vm1078, %v798, %v1206
      %v1335 = vsel %vm1079, %v800, %v1207
      %v1336 = vsel %vm1080, %v803, %v1208
      %v1337 = vsel %vm1081, %v805, %v1209
      %v1338 = vsel %vm1082, %v808, %v1210
      %v1339 = vsel %vm1083, %v810, %v1211
      %v1340 = vsel %vm1084, %v813, %v1212
      %v1341 = vsel %vm1085, %v815, %v1213
      %v1342 = vsel %vm1086, %v818, %v1214
      %v1343 = vsel %vm1087, %v820, %v1215
      %v1344 = vsel %vm1088, %v823, %v1216
      %v1345 = vsel %vm1089, %v825, %v1217
      %v1346 = vsel %vm1090, %v828, %v1218
      %v1347 = vsel %vm1091, %v830, %v1219
      %v1348 = vsel %vm1092, %v833, %v1220
      %v1349 = vsel %vm1093, %v835, %v1221
      %v1350 = vsel %vm1094, %v838, %v1222
      %v1351 = vsel %vm1095, %v840, %v1223
      %v1352 = vsel %vm1096, %v843, %v1224
      %v1353 = vsel %vm1097, %v845, %v1225
      %v1354 = vsel %vm1098, %v848, %v1226
      %v1355 = vsel %vm1099, %v850, %v1227
      %v1356 = vsel %vm1100, %v853, %v1228
      %v1357 = vsel %vm1101, %v855, %v1229
      %v1358 = vsel %vm1102, %v858, %v1230
      %v1359 = vsel %vm1103, %v860, %v1231
      %v1360 = vsel %vm1104, %v863, %v1232
      %v1361 = vsel %vm1105, %v865, %v1233
      %v1362 = vsel %vm1106, %v868, %v1234
      %v1363 = vsel %vm1107, %v870, %v1235
      %v1364 = vsel %vm1108, %v873, %v1236
      %v1365 = vsel %vm1109, %v875, %v1237
      %v1366 = vsel %vm1110, %v878, %v1238
      %v1367 = vsel %vm1111, %v880, %v1239
      %v1368 = vsel %vm1112, %v883, %v1240
      %v1369 = vsel %vm1113, %v885, %v1241
      %v1370 = vsel %vm1114, %v888, %v1242
      %v1371 = vsel %vm1115, %v890, %v1243
      %v1372 = vsel %vm1116, %v893, %v1244
      %v1373 = vsel %vm1117, %v895, %v1245
      %v1374 = vsel %vm1118, %v898, %v1246
      %v1375 = vsel %vm1119, %v900, %v1247
      %v1376 = vsel %vm1120, %v903, %v1248
      %v1377 = vsel %vm1121, %v905, %v1249
      %v1378 = vsel %vm1122, %v908, %v1250
      %v1379 = vsel %vm1123, %v910, %v1251
      %v1380 = vsel %vm1124, %v913, %v1252
      %v1381 = vsel %vm1125, %v915, %v1253
      %v1382 = vsel %vm1126, %v918, %v1254
      %v1383 = vsel %vm1127, %v920, %v1255
      %v1384 = vsel %vm1128, %v923, %v1256
      %v1385 = vsel %vm1129, %v925, %v1257
      %v1386 = vsel %vm1130, %v928, %v1258
      %v1387 = vsel %vm1131, %v930, %v1259
      %v1388 = vsel %vm1132, %v933, %v1260
      %v1389 = vsel %vm1133, %v935, %v1261
      %v1390 = vsel %vm1134, %v938, %v1262
      %v1391 = vsel %vm1135, %v940, %v1263
      %v1392 = vsel %vm1136, %v943, %v1264
      %v1393 = vsel %vm1137, %v945, %v1265
      %v1394 = vsel %vm1138, %v948, %v1266
      %v1395 = vsel %vm1139, %v950, %v1267
      %v1396 = vsel %vm1140, %v953, %v1268
      %v1397 = vsel %vm1141, %v955, %v1269
      %v1398 = vsel %vm1142, %v958, %v1270
      %v1399 = vsel %vm1143, %v960, %v1271
      %v1400 = vsel %vm1144, %v963, %v1272
      %v1401 = vsel %vm1145, %v965, %v1273
      %v1402 = vsel %vm1146, %v968, %v1274
      %v1403 = vsel %vm1147, %v970, %v1275
      %v1404 = vsel %vm1148, %v973, %v1276
      %v1405 = vsel %vm1149, %v975, %v1277
      %v1406 = vsel %vm1150, %v978, %v1278
      %v1407 = vsel %vm1151, %v980, %v1279
      %v1408 = vsel %vm1152, %v983, %v1280
      %v1409 = vsel %vm1153, %v985, %v1281
      %v1410 = vsel %vm1154, %v988, %v1282
      %v1411 = vsel %vm1155, %v990, %v1283
      %v1412 = vsel %vm1156, %v993, %v1284
      %v1413 = vsel %vm1157, %v995, %v1285
      %v1414 = vsel %vm1158, %v998, %v1286
      %v1415 = vsel %vm1159, %v1000, %v1287
      %v1416 = vsel %vm1160, %v1003, %v1288
      %v1417 = vsel %vm1161, %v1005, %v1289
      %v1418 = vsel %vm1162, %v1008, %v1290
      %v1419 = vsel %vm1163, %v1010, %v1291
      %v1420 = vsel %vm1164, %v1013, %v1292
      %v1421 = vsel %vm1165, %v1015, %v1293
      %v1422 = vsel %vm1166, %v1018, %v1294
      %v1423 = vsel %vm1167, %v1020, %v1295
      %v1424 = vsel %vm1168, %v1023, %v1296
      %v1425 = vsel %vm1169, %v1025, %v1297
      %v1426 = vsel %vm1170, %v1028, %v1298
      %v1427 = vsel %vm1171, %v1030, %v1299
      %v1428 = vsel %vm1172, %v1033, %v1300
      %v1429 = vsel %vm1173, %v1035, %v1301
      %v1430 = vsel %vm1174, %v1038, %v1302
      %v1431 = vsel %vm1175, %v1040, %v1303
      %v1432 = vsel %vm1176, %v1043, %v1304
      %v1433 = vsel %vm1177, %v1045, %v1305
      %v1434 = vsel %vm1178, %v1048, %v1306
      %v1435 = vsel %vm1179, %v1050, %v1307
      %v1436 = vpack.c.bf16 %v1308, %v1308
      %v1437 = vpack.c.bf16 %v1309, %v1309
      %v1438 = vpack.c.bf16 %v1310, %v1310
      %v1439 = vpack.c.bf16 %v1311, %v1311
      %v1440 = vpack.c.bf16 %v1312, %v1312
      %v1441 = vpack.c.bf16 %v1313, %v1313
      %v1442 = vpack.c.bf16 %v1314, %v1314
      %v1443 = vpack.c.bf16 %v1315, %v1315
      %v1444 = vpack.c.bf16 %v1316, %v1316
      %v1445 = vpack.c.bf16 %v1317, %v1317
      %v1446 = vpack.c.bf16 %v1318, %v1318
      %v1447 = vpack.c.bf16 %v1319, %v1319
      %v1448 = vpack.c.bf16 %v1320, %v1320
      %v1449 = vpack.c.bf16 %v1321, %v1321
      %v1450 = vpack.c.bf16 %v1322, %v1322
      %v1451 = vpack.c.bf16 %v1323, %v1323
      %v1452 = vpack.c.bf16 %v1324, %v1324
      %v1453 = vpack.c.bf16 %v1325, %v1325
      %v1454 = vpack.c.bf16 %v1326, %v1326
      %v1455 = vpack.c.bf16 %v1327, %v1327
      %v1456 = vpack.c.bf16 %v1328, %v1328
      %v1457 = vpack.c.bf16 %v1329, %v1329
      %v1458 = vpack.c.bf16 %v1330, %v1330
      %v1459 = vpack.c.bf16 %v1331, %v1331
      %v1460 = vpack.c.bf16 %v1332, %v1332
      %v1461 = vpack.c.bf16 %v1333, %v1333
      %v1462 = vpack.c.bf16 %v1334, %v1334
      %v1463 = vpack.c.bf16 %v1335, %v1335
      %v1464 = vpack.c.bf16 %v1336, %v1336
      %v1465 = vpack.c.bf16 %v1337, %v1337
      %v1466 = vpack.c.bf16 %v1338, %v1338
      %v1467 = vpack.c.bf16 %v1339, %v1339
      %v1468 = vpack.c.bf16 %v1340, %v1340
      %v1469 = vpack.c.bf16 %v1341, %v1341
      %v1470 = vpack.c.bf16 %v1342, %v1342
      %v1471 = vpack.c.bf16 %v1343, %v1343
      %v1472 = vpack.c.bf16 %v1344, %v1344
      %v1473 = vpack.c.bf16 %v1345, %v1345
      %v1474 = vpack.c.bf16 %v1346, %v1346
      %v1475 = vpack.c.bf16 %v1347, %v1347
      %v1476 = vpack.c.bf16 %v1348, %v1348
      %v1477 = vpack.c.bf16 %v1349, %v1349
      %v1478 = vpack.c.bf16 %v1350, %v1350
      %v1479 = vpack.c.bf16 %v1351, %v1351
      %v1480 = vpack.c.bf16 %v1352, %v1352
      %v1481 = vpack.c.bf16 %v1353, %v1353
      %v1482 = vpack.c.bf16 %v1354, %v1354
      %v1483 = vpack.c.bf16 %v1355, %v1355
      %v1484 = vpack.c.bf16 %v1356, %v1356
      %v1485 = vpack.c.bf16 %v1357, %v1357
      %v1486 = vpack.c.bf16 %v1358, %v1358
      %v1487 = vpack.c.bf16 %v1359, %v1359
      %v1488 = vpack.c.bf16 %v1360, %v1360
      %v1489 = vpack.c.bf16 %v1361, %v1361
      %v1490 = vpack.c.bf16 %v1362, %v1362
      %v1491 = vpack.c.bf16 %v1363, %v1363
      %v1492 = vpack.c.bf16 %v1364, %v1364
      %v1493 = vpack.c.bf16 %v1365, %v1365
      %v1494 = vpack.c.bf16 %v1366, %v1366
      %v1495 = vpack.c.bf16 %v1367, %v1367
      %v1496 = vpack.c.bf16 %v1368, %v1368
      %v1497 = vpack.c.bf16 %v1369, %v1369
      %v1498 = vpack.c.bf16 %v1370, %v1370
      %v1499 = vpack.c.bf16 %v1371, %v1371
      %v1500 = vpack.c.bf16 %v1372, %v1372
      %v1501 = vpack.c.bf16 %v1373, %v1373
      %v1502 = vpack.c.bf16 %v1374, %v1374
      %v1503 = vpack.c.bf16 %v1375, %v1375
      %v1504 = vpack.c.bf16 %v1376, %v1376
      %v1505 = vpack.c.bf16 %v1377, %v1377
      %v1506 = vpack.c.bf16 %v1378, %v1378
      %v1507 = vpack.c.bf16 %v1379, %v1379
      %v1508 = vpack.c.bf16 %v1380, %v1380
      %v1509 = vpack.c.bf16 %v1381, %v1381
      %v1510 = vpack.c.bf16 %v1382, %v1382
      %v1511 = vpack.c.bf16 %v1383, %v1383
      %v1512 = vpack.c.bf16 %v1384, %v1384
      %v1513 = vpack.c.bf16 %v1385, %v1385
      %v1514 = vpack.c.bf16 %v1386, %v1386
      %v1515 = vpack.c.bf16 %v1387, %v1387
      %v1516 = vpack.c.bf16 %v1388, %v1388
      %v1517 = vpack.c.bf16 %v1389, %v1389
      %v1518 = vpack.c.bf16 %v1390, %v1390
      %v1519 = vpack.c.bf16 %v1391, %v1391
      %v1520 = vpack.c.bf16 %v1392, %v1392
      %v1521 = vpack.c.bf16 %v1393, %v1393
      %v1522 = vpack.c.bf16 %v1394, %v1394
      %v1523 = vpack.c.bf16 %v1395, %v1395
      %v1524 = vpack.c.bf16 %v1396, %v1396
      %v1525 = vpack.c.bf16 %v1397, %v1397
      %v1526 = vpack.c.bf16 %v1398, %v1398
      %v1527 = vpack.c.bf16 %v1399, %v1399
      %v1528 = vpack.c.bf16 %v1400, %v1400
      %v1529 = vpack.c.bf16 %v1401, %v1401
      %v1530 = vpack.c.bf16 %v1402, %v1402
      %v1531 = vpack.c.bf16 %v1403, %v1403
      %v1532 = vpack.c.bf16 %v1404, %v1404
      %v1533 = vpack.c.bf16 %v1405, %v1405
      %v1534 = vpack.c.bf16 %v1406, %v1406
      %v1535 = vpack.c.bf16 %v1407, %v1407
      %v1536 = vpack.c.bf16 %v1408, %v1408
      %v1537 = vpack.c.bf16 %v1409, %v1409
      %v1538 = vpack.c.bf16 %v1410, %v1410
      %v1539 = vpack.c.bf16 %v1411, %v1411
      %v1540 = vpack.c.bf16 %v1412, %v1412
      %v1541 = vpack.c.bf16 %v1413, %v1413
      %v1542 = vpack.c.bf16 %v1414, %v1414
      %v1543 = vpack.c.bf16 %v1415, %v1415
      %v1544 = vpack.c.bf16 %v1416, %v1416
      %v1545 = vpack.c.bf16 %v1417, %v1417
      %v1546 = vpack.c.bf16 %v1418, %v1418
      %v1547 = vpack.c.bf16 %v1419, %v1419
      %v1548 = vpack.c.bf16 %v1420, %v1420
      %v1549 = vpack.c.bf16 %v1421, %v1421
      %v1550 = vpack.c.bf16 %v1422, %v1422
      %v1551 = vpack.c.bf16 %v1423, %v1423
      %v1552 = vpack.c.bf16 %v1424, %v1424
      %v1553 = vpack.c.bf16 %v1425, %v1425
      %v1554 = vpack.c.bf16 %v1426, %v1426
      %v1555 = vpack.c.bf16 %v1427, %v1427
      %v1556 = vpack.c.bf16 %v1428, %v1428
      %v1557 = vpack.c.bf16 %v1429, %v1429
      %v1558 = vpack.c.bf16 %v1430, %v1430
      %v1559 = vpack.c.bf16 %v1431, %v1431
      %v1560 = vpack.c.bf16 %v1432, %v1432
      %v1561 = vpack.c.bf16 %v1433, %v1433
      %v1562 = vpack.c.bf16 %v1434, %v1434
      %v1563 = vpack.c.bf16 %v1435, %v1435
      %1564 = vst [vmem:[%s145] sm:$0xf] %v1436
      %1565 = vst [vmem:[%s145 + $0x4] sm:$0xf] %v1437
      %1566 = vst [vmem:[%s145 + $0x8] sm:$0xf] %v1438
      %1567 = vst [vmem:[%s145 + $0xc] sm:$0xf] %v1439
      %1568 = vst [vmem:[%s145 + $0x10] sm:$0xf] %v1440
      %1569 = vst [vmem:[%s145 + $0x14] sm:$0xf] %v1441
      %1570 = vst [vmem:[%s145 + $0x18] sm:$0xf] %v1442
      %1571 = vst [vmem:[%s145 + $0x1c] sm:$0xf] %v1443
      %1572 = vst [vmem:[%s145 + $0x20] sm:$0xf] %v1444
      %1573 = vst [vmem:[%s145 + $0x24] sm:$0xf] %v1445
      %1574 = vst [vmem:[%s145 + $0x28] sm:$0xf] %v1446
      %1575 = vst [vmem:[%s145 + $0x2c] sm:$0xf] %v1447
      %1576 = vst [vmem:[%s145 + $0x30] sm:$0xf] %v1448
      %1577 = vst [vmem:[%s145 + $0x34] sm:$0xf] %v1449
      %1578 = vst [vmem:[%s145 + $0x38] sm:$0xf] %v1450
      %1579 = vst [vmem:[%s145 + $0x3c] sm:$0xf] %v1451
      %1580 = vst [vmem:[%s145 + $0x40] sm:$0xf] %v1452
      %1581 = vst [vmem:[%s145 + $0x44] sm:$0xf] %v1453
      %1582 = vst [vmem:[%s145 + $0x48] sm:$0xf] %v1454
      %1583 = vst [vmem:[%s145 + $0x4c] sm:$0xf] %v1455
      %1584 = vst [vmem:[%s145 + $0x50] sm:$0xf] %v1456
      %1585 = vst [vmem:[%s145 + $0x54] sm:$0xf] %v1457
      %1586 = vst [vmem:[%s145 + $0x58] sm:$0xf] %v1458
      %1587 = vst [vmem:[%s145 + $0x5c] sm:$0xf] %v1459
      %1588 = vst [vmem:[%s145 + $0x60] sm:$0xf] %v1460
      %1589 = vst [vmem:[%s145 + $0x64] sm:$0xf] %v1461
      %1590 = vst [vmem:[%s145 + $0x68] sm:$0xf] %v1462
      %1591 = vst [vmem:[%s145 + $0x6c] sm:$0xf] %v1463
      %1592 = vst [vmem:[%s145 + $0x70] sm:$0xf] %v1464
      %1593 = vst [vmem:[%s145 + $0x74] sm:$0xf] %v1465
      %1594 = vst [vmem:[%s145 + $0x78] sm:$0xf] %v1466
      %1595 = vst [vmem:[%s145 + $0x7c] sm:$0xf] %v1467
      %1596 = vst [vmem:[%s145 + $0x80] sm:$0xf] %v1468
      %1597 = vst [vmem:[%s145 + $0x84] sm:$0xf] %v1469
      %1598 = vst [vmem:[%s145 + $0x88] sm:$0xf] %v1470
      %1599 = vst [vmem:[%s145 + $0x8c] sm:$0xf] %v1471
      %1600 = vst [vmem:[%s145 + $0x90] sm:$0xf] %v1472
      %1601 = vst [vmem:[%s145 + $0x94] sm:$0xf] %v1473
      %1602 = vst [vmem:[%s145 + $0x98] sm:$0xf] %v1474
      %1603 = vst [vmem:[%s145 + $0x9c] sm:$0xf] %v1475
      %1604 = vst [vmem:[%s145 + $0xa0] sm:$0xf] %v1476
      %1605 = vst [vmem:[%s145 + $0xa4] sm:$0xf] %v1477
      %1606 = vst [vmem:[%s145 + $0xa8] sm:$0xf] %v1478
      %1607 = vst [vmem:[%s145 + $0xac] sm:$0xf] %v1479
      %1608 = vst [vmem:[%s145 + $0xb0] sm:$0xf] %v1480
      %1609 = vst [vmem:[%s145 + $0xb4] sm:$0xf] %v1481
      %1610 = vst [vmem:[%s145 + $0xb8] sm:$0xf] %v1482
      %1611 = vst [vmem:[%s145 + $0xbc] sm:$0xf] %v1483
      %1612 = vst [vmem:[%s145 + $0xc0] sm:$0xf] %v1484
      %1613 = vst [vmem:[%s145 + $0xc4] sm:$0xf] %v1485
      %1614 = vst [vmem:[%s145 + $0xc8] sm:$0xf] %v1486
      %1615 = vst [vmem:[%s145 + $0xcc] sm:$0xf] %v1487
      %1616 = vst [vmem:[%s145 + $0xd0] sm:$0xf] %v1488
      %1617 = vst [vmem:[%s145 + $0xd4] sm:$0xf] %v1489
      %1618 = vst [vmem:[%s145 + $0xd8] sm:$0xf] %v1490
      %1619 = vst [vmem:[%s145 + $0xdc] sm:$0xf] %v1491
      %1620 = vst [vmem:[%s145 + $0xe0] sm:$0xf] %v1492
      %1621 = vst [vmem:[%s145 + $0xe4] sm:$0xf] %v1493
      %1622 = vst [vmem:[%s145 + $0xe8] sm:$0xf] %v1494
      %1623 = vst [vmem:[%s145 + $0xec] sm:$0xf] %v1495
      %1624 = vst [vmem:[%s145 + $0xf0] sm:$0xf] %v1496
      %1625 = vst [vmem:[%s145 + $0xf4] sm:$0xf] %v1497
      %1626 = vst [vmem:[%s145 + $0xf8] sm:$0xf] %v1498
      %1627 = vst [vmem:[%s145 + $0xfc] sm:$0xf] %v1499
      %1628 = vst [vmem:[%s145 + $0x100] sm:$0xf] %v1500
      %1629 = vst [vmem:[%s145 + $0x104] sm:$0xf] %v1501
      %1630 = vst [vmem:[%s145 + $0x108] sm:$0xf] %v1502
      %1631 = vst [vmem:[%s145 + $0x10c] sm:$0xf] %v1503
      %1632 = vst [vmem:[%s145 + $0x110] sm:$0xf] %v1504
      %1633 = vst [vmem:[%s145 + $0x114] sm:$0xf] %v1505
      %1634 = vst [vmem:[%s145 + $0x118] sm:$0xf] %v1506
      %1635 = vst [vmem:[%s145 + $0x11c] sm:$0xf] %v1507
      %1636 = vst [vmem:[%s145 + $0x120] sm:$0xf] %v1508
      %1637 = vst [vmem:[%s145 + $0x124] sm:$0xf] %v1509
      %1638 = vst [vmem:[%s145 + $0x128] sm:$0xf] %v1510
      %1639 = vst [vmem:[%s145 + $0x12c] sm:$0xf] %v1511
      %1640 = vst [vmem:[%s145 + $0x130] sm:$0xf] %v1512
      %1641 = vst [vmem:[%s145 + $0x134] sm:$0xf] %v1513
      %1642 = vst [vmem:[%s145 + $0x138] sm:$0xf] %v1514
      %1643 = vst [vmem:[%s145 + $0x13c] sm:$0xf] %v1515
      %1644 = vst [vmem:[%s145 + $0x140] sm:$0xf] %v1516
      %1645 = vst [vmem:[%s145 + $0x144] sm:$0xf] %v1517
      %1646 = vst [vmem:[%s145 + $0x148] sm:$0xf] %v1518
      %1647 = vst [vmem:[%s145 + $0x14c] sm:$0xf] %v1519
      %1648 = vst [vmem:[%s145 + $0x150] sm:$0xf] %v1520
      %1649 = vst [vmem:[%s145 + $0x154] sm:$0xf] %v1521
      %1650 = vst [vmem:[%s145 + $0x158] sm:$0xf] %v1522
      %1651 = vst [vmem:[%s145 + $0x15c] sm:$0xf] %v1523
      %1652 = vst [vmem:[%s145 + $0x160] sm:$0xf] %v1524
      %1653 = vst [vmem:[%s145 + $0x164] sm:$0xf] %v1525
      %1654 = vst [vmem:[%s145 + $0x168] sm:$0xf] %v1526
      %1655 = vst [vmem:[%s145 + $0x16c] sm:$0xf] %v1527
      %1656 = vst [vmem:[%s145 + $0x170] sm:$0xf] %v1528
      %1657 = vst [vmem:[%s145 + $0x174] sm:$0xf] %v1529
      %1658 = vst [vmem:[%s145 + $0x178] sm:$0xf] %v1530
      %1659 = vst [vmem:[%s145 + $0x17c] sm:$0xf] %v1531
      %1660 = vst [vmem:[%s145 + $0x180] sm:$0xf] %v1532
      %1661 = vst [vmem:[%s145 + $0x184] sm:$0xf] %v1533
      %1662 = vst [vmem:[%s145 + $0x188] sm:$0xf] %v1534
      %1663 = vst [vmem:[%s145 + $0x18c] sm:$0xf] %v1535
      %1664 = vst [vmem:[%s145 + $0x190] sm:$0xf] %v1536
      %1665 = vst [vmem:[%s145 + $0x194] sm:$0xf] %v1537
      %1666 = vst [vmem:[%s145 + $0x198] sm:$0xf] %v1538
      %1667 = vst [vmem:[%s145 + $0x19c] sm:$0xf] %v1539
      %1668 = vst [vmem:[%s145 + $0x1a0] sm:$0xf] %v1540
      %1669 = vst [vmem:[%s145 + $0x1a4] sm:$0xf] %v1541
      %1670 = vst [vmem:[%s145 + $0x1a8] sm:$0xf] %v1542
      %1671 = vst [vmem:[%s145 + $0x1ac] sm:$0xf] %v1543
      %1672 = vst [vmem:[%s145 + $0x1b0] sm:$0xf] %v1544
      %1673 = vst [vmem:[%s145 + $0x1b4] sm:$0xf] %v1545
      %1674 = vst [vmem:[%s145 + $0x1b8] sm:$0xf] %v1546
      %1675 = vst [vmem:[%s145 + $0x1bc] sm:$0xf] %v1547
      %1676 = vst [vmem:[%s145 + $0x1c0] sm:$0xf] %v1548
      %1677 = vst [vmem:[%s145 + $0x1c4] sm:$0xf] %v1549
      %1678 = vst [vmem:[%s145 + $0x1c8] sm:$0xf] %v1550
      %1679 = vst [vmem:[%s145 + $0x1cc] sm:$0xf] %v1551
      %1680 = vst [vmem:[%s145 + $0x1d0] sm:$0xf] %v1552
      %1681 = vst [vmem:[%s145 + $0x1d4] sm:$0xf] %v1553
      %1682 = vst [vmem:[%s145 + $0x1d8] sm:$0xf] %v1554
      %1683 = vst [vmem:[%s145 + $0x1dc] sm:$0xf] %v1555
      %1684 = vst [vmem:[%s145 + $0x1e0] sm:$0xf] %v1556
      %1685 = vst [vmem:[%s145 + $0x1e4] sm:$0xf] %v1557
      %1686 = vst [vmem:[%s145 + $0x1e8] sm:$0xf] %v1558
      %1687 = vst [vmem:[%s145 + $0x1ec] sm:$0xf] %v1559
      %1688 = vst [vmem:[%s145 + $0x1f0] sm:$0xf] %v1560
      %1689 = vst [vmem:[%s145 + $0x1f4] sm:$0xf] %v1561
      %1690 = vst [vmem:[%s145 + $0x1f8] sm:$0xf] %v1562
      %1691 = vst [vmem:[%s145 + $0x1fc] sm:$0xf] %v1563
      %s1692 = smul.u32 128, %s13
      %p1693 = scmp.lt.s32.totalorder %s1692, 255
      %s1694 = scalar_select %p1693, %s1692, 255
      %s1695 = smul.addr %s1694, 4
      %s1696 = scalar_lea.vmem %s2, %s1695
      // Predicated region
      $region29: #{discriminator_forward.5} parent=27 // pred_check
        %p1697 = pneg %p78
      $region30: #{discriminator_forward.5} parent=27 // pred_check_branch
        %1699 = sbr.rel (%p1697) target = $region32
      $region31: #{discriminator_forward.5} parent=27 // pred_region
        %s1700 = smul.u32 128, %s13
      $region32: #{discriminator_forward.5} parent=27 // pred_fallthru
        _
    $region28: #{discriminator_forward.5} parent=5 // pred_fallthru
      _
    %p1701 = scmp.le.s32.totalorder 2, %s8
    // Predicated region
    $region33: #{discriminator_forward.5} parent=5 // pred_check
      %p1702 = pneg %p1701
    $region34: #{discriminator_forward.5} parent=5 // pred_check_branch
      %1704 = sbr.rel (%p1702) target = $region36
    $region35: #{discriminator_forward.5} parent=5 // pred_region
      %s1705 = ssub.s32 %s8, 2
      // Predicated region
      $region37: #{discriminator_forward.5} parent=35 // pred_check
        %p1706 = pneg %p84
      $region38: #{discriminator_forward.5} parent=35 // pred_check_branch
        %1708 = sbr.rel (%p1706) target = $region40
      $region39: #{discriminator_forward.5} parent=35 // pred_region
        %s1709 = smul.u32 128, %s14
        %p1710 = scmp.lt.s32.totalorder %s1709, 255
        %s1711 = scalar_select %p1710, %s1709, 255
        %s1712 = smul.addr %s1711, 4
        %s1713 = scalar_lea.vmem %s2, %s1712
      $region40: #{discriminator_forward.5} parent=35 // pred_fallthru
        _
    $region36: #{discriminator_forward.5} parent=5 // pred_fallthru
      _
  $region6: #{discriminator_forward.5} parent=0 // loop_footer
    %s12 = sadd.s32 1, %s8
  $region7: #{discriminator_forward.5} parent=0 // loop_footer_branch
    %7 = sbr.rel target = $region3
  $region8: #{discriminator_forward.5} parent=0 // loop_exit
    _

// kernel: discriminator_forward.6
$region0: #{discriminator_forward.6}
  #allocation0 [shape = 'u32[]', space=smem, size = 0x4, offset = 0x4, fixed_abs, tag = 'smem constant byte address 0x4 - core index']
  #allocation1 [shape = 'u32[72,128]{1,0:T(1,128)}', space=vmem, size = 0x9000, scoped, tag = 'internal scratch']
  %s0 = inlined_call_operand.vmem [shape: bf16[512,128], index: 0, kind: input, shape index: {}]
  %s1 = inlined_call_operand.vmem [shape: bf16[128,128], index: 1, kind: input, shape index: {}]
  %s2 = inlined_call_operand.vmem [shape: f32[1,128], index: 2, kind: input, shape index: {}]
  %s3 = inlined_call_operand.vmem [shape: f32[1,128], index: 3, kind: input, shape index: {}]
  %s4 = inlined_call_operand.vmem [shape: bf16[512,128], index: 4, kind: output, shape index: {}]
  %s5 = sld [smem:[#allocation0]]
  $region26: #{discriminator_forward.6} parent=0
    _
  %s7 = ssub.s32 1, %s5
  %s8 = scalar_select 0, %s7, %s5
  // Predicated region
  $region2: #{discriminator_forward.6} parent=0 // pred_check
    _
  $region3: #{discriminator_forward.6} parent=0 // pred_check_branch
    %10 = sbr.rel (0) target = $region5
  $region4: #{discriminator_forward.6} parent=0 // pred_region
    _
  $region5: #{discriminator_forward.6} parent=0 // pred_fallthru
    _
  // Predicated region
  $region6: #{discriminator_forward.6} parent=0 // pred_check
    _
  $region7: #{discriminator_forward.6} parent=0 // pred_check_branch
    %12 = sbr.rel (0) target = $region9
  $region8: #{discriminator_forward.6} parent=0 // pred_region
    _
  $region9: #{discriminator_forward.6} parent=0 // pred_fallthru
    _
  // Predicated region
  $region10: #{discriminator_forward.6} parent=0 // pred_check
    _
  $region11: #{discriminator_forward.6} parent=0 // pred_check_branch
    %14 = sbr.rel (0) target = $region13
  $region12: #{discriminator_forward.6} parent=0 // pred_region
    _
  $region13: #{discriminator_forward.6} parent=0 // pred_fallthru
    _
  // Predicated region
  $region14: #{discriminator_forward.6} parent=0 // pred_check
    _
  $region15: #{discriminator_forward.6} parent=0 // pred_check_branch
    %16 = sbr.rel (0) target = $region17
  $region16: #{discriminator_forward.6} parent=0 // pred_region
    _
  $region17: #{discriminator_forward.6} parent=0 // pred_fallthru
    _
  %v17 = vld [vmem:[%s0] sm:$0xf]
  %v18 = vld [vmem:[%s0 + $0x4] sm:$0xf]
  %v19 = vld [vmem:[%s0 + $0x8] sm:$0xf]
  %v20 = vld [vmem:[%s0 + $0xc] sm:$0xf]
  %v21 = vld [vmem:[%s0 + $0x10] sm:$0xf]
  %v22 = vld [vmem:[%s0 + $0x14] sm:$0xf]
  %v23 = vld [vmem:[%s0 + $0x18] sm:$0xf]
  %v24 = vld [vmem:[%s0 + $0x1c] sm:$0xf]
  %v25 = vld [vmem:[%s0 + $0x20] sm:$0xf]
  %v26 = vld [vmem:[%s0 + $0x24] sm:$0xf]
  %v27 = vld [vmem:[%s0 + $0x28] sm:$0xf]
  %v28 = vld [vmem:[%s0 + $0x2c] sm:$0xf]
  %v29 = vld [vmem:[%s0 + $0x30] sm:$0xf]
  %v30 = vld [vmem:[%s0 + $0x34] sm:$0xf]
  %v31 = vld [vmem:[%s0 + $0x38] sm:$0xf]
  %v32 = vld [vmem:[%s0 + $0x3c] sm:$0xf]
  %v33 = vld [vmem:[%s0 + $0x40] sm:$0xf]
  %v34 = vld [vmem:[%s0 + $0x44] sm:$0xf]
  %v35 = vld [vmem:[%s0 + $0x48] sm:$0xf]
  %v36 = vld [vmem:[%s0 + $0x4c] sm:$0xf]
  %v37 = vld [vmem:[%s0 + $0x50] sm:$0xf]
  %v38 = vld [vmem:[%s0 + $0x54] sm:$0xf]
  %v39 = vld [vmem:[%s0 + $0x58] sm:$0xf]
  %v40 = vld [vmem:[%s0 + $0x5c] sm:$0xf]
  %v41 = vld [vmem:[%s0 + $0x60] sm:$0xf]
  %v42 = vld [vmem:[%s0 + $0x64] sm:$0xf]
  %v43 = vld [vmem:[%s0 + $0x68] sm:$0xf]
  %v44 = vld [vmem:[%s0 + $0x6c] sm:$0xf]
  %v45 = vld [vmem:[%s0 + $0x70] sm:$0xf]
  %v46 = vld [vmem:[%s0 + $0x74] sm:$0xf]
  %v47 = vld [vmem:[%s0 + $0x78] sm:$0xf]
  %v48 = vld [vmem:[%s0 + $0x7c] sm:$0xf]
  %v49 = vld [vmem:[%s0 + $0x80] sm:$0xf]
  %v50 = vld [vmem:[%s0 + $0x84] sm:$0xf]
  %v51 = vld [vmem:[%s0 + $0x88] sm:$0xf]
  %v52 = vld [vmem:[%s0 + $0x8c] sm:$0xf]
  %v53 = vld [vmem:[%s0 + $0x90] sm:$0xf]
  %v54 = vld [vmem:[%s0 + $0x94] sm:$0xf]
  %v55 = vld [vmem:[%s0 + $0x98] sm:$0xf]
  %v56 = vld [vmem:[%s0 + $0x9c] sm:$0xf]
  %v57 = vld [vmem:[%s0 + $0xa0] sm:$0xf]
  %v58 = vld [vmem:[%s0 + $0xa4] sm:$0xf]
  %v59 = vld [vmem:[%s0 + $0xa8] sm:$0xf]
  %v60 = vld [vmem:[%s0 + $0xac] sm:$0xf]
  %v61 = vld [vmem:[%s0 + $0xb0] sm:$0xf]
  %v62 = vld [vmem:[%s0 + $0xb4] sm:$0xf]
  %v63 = vld [vmem:[%s0 + $0xb8] sm:$0xf]
  %v64 = vld [vmem:[%s0 + $0xbc] sm:$0xf]
  %v65 = vld [vmem:[%s0 + $0xc0] sm:$0xf]
  %v66 = vld [vmem:[%s0 + $0xc4] sm:$0xf]
  %v67 = vld [vmem:[%s0 + $0xc8] sm:$0xf]
  %v68 = vld [vmem:[%s0 + $0xcc] sm:$0xf]
  %v69 = vld [vmem:[%s0 + $0xd0] sm:$0xf]
  %v70 = vld [vmem:[%s0 + $0xd4] sm:$0xf]
  %v71 = vld [vmem:[%s0 + $0xd8] sm:$0xf]
  %v72 = vld [vmem:[%s0 + $0xdc] sm:$0xf]
  %v73 = vld [vmem:[%s0 + $0xe0] sm:$0xf]
  %v74 = vld [vmem:[%s0 + $0xe4] sm:$0xf]
  %v75 = vld [vmem:[%s0 + $0xe8] sm:$0xf]
  %v76 = vld [vmem:[%s0 + $0xec] sm:$0xf]
  %v77 = vld [vmem:[%s0 + $0xf0] sm:$0xf]
  %v78 = vld [vmem:[%s0 + $0xf4] sm:$0xf]
  %v79 = vld [vmem:[%s0 + $0xf8] sm:$0xf]
  %v80 = vld [vmem:[%s0 + $0xfc] sm:$0xf]
  %v81 = vld [vmem:[%s1] sm:$0xf]
  %v82 = vld [vmem:[%s1 + $0x4] sm:$0xf]
  %v83 = vld [vmem:[%s1 + $0x8] sm:$0xf]
  %v84 = vld [vmem:[%s1 + $0xc] sm:$0xf]
  %v85 = vld [vmem:[%s1 + $0x10] sm:$0xf]
  %v86 = vld [vmem:[%s1 + $0x14] sm:$0xf]
  %v87 = vld [vmem:[%s1 + $0x18] sm:$0xf]
  %v88 = vld [vmem:[%s1 + $0x1c] sm:$0xf]
  %v89 = vld [vmem:[%s1 + $0x20] sm:$0xf]
  %v90 = vld [vmem:[%s1 + $0x24] sm:$0xf]
  %v91 = vld [vmem:[%s1 + $0x28] sm:$0xf]
  %v92 = vld [vmem:[%s1 + $0x2c] sm:$0xf]
  %v93 = vld [vmem:[%s1 + $0x30] sm:$0xf]
  %v94 = vld [vmem:[%s1 + $0x34] sm:$0xf]
  %v95 = vld [vmem:[%s1 + $0x38] sm:$0xf]
  %v96 = vld [vmem:[%s1 + $0x3c] sm:$0xf]
  %v161 = vunpack.c.l.b16 %v17
  %v162 = vunpack.c.l.b16 %v18
  %v163 = vunpack.c.l.b16 %v19
  %v164 = vunpack.c.l.b16 %v20
  %v165 = vunpack.c.l.b16 %v21
  %v166 = vunpack.c.l.b16 %v22
  %v167 = vunpack.c.l.b16 %v23
  %v168 = vunpack.c.l.b16 %v24
  %v169 = vunpack.c.l.b16 %v25
  %v170 = vunpack.c.l.b16 %v26
  %v171 = vunpack.c.l.b16 %v27
  %v172 = vunpack.c.l.b16 %v28
  %v173 = vunpack.c.l.b16 %v29
  %v174 = vunpack.c.l.b16 %v30
  %v175 = vunpack.c.l.b16 %v31
  %v176 = vunpack.c.l.b16 %v32
  %v177 = vunpack.c.l.b16 %v33
  %v178 = vunpack.c.l.b16 %v34
  %v179 = vunpack.c.l.b16 %v35
  %v180 = vunpack.c.l.b16 %v36
  %v181 = vunpack.c.l.b16 %v37
  %v182 = vunpack.c.l.b16 %v38
  %v183 = vunpack.c.l.b16 %v39
  %v184 = vunpack.c.l.b16 %v40
  %v185 = vunpack.c.l.b16 %v41
  %v186 = vunpack.c.l.b16 %v42
  %v187 = vunpack.c.l.b16 %v43
  %v188 = vunpack.c.l.b16 %v44
  %v189 = vunpack.c.l.b16 %v45
  %v190 = vunpack.c.l.b16 %v46
  %v191 = vunpack.c.l.b16 %v47
  %v192 = vunpack.c.l.b16 %v48
  %v193 = vunpack.c.l.b16 %v49
  %v194 = vunpack.c.l.b16 %v50
  %v195 = vunpack.c.l.b16 %v51
  %v196 = vunpack.c.l.b16 %v52
  %v197 = vunpack.c.l.b16 %v53
  %v198 = vunpack.c.l.b16 %v54
  %v199 = vunpack.c.l.b16 %v55
  %v200 = vunpack.c.l.b16 %v56
  %v201 = vunpack.c.l.b16 %v57
  %v202 = vunpack.c.l.b16 %v58
  %v203 = vunpack.c.l.b16 %v59
  %v204 = vunpack.c.l.b16 %v60
  %v205 = vunpack.c.l.b16 %v61
  %v206 = vunpack.c.l.b16 %v62
  %v207 = vunpack.c.l.b16 %v63
  %v208 = vunpack.c.l.b16 %v64
  %v209 = vunpack.c.l.b16 %v65
  %v210 = vunpack.c.l.b16 %v66
  %v211 = vunpack.c.l.b16 %v67
  %v212 = vunpack.c.l.b16 %v68
  %v213 = vunpack.c.l.b16 %v69
  %v214 = vunpack.c.l.b16 %v70
  %v215 = vunpack.c.l.b16 %v71
  %v216 = vunpack.c.l.b16 %v72
  %v217 = vunpack.c.l.b16 %v73
  %v218 = vunpack.c.l.b16 %v74
  %v219 = vunpack.c.l.b16 %v75
  %v220 = vunpack.c.l.b16 %v76
  %v221 = vunpack.c.l.b16 %v77
  %v222 = vunpack.c.l.b16 %v78
  %v223 = vunpack.c.l.b16 %v79
  %v224 = vunpack.c.l.b16 %v80
  %v225 = vpack.c.b16 %v162, %v161
  %v226 = vpack.c.b16 %v164, %v163
  %v227 = vpack.c.b16 %v166, %v165
  %v228 = vpack.c.b16 %v168, %v167
  %v229 = vpack.c.b16 %v170, %v169
  %v230 = vpack.c.b16 %v172, %v171
  %v231 = vpack.c.b16 %v174, %v173
  %v232 = vpack.c.b16 %v176, %v175
  %v233 = vpack.c.b16 %v178, %v177
  %v234 = vpack.c.b16 %v180, %v179
  %v235 = vpack.c.b16 %v182, %v181
  %v236 = vpack.c.b16 %v184, %v183
  %v237 = vpack.c.b16 %v186, %v185
  %v238 = vpack.c.b16 %v188, %v187
  %v239 = vpack.c.b16 %v190, %v189
  %v240 = vpack.c.b16 %v192, %v191
  %v241 = vpack.c.b16 %v194, %v193
  %v242 = vpack.c.b16 %v196, %v195
  %v243 = vpack.c.b16 %v198, %v197
  %v244 = vpack.c.b16 %v200, %v199
  %v245 = vpack.c.b16 %v202, %v201
  %v246 = vpack.c.b16 %v204, %v203
  %v247 = vpack.c.b16 %v206, %v205
  %v248 = vpack.c.b16 %v208, %v207
  %v249 = vpack.c.b16 %v210, %v209
  %v250 = vpack.c.b16 %v212, %v211
  %v251 = vpack.c.b16 %v214, %v213
  %v252 = vpack.c.b16 %v216, %v215
  %v253 = vpack.c.b16 %v218, %v217
  %v254 = vpack.c.b16 %v220, %v219
  %v255 = vpack.c.b16 %v222, %v221
  %v256 = vpack.c.b16 %v224, %v223
  %v305 = vunpack.c.l.b16 %v81
  %v306 = vunpack.c.l.b16 %v82
  %v307 = vunpack.c.l.b16 %v83
  %v308 = vunpack.c.l.b16 %v84
  %v309 = vunpack.c.l.b16 %v85
  %v310 = vunpack.c.l.b16 %v86
  %v311 = vunpack.c.l.b16 %v87
  %v312 = vunpack.c.l.b16 %v88
  %v313 = vunpack.c.l.b16 %v89
  %v314 = vunpack.c.l.b16 %v90
  %v315 = vunpack.c.l.b16 %v91
  %v316 = vunpack.c.l.b16 %v92
  %v317 = vunpack.c.l.b16 %v93
  %v318 = vunpack.c.l.b16 %v94
  %v319 = vunpack.c.l.b16 %v95
  %v320 = vunpack.c.l.b16 %v96
  %v321 = vpack.c.b16 %v306, %v305
  %v322 = vpack.c.b16 %v308, %v307
  %v323 = vpack.c.b16 %v310, %v309
  %v324 = vpack.c.b16 %v312, %v311
  %v325 = vpack.c.b16 %v314, %v313
  %v326 = vpack.c.b16 %v316, %v315
  %v327 = vpack.c.b16 %v318, %v317
  %v328 = vpack.c.b16 %v320, %v319
  %337 = vmatpush.bf16.msra.mxu0 %v328
  %338 = vmatpush.bf16.msra.mxu0 %v327
  %339 = vmatpush.bf16.msra.mxu0 %v326
  %340 = vmatpush.bf16.msra.mxu0 %v325
  %341 = vmatpush.bf16.msra.mxu0 %v324
  %342 = vmatpush.bf16.msra.mxu0 %v323
  %343 = vmatpush.bf16.msra.mxu0 %v322
  %344 = vmatpush.bf16.msra.mxu0 %v321
  %345 = vmatmul.bf16.gmra.mxu0 %v225
  %v346 = vpop.f32.mrf.mxu0
  %v347 = vadd.f32 0.0, %v346
  %v348 = vpop.f32.mrf.mxu0
  %v349 = vadd.f32 0.0, %v348
  %350 = vmatmul.bf16.gmra.mxu0 %v226
  %v351 = vpop.f32.mrf.mxu0
  %v352 = vadd.f32 0.0, %v351
  %v353 = vpop.f32.mrf.mxu0
  %v354 = vadd.f32 0.0, %v353
  %355 = vmatmul.bf16.gmra.mxu0 %v227
  %v356 = vpop.f32.mrf.mxu0
  %v357 = vadd.f32 0.0, %v356
  %v358 = vpop.f32.mrf.mxu0
  %v359 = vadd.f32 0.0, %v358
  %360 = vmatmul.bf16.gmra.mxu0 %v228
  %v361 = vpop.f32.mrf.mxu0
  %v362 = vadd.f32 0.0, %v361
  %v363 = vpop.f32.mrf.mxu0
  %v364 = vadd.f32 0.0, %v363
  %365 = vmatmul.bf16.gmra.mxu0 %v229
  %v366 = vpop.f32.mrf.mxu0
  %v367 = vadd.f32 0.0, %v366
  %v368 = vpop.f32.mrf.mxu0
  %v369 = vadd.f32 0.0, %v368
  %370 = vmatmul.bf16.gmra.mxu0 %v230
  %v371 = vpop.f32.mrf.mxu0
  %v372 = vadd.f32 0.0, %v371
  %v373 = vpop.f32.mrf.mxu0
  %v374 = vadd.f32 0.0, %v373
  %375 = vmatmul.bf16.gmra.mxu0 %v231
  %v376 = vpop.f32.mrf.mxu0
  %v377 = vadd.f32 0.0, %v376
  %v378 = vpop.f32.mrf.mxu0
  %v379 = vadd.f32 0.0, %v378
  %380 = vmatmul.bf16.gmra.mxu0 %v232
  %v381 = vpop.f32.mrf.mxu0
  %v382 = vadd.f32 0.0, %v381
  %v383 = vpop.f32.mrf.mxu0
  %v384 = vadd.f32 0.0, %v383
  %385 = vmatmul.bf16.gmra.mxu0 %v233
  %v386 = vpop.f32.mrf.mxu0
  %v387 = vadd.f32 0.0, %v386
  %v388 = vpop.f32.mrf.mxu0
  %v389 = vadd.f32 0.0, %v388
  %390 = vmatmul.bf16.gmra.mxu0 %v234
  %v391 = vpop.f32.mrf.mxu0
  %v392 = vadd.f32 0.0, %v391
  %v393 = vpop.f32.mrf.mxu0
  %v394 = vadd.f32 0.0, %v393
  %395 = vmatmul.bf16.gmra.mxu0 %v235
  %v396 = vpop.f32.mrf.mxu0
  %v397 = vadd.f32 0.0, %v396
  %v398 = vpop.f32.mrf.mxu0
  %v399 = vadd.f32 0.0, %v398
  %400 = vmatmul.bf16.gmra.mxu0 %v236
  %v401 = vpop.f32.mrf.mxu0
  %v402 = vadd.f32 0.0, %v401
  %v403 = vpop.f32.mrf.mxu0
  %v404 = vadd.f32 0.0, %v403
  %405 = vmatmul.bf16.gmra.mxu0 %v237
  %v406 = vpop.f32.mrf.mxu0
  %v407 = vadd.f32 0.0, %v406
  %v408 = vpop.f32.mrf.mxu0
  %v409 = vadd.f32 0.0, %v408
  %410 = vmatmul.bf16.gmra.mxu0 %v238
  %v411 = vpop.f32.mrf.mxu0
  %v412 = vadd.f32 0.0, %v411
  %v413 = vpop.f32.mrf.mxu0
  %v414 = vadd.f32 0.0, %v413
  %415 = vmatmul.bf16.gmra.mxu0 %v239
  %v416 = vpop.f32.mrf.mxu0
  %v417 = vadd.f32 0.0, %v416
  %v418 = vpop.f32.mrf.mxu0
  %v419 = vadd.f32 0.0, %v418
  %420 = vmatmul.bf16.gmra.mxu0 %v240
  %v421 = vpop.f32.mrf.mxu0
  %v422 = vadd.f32 0.0, %v421
  %v423 = vpop.f32.mrf.mxu0
  %v424 = vadd.f32 0.0, %v423
  %425 = vmatmul.bf16.gmra.mxu0 %v241
  %v426 = vpop.f32.mrf.mxu0
  %v427 = vadd.f32 0.0, %v426
  %v428 = vpop.f32.mrf.mxu0
  %v429 = vadd.f32 0.0, %v428
  %430 = vmatmul.bf16.gmra.mxu0 %v242
  %v431 = vpop.f32.mrf.mxu0
  %v432 = vadd.f32 0.0, %v431
  %v433 = vpop.f32.mrf.mxu0
  %v434 = vadd.f32 0.0, %v433
  %435 = vmatmul.bf16.gmra.mxu0 %v243
  %v436 = vpop.f32.mrf.mxu0
  %v437 = vadd.f32 0.0, %v436
  %v438 = vpop.f32.mrf.mxu0
  %v439 = vadd.f32 0.0, %v438
  %440 = vmatmul.bf16.gmra.mxu0 %v244
  %v441 = vpop.f32.mrf.mxu0
  %v442 = vadd.f32 0.0, %v441
  %v443 = vpop.f32.mrf.mxu0
  %v444 = vadd.f32 0.0, %v443
  %445 = vmatmul.bf16.gmra.mxu0 %v245
  %v446 = vpop.f32.mrf.mxu0
  %v447 = vadd.f32 0.0, %v446
  %v448 = vpop.f32.mrf.mxu0
  %v449 = vadd.f32 0.0, %v448
  %450 = vmatmul.bf16.gmra.mxu0 %v246
  %v451 = vpop.f32.mrf.mxu0
  %v452 = vadd.f32 0.0, %v451
  %v453 = vpop.f32.mrf.mxu0
  %v454 = vadd.f32 0.0, %v453
  %455 = vmatmul.bf16.gmra.mxu0 %v247
  %v456 = vpop.f32.mrf.mxu0
  %v457 = vadd.f32 0.0, %v456
  %v458 = vpop.f32.mrf.mxu0
  %v459 = vadd.f32 0.0, %v458
  %460 = vmatmul.bf16.gmra.mxu0 %v248
  %v461 = vpop.f32.mrf.mxu0
  %v462 = vadd.f32 0.0, %v461
  %v463 = vpop.f32.mrf.mxu0
  %v464 = vadd.f32 0.0, %v463
  %465 = vmatmul.bf16.gmra.mxu0 %v249
  %v466 = vpop.f32.mrf.mxu0
  %v467 = vadd.f32 0.0, %v466
  %v468 = vpop.f32.mrf.mxu0
  %v469 = vadd.f32 0.0, %v468
  %470 = vmatmul.bf16.gmra.mxu0 %v250
  %v471 = vpop.f32.mrf.mxu0
  %v472 = vadd.f32 0.0, %v471
  %v473 = vpop.f32.mrf.mxu0
  %v474 = vadd.f32 0.0, %v473
  %475 = vmatmul.bf16.gmra.mxu0 %v251
  %v476 = vpop.f32.mrf.mxu0
  %v477 = vadd.f32 0.0, %v476
  %v478 = vpop.f32.mrf.mxu0
  %v479 = vadd.f32 0.0, %v478
  %480 = vmatmul.bf16.gmra.mxu0 %v252
  %v481 = vpop.f32.mrf.mxu0
  %v482 = vadd.f32 0.0, %v481
  %v483 = vpop.f32.mrf.mxu0
  %v484 = vadd.f32 0.0, %v483
  %485 = vmatmul.bf16.gmra.mxu0 %v253
  %v486 = vpop.f32.mrf.mxu0
  %v487 = vadd.f32 0.0, %v486
  %v488 = vpop.f32.mrf.mxu0
  %v489 = vadd.f32 0.0, %v488
  %490 = vmatmul.bf16.gmra.mxu0 %v254
  %v491 = vpop.f32.mrf.mxu0
  %v492 = vadd.f32 0.0, %v491
  %v493 = vpop.f32.mrf.mxu0
  %v494 = vadd.f32 0.0, %v493
  %495 = vmatmul.bf16.gmra.mxu0 %v255
  %v496 = vpop.f32.mrf.mxu0
  %v497 = vadd.f32 0.0, %v496
  %v498 = vpop.f32.mrf.mxu0
  %v499 = vadd.f32 0.0, %v498
  %500 = vmatmul.bf16.gmra.mxu0 %v256
  %v501 = vpop.f32.mrf.mxu0
  %v502 = vadd.f32 0.0, %v501
  %v503 = vpop.f32.mrf.mxu0
  %v504 = vadd.f32 0.0, %v503
  %505 = vdwg.mxu0
  %v506 = vadd.f32 %v347, %v349
  %v507 = vadd.f32 %v506, %v352
  %v508 = vadd.f32 %v507, %v354
  %v509 = vadd.f32 %v508, %v357
  %v510 = vadd.f32 %v509, %v359
  %v511 = vadd.f32 %v510, %v362
  %v512 = vadd.f32 %v511, %v364
  %v513 = vadd.f32 %v512, %v367
  %v514 = vadd.f32 %v513, %v369
  %v515 = vadd.f32 %v514, %v372
  %v516 = vadd.f32 %v515, %v374
  %v517 = vadd.f32 %v516, %v377
  %v518 = vadd.f32 %v517, %v379
  %v519 = vadd.f32 %v518, %v382
  %v520 = vadd.f32 %v519, %v384
  %v521 = vadd.f32 %v520, %v387
  %v522 = vadd.f32 %v521, %v389
  %v523 = vadd.f32 %v522, %v392
  %v524 = vadd.f32 %v523, %v394
  %v525 = vadd.f32 %v524, %v397
  %v526 = vadd.f32 %v525, %v399
  %v527 = vadd.f32 %v526, %v402
  %v528 = vadd.f32 %v527, %v404
  %v529 = vadd.f32 %v528, %v407
  %v530 = vadd.f32 %v529, %v409
  %v531 = vadd.f32 %v530, %v412
  %v532 = vadd.f32 %v531, %v414
  %v533 = vadd.f32 %v532, %v417
  %v534 = vadd.f32 %v533, %v419
  %v535 = vadd.f32 %v534, %v422
  %v536 = vadd.f32 %v535, %v424
  %v537 = vadd.f32 %v536, %v427
  %v538 = vadd.f32 %v537, %v429
  %v539 = vadd.f32 %v538, %v432
  %v540 = vadd.f32 %v539, %v434
  %v541 = vadd.f32 %v540, %v437
  %v542 = vadd.f32 %v541, %v439
  %v543 = vadd.f32 %v542, %v442
  %v544 = vadd.f32 %v543, %v444
  %v545 = vadd.f32 %v544, %v447
  %v546 = vadd.f32 %v545, %v449
  %v547 = vadd.f32 %v546, %v452
  %v548 = vadd.f32 %v547, %v454
  %v549 = vadd.f32 %v548, %v457
  %v550 = vadd.f32 %v549, %v459
  %v551 = vadd.f32 %v550, %v462
  %v552 = vadd.f32 %v551, %v464
  %v553 = vadd.f32 %v552, %v467
  %v554 = vadd.f32 %v553, %v469
  %v555 = vadd.f32 %v554, %v472
  %v556 = vadd.f32 %v555, %v474
  %v557 = vadd.f32 %v556, %v477
  %v558 = vadd.f32 %v557, %v479
  %v559 = vadd.f32 %v558, %v482
  %v560 = vadd.f32 %v559, %v484
  %v561 = vadd.f32 %v560, %v487
  %v562 = vadd.f32 %v561, %v489
  %v563 = vadd.f32 %v562, %v492
  %v564 = vadd.f32 %v563, %v494
  %v565 = vadd.f32 %v564, %v497
  %v566 = vadd.f32 %v565, %v499
  %v567 = vadd.f32 %v566, %v502
  %v568 = vadd.f32 %v567, %v504
  %v569 = vrot.slane %v568, 4
  %v570 = vadd.f32 %v568, %v569
  %v571 = vrot.slane %v570, 2
  %v572 = vadd.f32 %v570, %v571
  %v573 = vrot.slane %v572, 1
  %v574 = vadd.f32 %v572, %v573
  %v575 = vmul.f32 %v574, 0.001953125
  %v576 = vsub.f32 %v347, %v575
  %v577 = vsub.f32 %v349, %v575
  %v578 = vsub.f32 %v352, %v575
  %v579 = vsub.f32 %v354, %v575
  %v580 = vsub.f32 %v357, %v575
  %v581 = vsub.f32 %v359, %v575
  %v582 = vsub.f32 %v362, %v575
  %v583 = vsub.f32 %v364, %v575
  %v584 = vsub.f32 %v367, %v575
  %v585 = vsub.f32 %v369, %v575
  %v586 = vsub.f32 %v372, %v575
  %v587 = vsub.f32 %v374, %v575
  %v588 = vsub.f32 %v377, %v575
  %v589 = vsub.f32 %v379, %v575
  %v590 = vsub.f32 %v382, %v575
  %v591 = vsub.f32 %v384, %v575
  %v592 = vsub.f32 %v387, %v575
  %v593 = vsub.f32 %v389, %v575
  %v594 = vsub.f32 %v392, %v575
  %v595 = vsub.f32 %v394, %v575
  %v596 = vsub.f32 %v397, %v575
  %v597 = vsub.f32 %v399, %v575
  %v598 = vsub.f32 %v402, %v575
  %v599 = vsub.f32 %v404, %v575
  %v600 = vsub.f32 %v407, %v575
  %v601 = vsub.f32 %v409, %v575
  %v602 = vsub.f32 %v412, %v575
  %v603 = vsub.f32 %v414, %v575
  %v604 = vsub.f32 %v417, %v575
  %v605 = vsub.f32 %v419, %v575
  %v606 = vsub.f32 %v422, %v575
  %v607 = vsub.f32 %v424, %v575
  %v608 = vsub.f32 %v427, %v575
  %v609 = vsub.f32 %v429, %v575
  %v610 = vsub.f32 %v432, %v575
  %v611 = vsub.f32 %v434, %v575
  %v612 = vsub.f32 %v437, %v575
  %v613 = vsub.f32 %v439, %v575
  %v614 = vsub.f32 %v442, %v575
  %v615 = vsub.f32 %v444, %v575
  %v616 = vsub.f32 %v447, %v575
  %v617 = vsub.f32 %v449, %v575
  %v618 = vsub.f32 %v452, %v575
  %v619 = vsub.f32 %v454, %v575
  %v620 = vsub.f32 %v457, %v575
  %v621 = vsub.f32 %v459, %v575
  %v622 = vsub.f32 %v462, %v575
  %v623 = vsub.f32 %v464, %v575
  %v624 = vsub.f32 %v467, %v575
  %v625 = vsub.f32 %v469, %v575
  %v626 = vsub.f32 %v472, %v575
  %v627 = vsub.f32 %v474, %v575
  %v628 = vsub.f32 %v477, %v575
  %v629 = vsub.f32 %v479, %v575
  %v630 = vsub.f32 %v482, %v575
  %v631 = vsub.f32 %v484, %v575
  %v632 = vsub.f32 %v487, %v575
  %v633 = vsub.f32 %v489, %v575
  %v634 = vsub.f32 %v492, %v575
  %v635 = vsub.f32 %v494, %v575
  %v636 = vsub.f32 %v497, %v575
  %v637 = vsub.f32 %v499, %v575
  %v638 = vsub.f32 %v502, %v575
  %v639 = vsub.f32 %v504, %v575
  %v640 = vmul.f32 %v576, %v576
  %v641 = vmul.f32 %v577, %v577
  %v642 = vmul.f32 %v578, %v578
  %v643 = vmul.f32 %v579, %v579
  %v644 = vmul.f32 %v580, %v580
  %v645 = vmul.f32 %v581, %v581
  %v646 = vmul.f32 %v582, %v582
  %v647 = vmul.f32 %v583, %v583
  %v648 = vmul.f32 %v584, %v584
  %v649 = vmul.f32 %v585, %v585
  %v650 = vmul.f32 %v586, %v586
  %v651 = vmul.f32 %v587, %v587
  %v652 = vmul.f32 %v588, %v588
  %v653 = vmul.f32 %v589, %v589
  %v654 = vmul.f32 %v590, %v590
  %v655 = vmul.f32 %v591, %v591
  %v656 = vmul.f32 %v592, %v592
  %v657 = vmul.f32 %v593, %v593
  %v658 = vmul.f32 %v594, %v594
  %v659 = vmul.f32 %v595, %v595
  %v660 = vmul.f32 %v596, %v596
  %v661 = vmul.f32 %v597, %v597
  %v662 = vmul.f32 %v598, %v598
  %v663 = vmul.f32 %v599, %v599
  %v664 = vmul.f32 %v600, %v600
  %v665 = vmul.f32 %v601, %v601
  %v666 = vmul.f32 %v602, %v602
  %v667 = vmul.f32 %v603, %v603
  %v668 = vmul.f32 %v604, %v604
  %v669 = vmul.f32 %v605, %v605
  %v670 = vmul.f32 %v606, %v606
  %v671 = vmul.f32 %v607, %v607
  %v672 = vmul.f32 %v608, %v608
  %v673 = vmul.f32 %v609, %v609
  %v674 = vmul.f32 %v610, %v610
  %v675 = vmul.f32 %v611, %v611
  %v676 = vmul.f32 %v612, %v612
  %v677 = vmul.f32 %v613, %v613
  %v678 = vmul.f32 %v614, %v614
  %v679 = vmul.f32 %v615, %v615
  %v680 = vmul.f32 %v616, %v616
  %v681 = vmul.f32 %v617, %v617
  %v682 = vmul.f32 %v618, %v618
  %v683 = vmul.f32 %v619, %v619
  %v684 = vmul.f32 %v620, %v620
  %v685 = vmul.f32 %v621, %v621
  %v686 = vmul.f32 %v622, %v622
  %v687 = vmul.f32 %v623, %v623
  %v688 = vmul.f32 %v624, %v624
  %v689 = vmul.f32 %v625, %v625
  %v690 = vmul.f32 %v626, %v626
  %v691 = vmul.f32 %v627, %v627
  %v692 = vmul.f32 %v628, %v628
  %v693 = vmul.f32 %v629, %v629
  %v694 = vmul.f32 %v630, %v630
  %v695 = vmul.f32 %v631, %v631
  %v696 = vmul.f32 %v632, %v632
  %v697 = vmul.f32 %v633, %v633
  %v698 = vmul.f32 %v634, %v634
  %v699 = vmul.f32 %v635, %v635
  %v700 = vmul.f32 %v636, %v636
  %v701 = vmul.f32 %v637, %v637
  %v702 = vmul.f32 %v638, %v638
  %v703 = vmul.f32 %v639, %v639
  %v704 = vadd.f32 %v640, %v641
  %v705 = vadd.f32 %v704, %v642
  %v706 = vadd.f32 %v705, %v643
  %v707 = vadd.f32 %v706, %v644
  %v708 = vadd.f32 %v707, %v645
  %v709 = vadd.f32 %v708, %v646
  %v710 = vadd.f32 %v709, %v647
  %v711 = vadd.f32 %v710, %v648
  %v712 = vadd.f32 %v711, %v649
  %v713 = vadd.f32 %v712, %v650
  %v714 = vadd.f32 %v713, %v651
  %v715 = vadd.f32 %v714, %v652
  %v716 = vadd.f32 %v715, %v653
  %v717 = vadd.f32 %v716, %v654
  %v718 = vadd.f32 %v717, %v655
  %v719 = vadd.f32 %v718, %v656
  %v720 = vadd.f32 %v719, %v657
  %v721 = vadd.f32 %v720, %v658
  %v722 = vadd.f32 %v721, %v659
  %v723 = vadd.f32 %v722, %v660
  %v724 = vadd.f32 %v723, %v661
  %v725 = vadd.f32 %v724, %v662
  %v726 = vadd.f32 %v725, %v663
  %v727 = vadd.f32 %v726, %v664
  %v728 = vadd.f32 %v727, %v665
  %v729 = vadd.f32 %v728, %v666
  %v730 = vadd.f32 %v729, %v667
  %v731 = vadd.f32 %v730, %v668
  %v732 = vadd.f32 %v731, %v669
  %v733 = vadd.f32 %v732, %v670
  %v734 = vadd.f32 %v733, %v671
  %v735 = vadd.f32 %v734, %v672
  %v736 = vadd.f32 %v735, %v673
  %v737 = vadd.f32 %v736, %v674
  %v738 = vadd.f32 %v737, %v675
  %v739 = vadd.f32 %v738, %v676
  %v740 = vadd.f32 %v739, %v677
  %v741 = vadd.f32 %v740, %v678
  %v742 = vadd.f32 %v741, %v679
  %v743 = vadd.f32 %v742, %v680
  %v744 = vadd.f32 %v743, %v681
  %v745 = vadd.f32 %v744, %v682
  %v746 = vadd.f32 %v745, %v683
  %v747 = vadd.f32 %v746, %v684
  %v748 = vadd.f32 %v747, %v685
  %v749 = vadd.f32 %v748, %v686
  %v750 = vadd.f32 %v749, %v687
  %v751 = vadd.f32 %v750, %v688
  %v752 = vadd.f32 %v751, %v689
  %v753 = vadd.f32 %v752, %v690
  %v754 = vadd.f32 %v753, %v691
  %v755 = vadd.f32 %v754, %v692
  %v756 = vadd.f32 %v755, %v693
  %v757 = vadd.f32 %v756, %v694
  %v758 = vadd.f32 %v757, %v695
  %v759 = vadd.f32 %v758, %v696
  %v760 = vadd.f32 %v759, %v697
  %v761 = vadd.f32 %v760, %v698
  %v762 = vadd.f32 %v761, %v699
  %v763 = vadd.f32 %v762, %v700
  %v764 = vadd.f32 %v763, %v701
  %v765 = vadd.f32 %v764, %v702
  %v766 = vadd.f32 %v765, %v703
  %v767 = vrot.slane %v766, 4
  %v768 = vadd.f32 %v766, %v767
  %v769 = vrot.slane %v768, 2
  %v770 = vadd.f32 %v768, %v769
  %v771 = vrot.slane %v770, 1
  %v772 = vadd.f32 %v770, %v771
  %v773 = vmul.f32 %v772, 0.001953125
  %v774 = vld [vmem:[%s2] sm:$0x1]
  %v775 = vadd.f32 %v773, 1e-05
  %v776 = vrsqrt.pop %v775
  %v777 = vmul.f32 %v776, %v775
  %v778 = vmul.f32 %v777, %v776
  %v779 = vmul.f32 0.5, %v778
  %v780 = vsub.f32 1.5, %v779
  %v781 = vmul.f32 %v776, %v780
  %vm782 = vweird.f32 %v775
  %vm783 = vweird.f32 %v776
  %vm784 = vmor %vm782, %vm783
  %v785 = vsel %vm784, %v776, %v781
  %v786 = vmul.f32 %v774, %v785
  %v787 = vld [vmem:[%s3] sm:$0x1]
  %v788 = vmul.f32 %v575, %v786
  %v789 = vsub.f32 %v787, %v788
  %v791 = vperm.slane %v786, 0
  %v793 = vmul.f32 %v347, %v791
  %v794 = vmul.f32 %v349, %v791
  %v795 = vmul.f32 %v352, %v791
  %v796 = vmul.f32 %v354, %v791
  %v797 = vmul.f32 %v357, %v791
  %v798 = vmul.f32 %v359, %v791
  %v799 = vmul.f32 %v362, %v791
  %v800 = vmul.f32 %v364, %v791
  %v801 = vmul.f32 %v367, %v791
  %v802 = vmul.f32 %v369, %v791
  %v803 = vmul.f32 %v372, %v791
  %v804 = vmul.f32 %v374, %v791
  %v805 = vmul.f32 %v377, %v791
  %v806 = vmul.f32 %v379, %v791
  %v807 = vmul.f32 %v382, %v791
  %v808 = vmul.f32 %v384, %v791
  %v809 = vmul.f32 %v387, %v791
  %v810 = vmul.f32 %v389, %v791
  %v811 = vmul.f32 %v392, %v791
  %v812 = vmul.f32 %v394, %v791
  %v813 = vmul.f32 %v397, %v791
  %v814 = vmul.f32 %v399, %v791
  %v815 = vmul.f32 %v402, %v791
  %v816 = vmul.f32 %v404, %v791
  %v817 = vmul.f32 %v407, %v791
  %v818 = vmul.f32 %v409, %v791
  %v819 = vmul.f32 %v412, %v791
  %v820 = vmul.f32 %v414, %v791
  %v821 = vmul.f32 %v417, %v791
  %v822 = vmul.f32 %v419, %v791
  %v823 = vmul.f32 %v422, %v791
  %v824 = vmul.f32 %v424, %v791
  %v825 = vmul.f32 %v427, %v791
  %v826 = vmul.f32 %v429, %v791
  %v827 = vmul.f32 %v432, %v791
  %v828 = vmul.f32 %v434, %v791
  %v829 = vmul.f32 %v437, %v791
  %v830 = vmul.f32 %v439, %v791
  %v831 = vmul.f32 %v442, %v791
  %v832 = vmul.f32 %v444, %v791
  %v833 = vmul.f32 %v447, %v791
  %v834 = vmul.f32 %v449, %v791
  %v835 = vmul.f32 %v452, %v791
  %v836 = vmul.f32 %v454, %v791
  %v837 = vmul.f32 %v457, %v791
  %v838 = vmul.f32 %v459, %v791
  %v839 = vmul.f32 %v462, %v791
  %v840 = vmul.f32 %v464, %v791
  %v841 = vmul.f32 %v467, %v791
  %v842 = vmul.f32 %v469, %v791
  %v843 = vmul.f32 %v472, %v791
  %v844 = vmul.f32 %v474, %v791
  %v845 = vmul.f32 %v477, %v791
  %v846 = vmul.f32 %v479, %v791
  %v847 = vmul.f32 %v482, %v791
  %v848 = vmul.f32 %v484, %v791
  %v849 = vmul.f32 %v487, %v791
  %v850 = vmul.f32 %v489, %v791
  %v851 = vmul.f32 %v492, %v791
  %v852 = vmul.f32 %v494, %v791
  %v853 = vmul.f32 %v497, %v791
  %v854 = vmul.f32 %v499, %v791
  %v855 = vmul.f32 %v502, %v791
  %v856 = vmul.f32 %v504, %v791
  %v858 = vperm.slane %v789, 0
  %v860 = vadd.f32 %v793, %v858
  %v861 = vadd.f32 %v794, %v858
  %v862 = vadd.f32 %v795, %v858
  %v863 = vadd.f32 %v796, %v858
  %v864 = vadd.f32 %v797, %v858
  %v865 = vadd.f32 %v798, %v858
  %v866 = vadd.f32 %v799, %v858
  %v867 = vadd.f32 %v800, %v858
  %v868 = vadd.f32 %v801, %v858
  %v869 = vadd.f32 %v802, %v858
  %v870 = vadd.f32 %v803, %v858
  %v871 = vadd.f32 %v804, %v858
  %v872 = vadd.f32 %v805, %v858
  %v873 = vadd.f32 %v806, %v858
  %v874 = vadd.f32 %v807, %v858
  %v875 = vadd.f32 %v808, %v858
  %v876 = vadd.f32 %v809, %v858
  %v877 = vadd.f32 %v810, %v858
  %v878 = vadd.f32 %v811, %v858
  %v879 = vadd.f32 %v812, %v858
  %v880 = vadd.f32 %v813, %v858
  %v881 = vadd.f32 %v814, %v858
  %v882 = vadd.f32 %v815, %v858
  %v883 = vadd.f32 %v816, %v858
  %v884 = vadd.f32 %v817, %v858
  %v885 = vadd.f32 %v818, %v858
  %v886 = vadd.f32 %v819, %v858
  %v887 = vadd.f32 %v820, %v858
  %v888 = vadd.f32 %v821, %v858
  %v889 = vadd.f32 %v822, %v858
  %v890 = vadd.f32 %v823, %v858
  %v891 = vadd.f32 %v824, %v858
  %v892 = vadd.f32 %v825, %v858
  %v893 = vadd.f32 %v826, %v858
  %v894 = vadd.f32 %v827, %v858
  %v895 = vadd.f32 %v828, %v858
  %v896 = vadd.f32 %v829, %v858
  %v897 = vadd.f32 %v830, %v858
  %v898 = vadd.f32 %v831, %v858
  %v899 = vadd.f32 %v832, %v858
  %v900 = vadd.f32 %v833, %v858
  %v901 = vadd.f32 %v834, %v858
  %v902 = vadd.f32 %v835, %v858
  %v903 = vadd.f32 %v836, %v858
  %v904 = vadd.f32 %v837, %v858
  %v905 = vadd.f32 %v838, %v858
  %v906 = vadd.f32 %v839, %v858
  %v907 = vadd.f32 %v840, %v858
  %v908 = vadd.f32 %v841, %v858
  %v909 = vadd.f32 %v842, %v858
  %v910 = vadd.f32 %v843, %v858
  %v911 = vadd.f32 %v844, %v858
  %v912 = vadd.f32 %v845, %v858
  %v913 = vadd.f32 %v846, %v858
  %v914 = vadd.f32 %v847, %v858
  %v915 = vadd.f32 %v848, %v858
  %v916 = vadd.f32 %v849, %v858
  %v917 = vadd.f32 %v850, %v858
  %v918 = vadd.f32 %v851, %v858
  %v919 = vadd.f32 %v852, %v858
  %v920 = vadd.f32 %v853, %v858
  %v921 = vadd.f32 %v854, %v858
  %v922 = vadd.f32 %v855, %v858
  %v923 = vadd.f32 %v856, %v858
  %vm924 = vcmp.ge.f32.partialorder %v860, 0.0
  %vm925 = vcmp.ge.f32.partialorder %v861, 0.0
  %vm926 = vcmp.ge.f32.partialorder %v862, 0.0
  %vm927 = vcmp.ge.f32.partialorder %v863, 0.0
  %vm928 = vcmp.ge.f32.partialorder %v864, 0.0
  %vm929 = vcmp.ge.f32.partialorder %v865, 0.0
  %vm930 = vcmp.ge.f32.partialorder %v866, 0.0
  %vm931 = vcmp.ge.f32.partialorder %v867, 0.0
  %vm932 = vcmp.ge.f32.partialorder %v868, 0.0
  %vm933 = vcmp.ge.f32.partialorder %v869, 0.0
  %vm934 = vcmp.ge.f32.partialorder %v870, 0.0
  %vm935 = vcmp.ge.f32.partialorder %v871, 0.0
  %vm936 = vcmp.ge.f32.partialorder %v872, 0.0
  %vm937 = vcmp.ge.f32.partialorder %v873, 0.0
  %vm938 = vcmp.ge.f32.partialorder %v874, 0.0
  %vm939 = vcmp.ge.f32.partialorder %v875, 0.0
  %vm940 = vcmp.ge.f32.partialorder %v876, 0.0
  %vm941 = vcmp.ge.f32.partialorder %v877, 0.0
  %vm942 = vcmp.ge.f32.partialorder %v878, 0.0
  %vm943 = vcmp.ge.f32.partialorder %v879, 0.0
  %vm944 = vcmp.ge.f32.partialorder %v880, 0.0
  %vm945 = vcmp.ge.f32.partialorder %v881, 0.0
  %vm946 = vcmp.ge.f32.partialorder %v882, 0.0
  %vm947 = vcmp.ge.f32.partialorder %v883, 0.0
  %vm948 = vcmp.ge.f32.partialorder %v884, 0.0
  %vm949 = vcmp.ge.f32.partialorder %v885, 0.0
  %vm950 = vcmp.ge.f32.partialorder %v886, 0.0
  %vm951 = vcmp.ge.f32.partialorder %v887, 0.0
  %vm952 = vcmp.ge.f32.partialorder %v888, 0.0
  %vm953 = vcmp.ge.f32.partialorder %v889, 0.0
  %vm954 = vcmp.ge.f32.partialorder %v890, 0.0
  %vm955 = vcmp.ge.f32.partialorder %v891, 0.0
  %vm956 = vcmp.ge.f32.partialorder %v892, 0.0
  %vm957 = vcmp.ge.f32.partialorder %v893, 0.0
  %vm958 = vcmp.ge.f32.partialorder %v894, 0.0
  %vm959 = vcmp.ge.f32.partialorder %v895, 0.0
  %vm960 = vcmp.ge.f32.partialorder %v896, 0.0
  %vm961 = vcmp.ge.f32.partialorder %v897, 0.0
  %vm962 = vcmp.ge.f32.partialorder %v898, 0.0
  %vm963 = vcmp.ge.f32.partialorder %v899, 0.0
  %vm964 = vcmp.ge.f32.partialorder %v900, 0.0
  %vm965 = vcmp.ge.f32.partialorder %v901, 0.0
  %vm966 = vcmp.ge.f32.partialorder %v902, 0.0
  %vm967 = vcmp.ge.f32.partialorder %v903, 0.0
  %vm968 = vcmp.ge.f32.partialorder %v904, 0.0
  %vm969 = vcmp.ge.f32.partialorder %v905, 0.0
  %vm970 = vcmp.ge.f32.partialorder %v906, 0.0
  %vm971 = vcmp.ge.f32.partialorder %v907, 0.0
  %vm972 = vcmp.ge.f32.partialorder %v908, 0.0
  %vm973 = vcmp.ge.f32.partialorder %v909, 0.0
  %vm974 = vcmp.ge.f32.partialorder %v910, 0.0
  %vm975 = vcmp.ge.f32.partialorder %v911, 0.0
  %vm976 = vcmp.ge.f32.partialorder %v912, 0.0
  %vm977 = vcmp.ge.f32.partialorder %v913, 0.0
  %vm978 = vcmp.ge.f32.partialorder %v914, 0.0
  %vm979 = vcmp.ge.f32.partialorder %v915, 0.0
  %vm980 = vcmp.ge.f32.partialorder %v916, 0.0
  %vm981 = vcmp.ge.f32.partialorder %v917, 0.0
  %vm982 = vcmp.ge.f32.partialorder %v918, 0.0
  %vm983 = vcmp.ge.f32.partialorder %v919, 0.0
  %vm984 = vcmp.ge.f32.partialorder %v920, 0.0
  %vm985 = vcmp.ge.f32.partialorder %v921, 0.0
  %vm986 = vcmp.ge.f32.partialorder %v922, 0.0
  %vm987 = vcmp.ge.f32.partialorder %v923, 0.0
  %v988 = vmul.f32 %v860, 0.2
  %v989 = vmul.f32 %v861, 0.2
  %v990 = vmul.f32 %v862, 0.2
  %v991 = vmul.f32 %v863, 0.2
  %v992 = vmul.f32 %v864, 0.2
  %v993 = vmul.f32 %v865, 0.2
  %v994 = vmul.f32 %v866, 0.2
  %v995 = vmul.f32 %v867, 0.2
  %v996 = vmul.f32 %v868, 0.2
  %v997 = vmul.f32 %v869, 0.2
  %v998 = vmul.f32 %v870, 0.2
  %v999 = vmul.f32 %v871, 0.2
  %v1000 = vmul.f32 %v872, 0.2
  %v1001 = vmul.f32 %v873, 0.2
  %v1002 = vmul.f32 %v874, 0.2
  %v1003 = vmul.f32 %v875, 0.2
  %v1004 = vmul.f32 %v876, 0.2
  %v1005 = vmul.f32 %v877, 0.2
  %v1006 = vmul.f32 %v878, 0.2
  %v1007 = vmul.f32 %v879, 0.2
  %v1008 = vmul.f32 %v880, 0.2
  %v1009 = vmul.f32 %v881, 0.2
  %v1010 = vmul.f32 %v882, 0.2
  %v1011 = vmul.f32 %v883, 0.2
  %v1012 = vmul.f32 %v884, 0.2
  %v1013 = vmul.f32 %v885, 0.2
  %v1014 = vmul.f32 %v886, 0.2
  %v1015 = vmul.f32 %v887, 0.2
  %v1016 = vmul.f32 %v888, 0.2
  %v1017 = vmul.f32 %v889, 0.2
  %v1018 = vmul.f32 %v890, 0.2
  %v1019 = vmul.f32 %v891, 0.2
  %v1020 = vmul.f32 %v892, 0.2
  %v1021 = vmul.f32 %v893, 0.2
  %v1022 = vmul.f32 %v894, 0.2
  %v1023 = vmul.f32 %v895, 0.2
  %v1024 = vmul.f32 %v896, 0.2
  %v1025 = vmul.f32 %v897, 0.2
  %v1026 = vmul.f32 %v898, 0.2
  %v1027 = vmul.f32 %v899, 0.2
  %v1028 = vmul.f32 %v900, 0.2
  %v1029 = vmul.f32 %v901, 0.2
  %v1030 = vmul.f32 %v902, 0.2
  %v1031 = vmul.f32 %v903, 0.2
  %v1032 = vmul.f32 %v904, 0.2
  %v1033 = vmul.f32 %v905, 0.2
  %v1034 = vmul.f32 %v906, 0.2
  %v1035 = vmul.f32 %v907, 0.2
  %v1036 = vmul.f32 %v908, 0.2
  %v1037 = vmul.f32 %v909, 0.2
  %v1038 = vmul.f32 %v910, 0.2
  %v1039 = vmul.f32 %v911, 0.2
  %v1040 = vmul.f32 %v912, 0.2
  %v1041 = vmul.f32 %v913, 0.2
  %v1042 = vmul.f32 %v914, 0.2
  %v1043 = vmul.f32 %v915, 0.2
  %v1044 = vmul.f32 %v916, 0.2
  %v1045 = vmul.f32 %v917, 0.2
  %v1046 = vmul.f32 %v918, 0.2
  %v1047 = vmul.f32 %v919, 0.2
  %v1048 = vmul.f32 %v920, 0.2
  %v1049 = vmul.f32 %v921, 0.2
  %v1050 = vmul.f32 %v922, 0.2
  %v1051 = vmul.f32 %v923, 0.2
  %v1052 = vsel %vm924, %v860, %v988
  %v1053 = vsel %vm925, %v861, %v989
  %v1054 = vsel %vm926, %v862, %v990
  %v1055 = vsel %vm927, %v863, %v991
  %v1056 = vsel %vm928, %v864, %v992
  %v1057 = vsel %vm929, %v865, %v993
  %v1058 = vsel %vm930, %v866, %v994
  %v1059 = vsel %vm931, %v867, %v995
  %v1060 = vsel %vm932, %v868, %v996
  %v1061 = vsel %vm933, %v869, %v997
  %v1062 = vsel %vm934, %v870, %v998
  %v1063 = vsel %vm935, %v871, %v999
  %v1064 = vsel %vm936, %v872, %v1000
  %v1065 = vsel %vm937, %v873, %v1001
  %v1066 = vsel %vm938, %v874, %v1002
  %v1067 = vsel %vm939, %v875, %v1003
  %v1068 = vsel %vm940, %v876, %v1004
  %v1069 = vsel %vm941, %v877, %v1005
  %v1070 = vsel %vm942, %v878, %v1006
  %v1071 = vsel %vm943, %v879, %v1007
  %v1072 = vsel %vm944, %v880, %v1008
  %v1073 = vsel %vm945, %v881, %v1009
  %v1074 = vsel %vm946, %v882, %v1010
  %v1075 = vsel %vm947, %v883, %v1011
  %v1076 = vsel %vm948, %v884, %v1012
  %v1077 = vsel %vm949, %v885, %v1013
  %v1078 = vsel %vm950, %v886, %v1014
  %v1079 = vsel %vm951, %v887, %v1015
  %v1080 = vsel %vm952, %v888, %v1016
  %v1081 = vsel %vm953, %v889, %v1017
  %v1082 = vsel %vm954, %v890, %v1018
  %v1083 = vsel %vm955, %v891, %v1019
  %v1084 = vsel %vm956, %v892, %v1020
  %v1085 = vsel %vm957, %v893, %v1021
  %v1086 = vsel %vm958, %v894, %v1022
  %v1087 = vsel %vm959, %v895, %v1023
  %v1088 = vsel %vm960, %v896, %v1024
  %v1089 = vsel %vm961, %v897, %v1025
  %v1090 = vsel %vm962, %v898, %v1026
  %v1091 = vsel %vm963, %v899, %v1027
  %v1092 = vsel %vm964, %v900, %v1028
  %v1093 = vsel %vm965, %v901, %v1029
  %v1094 = vsel %vm966, %v902, %v1030
  %v1095 = vsel %vm967, %v903, %v1031
  %v1096 = vsel %vm968, %v904, %v1032
  %v1097 = vsel %vm969, %v905, %v1033
  %v1098 = vsel %vm970, %v906, %v1034
  %v1099 = vsel %vm971, %v907, %v1035
  %v1100 = vsel %vm972, %v908, %v1036
  %v1101 = vsel %vm973, %v909, %v1037
  %v1102 = vsel %vm974, %v910, %v1038
  %v1103 = vsel %vm975, %v911, %v1039
  %v1104 = vsel %vm976, %v912, %v1040
  %v1105 = vsel %vm977, %v913, %v1041
  %v1106 = vsel %vm978, %v914, %v1042
  %v1107 = vsel %vm979, %v915, %v1043
  %v1108 = vsel %vm980, %v916, %v1044
  %v1109 = vsel %vm981, %v917, %v1045
  %v1110 = vsel %vm982, %v918, %v1046
  %v1111 = vsel %vm983, %v919, %v1047
  %v1112 = vsel %vm984, %v920, %v1048
  %v1113 = vsel %vm985, %v921, %v1049
  %v1114 = vsel %vm986, %v922, %v1050
  %v1115 = vsel %vm987, %v923, %v1051
  %v1116 = vpack.c.bf16 %v1052, %v1052
  %v1117 = vpack.c.bf16 %v1053, %v1053
  %v1118 = vpack.c.bf16 %v1054, %v1054
  %v1119 = vpack.c.bf16 %v1055, %v1055
  %v1120 = vpack.c.bf16 %v1056, %v1056
  %v1121 = vpack.c.bf16 %v1057, %v1057
  %v1122 = vpack.c.bf16 %v1058, %v1058
  %v1123 = vpack.c.bf16 %v1059, %v1059
  %v1124 = vpack.c.bf16 %v1060, %v1060
  %v1125 = vpack.c.bf16 %v1061, %v1061
  %v1126 = vpack.c.bf16 %v1062, %v1062
  %v1127 = vpack.c.bf16 %v1063, %v1063
  %v1128 = vpack.c.bf16 %v1064, %v1064
  %v1129 = vpack.c.bf16 %v1065, %v1065
  %v1130 = vpack.c.bf16 %v1066, %v1066
  %v1131 = vpack.c.bf16 %v1067, %v1067
  %v1132 = vpack.c.bf16 %v1068, %v1068
  %v1133 = vpack.c.bf16 %v1069, %v1069
  %v1134 = vpack.c.bf16 %v1070, %v1070
  %v1135 = vpack.c.bf16 %v1071, %v1071
  %v1136 = vpack.c.bf16 %v1072, %v1072
  %v1137 = vpack.c.bf16 %v1073, %v1073
  %v1138 = vpack.c.bf16 %v1074, %v1074
  %v1139 = vpack.c.bf16 %v1075, %v1075
  %v1140 = vpack.c.bf16 %v1076, %v1076
  %v1141 = vpack.c.bf16 %v1077, %v1077
  %v1142 = vpack.c.bf16 %v1078, %v1078
  %v1143 = vpack.c.bf16 %v1079, %v1079
  %v1144 = vpack.c.bf16 %v1080, %v1080
  %v1145 = vpack.c.bf16 %v1081, %v1081
  %v1146 = vpack.c.bf16 %v1082, %v1082
  %v1147 = vpack.c.bf16 %v1083, %v1083
  %v1148 = vpack.c.bf16 %v1084, %v1084
  %v1149 = vpack.c.bf16 %v1085, %v1085
  %v1150 = vpack.c.bf16 %v1086, %v1086
  %v1151 = vpack.c.bf16 %v1087, %v1087
  %v1152 = vpack.c.bf16 %v1088, %v1088
  %v1153 = vpack.c.bf16 %v1089, %v1089
  %v1154 = vpack.c.bf16 %v1090, %v1090
  %v1155 = vpack.c.bf16 %v1091, %v1091
  %v1156 = vpack.c.bf16 %v1092, %v1092
  %v1157 = vpack.c.bf16 %v1093, %v1093
  %v1158 = vpack.c.bf16 %v1094, %v1094
  %v1159 = vpack.c.bf16 %v1095, %v1095
  %v1160 = vpack.c.bf16 %v1096, %v1096
  %v1161 = vpack.c.bf16 %v1097, %v1097
  %v1162 = vpack.c.bf16 %v1098, %v1098
  %v1163 = vpack.c.bf16 %v1099, %v1099
  %v1164 = vpack.c.bf16 %v1100, %v1100
  %v1165 = vpack.c.bf16 %v1101, %v1101
  %v1166 = vpack.c.bf16 %v1102, %v1102
  %v1167 = vpack.c.bf16 %v1103, %v1103
  %v1168 = vpack.c.bf16 %v1104, %v1104
  %v1169 = vpack.c.bf16 %v1105, %v1105
  %v1170 = vpack.c.bf16 %v1106, %v1106
  %v1171 = vpack.c.bf16 %v1107, %v1107
  %v1172 = vpack.c.bf16 %v1108, %v1108
  %v1173 = vpack.c.bf16 %v1109, %v1109
  %v1174 = vpack.c.bf16 %v1110, %v1110
  %v1175 = vpack.c.bf16 %v1111, %v1111
  %v1176 = vpack.c.bf16 %v1112, %v1112
  %v1177 = vpack.c.bf16 %v1113, %v1113
  %v1178 = vpack.c.bf16 %v1114, %v1114
  %v1179 = vpack.c.bf16 %v1115, %v1115
  %1180 = vst [vmem:[%s4] sm:$0xf] %v1116
  %1181 = vst [vmem:[%s4 + $0x4] sm:$0xf] %v1117
  %1182 = vst [vmem:[%s4 + $0x8] sm:$0xf] %v1118
  %1183 = vst [vmem:[%s4 + $0xc] sm:$0xf] %v1119
  %1184 = vst [vmem:[%s4 + $0x10] sm:$0xf] %v1120
  %1185 = vst [vmem:[%s4 + $0x14] sm:$0xf] %v1121
  %1186 = vst [vmem:[%s4 + $0x18] sm:$0xf] %v1122
  %1187 = vst [vmem:[%s4 + $0x1c] sm:$0xf] %v1123
  %1188 = vst [vmem:[%s4 + $0x20] sm:$0xf] %v1124
  %1189 = vst [vmem:[%s4 + $0x24] sm:$0xf] %v1125
  %1190 = vst [vmem:[%s4 + $0x28] sm:$0xf] %v1126
  %1191 = vst [vmem:[%s4 + $0x2c] sm:$0xf] %v1127
  %1192 = vst [vmem:[%s4 + $0x30] sm:$0xf] %v1128
  %1193 = vst [vmem:[%s4 + $0x34] sm:$0xf] %v1129
  %1194 = vst [vmem:[%s4 + $0x38] sm:$0xf] %v1130
  %1195 = vst [vmem:[%s4 + $0x3c] sm:$0xf] %v1131
  %1196 = vst [vmem:[%s4 + $0x40] sm:$0xf] %v1132
  %1197 = vst [vmem:[%s4 + $0x44] sm:$0xf] %v1133
  %1198 = vst [vmem:[%s4 + $0x48] sm:$0xf] %v1134
  %1199 = vst [vmem:[%s4 + $0x4c] sm:$0xf] %v1135
  %1200 = vst [vmem:[%s4 + $0x50] sm:$0xf] %v1136
  %1201 = vst [vmem:[%s4 + $0x54] sm:$0xf] %v1137
  %1202 = vst [vmem:[%s4 + $0x58] sm:$0xf] %v1138
  %1203 = vst [vmem:[%s4 + $0x5c] sm:$0xf] %v1139
  %1204 = vst [vmem:[%s4 + $0x60] sm:$0xf] %v1140
  %1205 = vst [vmem:[%s4 + $0x64] sm:$0xf] %v1141
  %1206 = vst [vmem:[%s4 + $0x68] sm:$0xf] %v1142
  %1207 = vst [vmem:[%s4 + $0x6c] sm:$0xf] %v1143
  %1208 = vst [vmem:[%s4 + $0x70] sm:$0xf] %v1144
  %1209 = vst [vmem:[%s4 + $0x74] sm:$0xf] %v1145
  %1210 = vst [vmem:[%s4 + $0x78] sm:$0xf] %v1146
  %1211 = vst [vmem:[%s4 + $0x7c] sm:$0xf] %v1147
  %1212 = vst [vmem:[%s4 + $0x80] sm:$0xf] %v1148
  %1213 = vst [vmem:[%s4 + $0x84] sm:$0xf] %v1149
  %1214 = vst [vmem:[%s4 + $0x88] sm:$0xf] %v1150
  %1215 = vst [vmem:[%s4 + $0x8c] sm:$0xf] %v1151
  %1216 = vst [vmem:[%s4 + $0x90] sm:$0xf] %v1152
  %1217 = vst [vmem:[%s4 + $0x94] sm:$0xf] %v1153
  %1218 = vst [vmem:[%s4 + $0x98] sm:$0xf] %v1154
  %1219 = vst [vmem:[%s4 + $0x9c] sm:$0xf] %v1155
  %1220 = vst [vmem:[%s4 + $0xa0] sm:$0xf] %v1156
  %1221 = vst [vmem:[%s4 + $0xa4] sm:$0xf] %v1157
  %1222 = vst [vmem:[%s4 + $0xa8] sm:$0xf] %v1158
  %1223 = vst [vmem:[%s4 + $0xac] sm:$0xf] %v1159
  %1224 = vst [vmem:[%s4 + $0xb0] sm:$0xf] %v1160
  %1225 = vst [vmem:[%s4 + $0xb4] sm:$0xf] %v1161
  %1226 = vst [vmem:[%s4 + $0xb8] sm:$0xf] %v1162
  %1227 = vst [vmem:[%s4 + $0xbc] sm:$0xf] %v1163
  %1228 = vst [vmem:[%s4 + $0xc0] sm:$0xf] %v1164
  %1229 = vst [vmem:[%s4 + $0xc4] sm:$0xf] %v1165
  %1230 = vst [vmem:[%s4 + $0xc8] sm:$0xf] %v1166
  %1231 = vst [vmem:[%s4 + $0xcc] sm:$0xf] %v1167
  %1232 = vst [vmem:[%s4 + $0xd0] sm:$0xf] %v1168
  %1233 = vst [vmem:[%s4 + $0xd4] sm:$0xf] %v1169
  %1234 = vst [vmem:[%s4 + $0xd8] sm:$0xf] %v1170
  %1235 = vst [vmem:[%s4 + $0xdc] sm:$0xf] %v1171
  %1236 = vst [vmem:[%s4 + $0xe0] sm:$0xf] %v1172
  %1237 = vst [vmem:[%s4 + $0xe4] sm:$0xf] %v1173
  %1238 = vst [vmem:[%s4 + $0xe8] sm:$0xf] %v1174
  %1239 = vst [vmem:[%s4 + $0xec] sm:$0xf] %v1175
  %1240 = vst [vmem:[%s4 + $0xf0] sm:$0xf] %v1176
  %1241 = vst [vmem:[%s4 + $0xf4] sm:$0xf] %v1177
  %1242 = vst [vmem:[%s4 + $0xf8] sm:$0xf] %v1178
  %1243 = vst [vmem:[%s4 + $0xfc] sm:$0xf] %v1179
  // Predicated region
  $region18: #{discriminator_forward.6} parent=0 // pred_check
    _
  $region19: #{discriminator_forward.6} parent=0 // pred_check_branch
    %1245 = sbr.rel (0) target = $region21
  $region20: #{discriminator_forward.6} parent=0 // pred_region
    _
  $region21: #{discriminator_forward.6} parent=0 // pred_fallthru
    _
  // Predicated region
  $region22: #{discriminator_forward.6} parent=0 // pred_check
    _
  $region23: #{discriminator_forward.6} parent=0 // pred_check_branch
    %1247 = sbr.rel (0) target = $region25
  $region24: #{discriminator_forward.6} parent=0 // pred_region
    _
  $region25: #{discriminator_forward.6} parent=0 // pred_fallthru
    _

// kernel: discriminator_forward.7
$region0: #{discriminator_forward.7}
  #allocation0 [shape = 'u32[]', space=smem, size = 0x4, offset = 0x4, fixed_abs, tag = 'smem constant byte address 0x4 - core index']
  #allocation1 [shape = 'u32[72,128]{1,0:T(1,128)}', space=vmem, size = 0x9000, scoped, tag = 'internal scratch']
  %s0 = inlined_call_operand.vmem [shape: bf16[128,256], index: 0, kind: input, shape index: {}]
  %s1 = inlined_call_operand.vmem [shape: bf16[256,128], index: 1, kind: input, shape index: {}]
  %s2 = inlined_call_operand.vmem [shape: f32[1,128], index: 2, kind: input, shape index: {}]
  %s3 = inlined_call_operand.vmem [shape: f32[1,128], index: 3, kind: input, shape index: {}]
  %s4 = inlined_call_operand.vmem [shape: bf16[128,128], index: 4, kind: output, shape index: {}]
  %s5 = sld [smem:[#allocation0]]
  $region26: #{discriminator_forward.7} parent=0
    _
  %s7 = ssub.s32 1, %s5
  %s8 = scalar_select 0, %s7, %s5
  // Predicated region
  $region2: #{discriminator_forward.7} parent=0 // pred_check
    _
  $region3: #{discriminator_forward.7} parent=0 // pred_check_branch
    %10 = sbr.rel (0) target = $region5
  $region4: #{discriminator_forward.7} parent=0 // pred_region
    _
  $region5: #{discriminator_forward.7} parent=0 // pred_fallthru
    _
  // Predicated region
  $region6: #{discriminator_forward.7} parent=0 // pred_check
    _
  $region7: #{discriminator_forward.7} parent=0 // pred_check_branch
    %12 = sbr.rel (0) target = $region9
  $region8: #{discriminator_forward.7} parent=0 // pred_region
    _
  $region9: #{discriminator_forward.7} parent=0 // pred_fallthru
    _
  // Predicated region
  $region10: #{discriminator_forward.7} parent=0 // pred_check
    _
  $region11: #{discriminator_forward.7} parent=0 // pred_check_branch
    %14 = sbr.rel (0) target = $region13
  $region12: #{discriminator_forward.7} parent=0 // pred_region
    _
  $region13: #{discriminator_forward.7} parent=0 // pred_fallthru
    _
  // Predicated region
  $region14: #{discriminator_forward.7} parent=0 // pred_check
    _
  $region15: #{discriminator_forward.7} parent=0 // pred_check_branch
    %16 = sbr.rel (0) target = $region17
  $region16: #{discriminator_forward.7} parent=0 // pred_region
    _
  $region17: #{discriminator_forward.7} parent=0 // pred_fallthru
    _
  %v17 = vld [vmem:[%s0] sm:$0xff]
  %v18 = vld [vmem:[%s0 + $0x8] sm:$0xff]
  %v19 = vld [vmem:[%s0 + $0x10] sm:$0xff]
  %v20 = vld [vmem:[%s0 + $0x18] sm:$0xff]
  %v21 = vld [vmem:[%s0 + $0x20] sm:$0xff]
  %v22 = vld [vmem:[%s0 + $0x28] sm:$0xff]
  %v23 = vld [vmem:[%s0 + $0x30] sm:$0xff]
  %v24 = vld [vmem:[%s0 + $0x38] sm:$0xff]
  %v25 = vld [vmem:[%s0 + $0x40] sm:$0xff]
  %v26 = vld [vmem:[%s0 + $0x48] sm:$0xff]
  %v27 = vld [vmem:[%s0 + $0x50] sm:$0xff]
  %v28 = vld [vmem:[%s0 + $0x58] sm:$0xff]
  %v29 = vld [vmem:[%s0 + $0x60] sm:$0xff]
  %v30 = vld [vmem:[%s0 + $0x68] sm:$0xff]
  %v31 = vld [vmem:[%s0 + $0x70] sm:$0xff]
  %v32 = vld [vmem:[%s0 + $0x78] sm:$0xff]
  %v33 = vld [vmem:[%s1] sm:$0xf]
  %v34 = vld [vmem:[%s1 + $0x4] sm:$0xf]
  %v35 = vld [vmem:[%s1 + $0x8] sm:$0xf]
  %v36 = vld [vmem:[%s1 + $0xc] sm:$0xf]
  %v37 = vld [vmem:[%s1 + $0x10] sm:$0xf]
  %v38 = vld [vmem:[%s1 + $0x14] sm:$0xf]
  %v39 = vld [vmem:[%s1 + $0x18] sm:$0xf]
  %v40 = vld [vmem:[%s1 + $0x1c] sm:$0xf]
  %v41 = vld [vmem:[%s1 + $0x20] sm:$0xf]
  %v42 = vld [vmem:[%s1 + $0x24] sm:$0xf]
  %v43 = vld [vmem:[%s1 + $0x28] sm:$0xf]
  %v44 = vld [vmem:[%s1 + $0x2c] sm:$0xf]
  %v45 = vld [vmem:[%s1 + $0x30] sm:$0xf]
  %v46 = vld [vmem:[%s1 + $0x34] sm:$0xf]
  %v47 = vld [vmem:[%s1 + $0x38] sm:$0xf]
  %v48 = vld [vmem:[%s1 + $0x3c] sm:$0xf]
  %v49 = vld [vmem:[%s1 + $0x40] sm:$0xf]
  %v50 = vld [vmem:[%s1 + $0x44] sm:$0xf]
  %v51 = vld [vmem:[%s1 + $0x48] sm:$0xf]
  %v52 = vld [vmem:[%s1 + $0x4c] sm:$0xf]
  %v53 = vld [vmem:[%s1 + $0x50] sm:$0xf]
  %v54 = vld [vmem:[%s1 + $0x54] sm:$0xf]
  %v55 = vld [vmem:[%s1 + $0x58] sm:$0xf]
  %v56 = vld [vmem:[%s1 + $0x5c] sm:$0xf]
  %v57 = vld [vmem:[%s1 + $0x60] sm:$0xf]
  %v58 = vld [vmem:[%s1 + $0x64] sm:$0xf]
  %v59 = vld [vmem:[%s1 + $0x68] sm:$0xf]
  %v60 = vld [vmem:[%s1 + $0x6c] sm:$0xf]
  %v61 = vld [vmem:[%s1 + $0x70] sm:$0xf]
  %v62 = vld [vmem:[%s1 + $0x74] sm:$0xf]
  %v63 = vld [vmem:[%s1 + $0x78] sm:$0xf]
  %v64 = vld [vmem:[%s1 + $0x7c] sm:$0xf]
  %v81 = vunpack.c.l.b16 %v17
  %v82 = vunpack.c.h.b16 %v17
  %v83 = vunpack.c.l.b16 %v18
  %v84 = vunpack.c.h.b16 %v18
  %v85 = vunpack.c.l.b16 %v19
  %v86 = vunpack.c.h.b16 %v19
  %v87 = vunpack.c.l.b16 %v20
  %v88 = vunpack.c.h.b16 %v20
  %v89 = vunpack.c.l.b16 %v21
  %v90 = vunpack.c.h.b16 %v21
  %v91 = vunpack.c.l.b16 %v22
  %v92 = vunpack.c.h.b16 %v22
  %v93 = vunpack.c.l.b16 %v23
  %v94 = vunpack.c.h.b16 %v23
  %v95 = vunpack.c.l.b16 %v24
  %v96 = vunpack.c.h.b16 %v24
  %v97 = vunpack.c.l.b16 %v25
  %v98 = vunpack.c.h.b16 %v25
  %v99 = vunpack.c.l.b16 %v26
  %v100 = vunpack.c.h.b16 %v26
  %v101 = vunpack.c.l.b16 %v27
  %v102 = vunpack.c.h.b16 %v27
  %v103 = vunpack.c.l.b16 %v28
  %v104 = vunpack.c.h.b16 %v28
  %v105 = vunpack.c.l.b16 %v29
  %v106 = vunpack.c.h.b16 %v29
  %v107 = vunpack.c.l.b16 %v30
  %v108 = vunpack.c.h.b16 %v30
  %v109 = vunpack.c.l.b16 %v31
  %v110 = vunpack.c.h.b16 %v31
  %v111 = vunpack.c.l.b16 %v32
  %v112 = vunpack.c.h.b16 %v32
  %v113 = vpack.c.b16 %v83, %v81
  %v114 = vpack.c.b16 %v84, %v82
  %v115 = vpack.c.b16 %v87, %v85
  %v116 = vpack.c.b16 %v88, %v86
  %v117 = vpack.c.b16 %v91, %v89
  %v118 = vpack.c.b16 %v92, %v90
  %v119 = vpack.c.b16 %v95, %v93
  %v120 = vpack.c.b16 %v96, %v94
  %v121 = vpack.c.b16 %v99, %v97
  %v122 = vpack.c.b16 %v100, %v98
  %v123 = vpack.c.b16 %v103, %v101
  %v124 = vpack.c.b16 %v104, %v102
  %v125 = vpack.c.b16 %v107, %v105
  %v126 = vpack.c.b16 %v108, %v106
  %v127 = vpack.c.b16 %v111, %v109
  %v128 = vpack.c.b16 %v112, %v110
  %v177 = vunpack.c.l.b16 %v33
  %v178 = vunpack.c.l.b16 %v34
  %v179 = vunpack.c.l.b16 %v35
  %v180 = vunpack.c.l.b16 %v36
  %v181 = vunpack.c.l.b16 %v37
  %v182 = vunpack.c.l.b16 %v38
  %v183 = vunpack.c.l.b16 %v39
  %v184 = vunpack.c.l.b16 %v40
  %v185 = vunpack.c.l.b16 %v41
  %v186 = vunpack.c.l.b16 %v42
  %v187 = vunpack.c.l.b16 %v43
  %v188 = vunpack.c.l.b16 %v44
  %v189 = vunpack.c.l.b16 %v45
  %v190 = vunpack.c.l.b16 %v46
  %v191 = vunpack.c.l.b16 %v47
  %v192 = vunpack.c.l.b16 %v48
  %v193 = vunpack.c.l.b16 %v49
  %v194 = vunpack.c.l.b16 %v50
  %v195 = vunpack.c.l.b16 %v51
  %v196 = vunpack.c.l.b16 %v52
  %v197 = vunpack.c.l.b16 %v53
  %v198 = vunpack.c.l.b16 %v54
  %v199 = vunpack.c.l.b16 %v55
  %v200 = vunpack.c.l.b16 %v56
  %v201 = vunpack.c.l.b16 %v57
  %v202 = vunpack.c.l.b16 %v58
  %v203 = vunpack.c.l.b16 %v59
  %v204 = vunpack.c.l.b16 %v60
  %v205 = vunpack.c.l.b16 %v61
  %v206 = vunpack.c.l.b16 %v62
  %v207 = vunpack.c.l.b16 %v63
  %v208 = vunpack.c.l.b16 %v64
  %v209 = vpack.c.b16 %v178, %v177
  %v210 = vpack.c.b16 %v180, %v179
  %v211 = vpack.c.b16 %v182, %v181
  %v212 = vpack.c.b16 %v184, %v183
  %v213 = vpack.c.b16 %v186, %v185
  %v214 = vpack.c.b16 %v188, %v187
  %v215 = vpack.c.b16 %v190, %v189
  %v216 = vpack.c.b16 %v192, %v191
  %v217 = vpack.c.b16 %v194, %v193
  %v218 = vpack.c.b16 %v196, %v195
  %v219 = vpack.c.b16 %v198, %v197
  %v220 = vpack.c.b16 %v200, %v199
  %v221 = vpack.c.b16 %v202, %v201
  %v222 = vpack.c.b16 %v204, %v203
  %v223 = vpack.c.b16 %v206, %v205
  %v224 = vpack.c.b16 %v208, %v207
  %241 = vmatpush.bf16.msra.mxu0 %v216
  %242 = vmatpush.bf16.msra.mxu0 %v215
  %243 = vmatpush.bf16.msra.mxu0 %v214
  %244 = vmatpush.bf16.msra.mxu0 %v213
  %245 = vmatpush.bf16.msra.mxu0 %v212
  %246 = vmatpush.bf16.msra.mxu0 %v211
  %247 = vmatpush.bf16.msra.mxu0 %v210
  %248 = vmatpush.bf16.msra.mxu0 %v209
  %249 = vmatmul.bf16.gmra.mxu0 %v113
  %v250 = vpop.f32.mrf.mxu0
  %v251 = vadd.f32 0.0, %v250
  %v252 = vpop.f32.mrf.mxu0
  %v253 = vadd.f32 0.0, %v252
  %254 = vmatmul.bf16.gmra.mxu0 %v115
  %v255 = vpop.f32.mrf.mxu0
  %v256 = vadd.f32 0.0, %v255
  %v257 = vpop.f32.mrf.mxu0
  %v258 = vadd.f32 0.0, %v257
  %259 = vmatmul.bf16.gmra.mxu0 %v117
  %v260 = vpop.f32.mrf.mxu0
  %v261 = vadd.f32 0.0, %v260
  %v262 = vpop.f32.mrf.mxu0
  %v263 = vadd.f32 0.0, %v262
  %264 = vmatmul.bf16.gmra.mxu0 %v119
  %v265 = vpop.f32.mrf.mxu0
  %v266 = vadd.f32 0.0, %v265
  %v267 = vpop.f32.mrf.mxu0
  %v268 = vadd.f32 0.0, %v267
  %269 = vmatmul.bf16.gmra.mxu0 %v121
  %v270 = vpop.f32.mrf.mxu0
  %v271 = vadd.f32 0.0, %v270
  %v272 = vpop.f32.mrf.mxu0
  %v273 = vadd.f32 0.0, %v272
  %274 = vmatmul.bf16.gmra.mxu0 %v123
  %v275 = vpop.f32.mrf.mxu0
  %v276 = vadd.f32 0.0, %v275
  %v277 = vpop.f32.mrf.mxu0
  %v278 = vadd.f32 0.0, %v277
  %279 = vmatmul.bf16.gmra.mxu0 %v125
  %v280 = vpop.f32.mrf.mxu0
  %v281 = vadd.f32 0.0, %v280
  %v282 = vpop.f32.mrf.mxu0
  %v283 = vadd.f32 0.0, %v282
  %284 = vmatmul.bf16.gmra.mxu0 %v127
  %v285 = vpop.f32.mrf.mxu0
  %v286 = vadd.f32 0.0, %v285
  %v287 = vpop.f32.mrf.mxu0
  %v288 = vadd.f32 0.0, %v287
  %289 = vdwg.mxu0
  %290 = vmatpush.bf16.msra.mxu0 %v224
  %291 = vmatpush.bf16.msra.mxu0 %v223
  %292 = vmatpush.bf16.msra.mxu0 %v222
  %293 = vmatpush.bf16.msra.mxu0 %v221
  %294 = vmatpush.bf16.msra.mxu0 %v220
  %295 = vmatpush.bf16.msra.mxu0 %v219
  %296 = vmatpush.bf16.msra.mxu0 %v218
  %297 = vmatpush.bf16.msra.mxu0 %v217
  %298 = vmatmul.bf16.gmra.mxu0 %v114
  %v299 = vpop.f32.mrf.mxu0
  %v300 = vadd.f32 %v251, %v299
  %v301 = vpop.f32.mrf.mxu0
  %v302 = vadd.f32 %v253, %v301
  %303 = vmatmul.bf16.gmra.mxu0 %v116
  %v304 = vpop.f32.mrf.mxu0
  %v305 = vadd.f32 %v256, %v304
  %v306 = vpop.f32.mrf.mxu0
  %v307 = vadd.f32 %v258, %v306
  %308 = vmatmul.bf16.gmra.mxu0 %v118
  %v309 = vpop.f32.mrf.mxu0
  %v310 = vadd.f32 %v261, %v309
  %v311 = vpop.f32.mrf.mxu0
  %v312 = vadd.f32 %v263, %v311
  %313 = vmatmul.bf16.gmra.mxu0 %v120
  %v314 = vpop.f32.mrf.mxu0
  %v315 = vadd.f32 %v266, %v314
  %v316 = vpop.f32.mrf.mxu0
  %v317 = vadd.f32 %v268, %v316
  %318 = vmatmul.bf16.gmra.mxu0 %v122
  %v319 = vpop.f32.mrf.mxu0
  %v320 = vadd.f32 %v271, %v319
  %v321 = vpop.f32.mrf.mxu0
  %v322 = vadd.f32 %v273, %v321
  %323 = vmatmul.bf16.gmra.mxu0 %v124
  %v324 = vpop.f32.mrf.mxu0
  %v325 = vadd.f32 %v276, %v324
  %v326 = vpop.f32.mrf.mxu0
  %v327 = vadd.f32 %v278, %v326
  %328 = vmatmul.bf16.gmra.mxu0 %v126
  %v329 = vpop.f32.mrf.mxu0
  %v330 = vadd.f32 %v281, %v329
  %v331 = vpop.f32.mrf.mxu0
  %v332 = vadd.f32 %v283, %v331
  %333 = vmatmul.bf16.gmra.mxu0 %v128
  %v334 = vpop.f32.mrf.mxu0
  %v335 = vadd.f32 %v286, %v334
  %v336 = vpop.f32.mrf.mxu0
  %v337 = vadd.f32 %v288, %v336
  %338 = vdwg.mxu0
  %v339 = vadd.f32 %v300, %v302
  %v340 = vadd.f32 %v339, %v305
  %v341 = vadd.f32 %v340, %v307
  %v342 = vadd.f32 %v341, %v310
  %v343 = vadd.f32 %v342, %v312
  %v344 = vadd.f32 %v343, %v315
  %v345 = vadd.f32 %v344, %v317
  %v346 = vadd.f32 %v345, %v320
  %v347 = vadd.f32 %v346, %v322
  %v348 = vadd.f32 %v347, %v325
  %v349 = vadd.f32 %v348, %v327
  %v350 = vadd.f32 %v349, %v330
  %v351 = vadd.f32 %v350, %v332
  %v352 = vadd.f32 %v351, %v335
  %v353 = vadd.f32 %v352, %v337
  %v354 = vrot.slane %v353, 4
  %v355 = vadd.f32 %v353, %v354
  %v356 = vrot.slane %v355, 2
  %v357 = vadd.f32 %v355, %v356
  %v358 = vrot.slane %v357, 1
  %v359 = vadd.f32 %v357, %v358
  %v360 = vmul.f32 %v359, 0.0078125
  %v361 = vsub.f32 %v300, %v360
  %v362 = vsub.f32 %v302, %v360
  %v363 = vsub.f32 %v305, %v360
  %v364 = vsub.f32 %v307, %v360
  %v365 = vsub.f32 %v310, %v360
  %v366 = vsub.f32 %v312, %v360
  %v367 = vsub.f32 %v315, %v360
  %v368 = vsub.f32 %v317, %v360
  %v369 = vsub.f32 %v320, %v360
  %v370 = vsub.f32 %v322, %v360
  %v371 = vsub.f32 %v325, %v360
  %v372 = vsub.f32 %v327, %v360
  %v373 = vsub.f32 %v330, %v360
  %v374 = vsub.f32 %v332, %v360
  %v375 = vsub.f32 %v335, %v360
  %v376 = vsub.f32 %v337, %v360
  %v377 = vmul.f32 %v361, %v361
  %v378 = vmul.f32 %v362, %v362
  %v379 = vmul.f32 %v363, %v363
  %v380 = vmul.f32 %v364, %v364
  %v381 = vmul.f32 %v365, %v365
  %v382 = vmul.f32 %v366, %v366
  %v383 = vmul.f32 %v367, %v367
  %v384 = vmul.f32 %v368, %v368
  %v385 = vmul.f32 %v369, %v369
  %v386 = vmul.f32 %v370, %v370
  %v387 = vmul.f32 %v371, %v371
  %v388 = vmul.f32 %v372, %v372
  %v389 = vmul.f32 %v373, %v373
  %v390 = vmul.f32 %v374, %v374
  %v391 = vmul.f32 %v375, %v375
  %v392 = vmul.f32 %v376, %v376
  %v393 = vadd.f32 %v377, %v378
  %v394 = vadd.f32 %v393, %v379
  %v395 = vadd.f32 %v394, %v380
  %v396 = vadd.f32 %v395, %v381
  %v397 = vadd.f32 %v396, %v382
  %v398 = vadd.f32 %v397, %v383
  %v399 = vadd.f32 %v398, %v384
  %v400 = vadd.f32 %v399, %v385
  %v401 = vadd.f32 %v400, %v386
  %v402 = vadd.f32 %v401, %v387
  %v403 = vadd.f32 %v402, %v388
  %v404 = vadd.f32 %v403, %v389
  %v405 = vadd.f32 %v404, %v390
  %v406 = vadd.f32 %v405, %v391
  %v407 = vadd.f32 %v406, %v392
  %v408 = vrot.slane %v407, 4
  %v409 = vadd.f32 %v407, %v408
  %v410 = vrot.slane %v409, 2
  %v411 = vadd.f32 %v409, %v410
  %v412 = vrot.slane %v411, 1
  %v413 = vadd.f32 %v411, %v412
  %v414 = vmul.f32 %v413, 0.0078125
  %v415 = vld [vmem:[%s2] sm:$0x1]
  %v416 = vadd.f32 %v414, 1e-05
  %v417 = vrsqrt.pop %v416
  %v418 = vmul.f32 %v417, %v416
  %v419 = vmul.f32 %v418, %v417
  %v420 = vmul.f32 0.5, %v419
  %v421 = vsub.f32 1.5, %v420
  %v422 = vmul.f32 %v417, %v421
  %vm423 = vweird.f32 %v416
  %vm424 = vweird.f32 %v417
  %vm425 = vmor %vm423, %vm424
  %v426 = vsel %vm425, %v417, %v422
  %v427 = vmul.f32 %v415, %v426
  %v428 = vld [vmem:[%s3] sm:$0x1]
  %v429 = vmul.f32 %v360, %v427
  %v430 = vsub.f32 %v428, %v429
  %v432 = vperm.slane %v427, 0
  %v434 = vmul.f32 %v300, %v432
  %v435 = vmul.f32 %v302, %v432
  %v436 = vmul.f32 %v305, %v432
  %v437 = vmul.f32 %v307, %v432
  %v438 = vmul.f32 %v310, %v432
  %v439 = vmul.f32 %v312, %v432
  %v440 = vmul.f32 %v315, %v432
  %v441 = vmul.f32 %v317, %v432
  %v442 = vmul.f32 %v320, %v432
  %v443 = vmul.f32 %v322, %v432
  %v444 = vmul.f32 %v325, %v432
  %v445 = vmul.f32 %v327, %v432
  %v446 = vmul.f32 %v330, %v432
  %v447 = vmul.f32 %v332, %v432
  %v448 = vmul.f32 %v335, %v432
  %v449 = vmul.f32 %v337, %v432
  %v451 = vperm.slane %v430, 0
  %v453 = vadd.f32 %v434, %v451
  %v454 = vadd.f32 %v435, %v451
  %v455 = vadd.f32 %v436, %v451
  %v456 = vadd.f32 %v437, %v451
  %v457 = vadd.f32 %v438, %v451
  %v458 = vadd.f32 %v439, %v451
  %v459 = vadd.f32 %v440, %v451
  %v460 = vadd.f32 %v441, %v451
  %v461 = vadd.f32 %v442, %v451
  %v462 = vadd.f32 %v443, %v451
  %v463 = vadd.f32 %v444, %v451
  %v464 = vadd.f32 %v445, %v451
  %v465 = vadd.f32 %v446, %v451
  %v466 = vadd.f32 %v447, %v451
  %v467 = vadd.f32 %v448, %v451
  %v468 = vadd.f32 %v449, %v451
  %vm469 = vcmp.ge.f32.partialorder %v453, 0.0
  %vm470 = vcmp.ge.f32.partialorder %v454, 0.0
  %vm471 = vcmp.ge.f32.partialorder %v455, 0.0
  %vm472 = vcmp.ge.f32.partialorder %v456, 0.0
  %vm473 = vcmp.ge.f32.partialorder %v457, 0.0
  %vm474 = vcmp.ge.f32.partialorder %v458, 0.0
  %vm475 = vcmp.ge.f32.partialorder %v459, 0.0
  %vm476 = vcmp.ge.f32.partialorder %v460, 0.0
  %vm477 = vcmp.ge.f32.partialorder %v461, 0.0
  %vm478 = vcmp.ge.f32.partialorder %v462, 0.0
  %vm479 = vcmp.ge.f32.partialorder %v463, 0.0
  %vm480 = vcmp.ge.f32.partialorder %v464, 0.0
  %vm481 = vcmp.ge.f32.partialorder %v465, 0.0
  %vm482 = vcmp.ge.f32.partialorder %v466, 0.0
  %vm483 = vcmp.ge.f32.partialorder %v467, 0.0
  %vm484 = vcmp.ge.f32.partialorder %v468, 0.0
  %v485 = vmul.f32 %v453, 0.2
  %v486 = vmul.f32 %v454, 0.2
  %v487 = vmul.f32 %v455, 0.2
  %v488 = vmul.f32 %v456, 0.2
  %v489 = vmul.f32 %v457, 0.2
  %v490 = vmul.f32 %v458, 0.2
  %v491 = vmul.f32 %v459, 0.2
  %v492 = vmul.f32 %v460, 0.2
  %v493 = vmul.f32 %v461, 0.2
  %v494 = vmul.f32 %v462, 0.2
  %v495 = vmul.f32 %v463, 0.2
  %v496 = vmul.f32 %v464, 0.2
  %v497 = vmul.f32 %v465, 0.2
  %v498 = vmul.f32 %v466, 0.2
  %v499 = vmul.f32 %v467, 0.2
  %v500 = vmul.f32 %v468, 0.2
  %v501 = vsel %vm469, %v453, %v485
  %v502 = vsel %vm470, %v454, %v486
  %v503 = vsel %vm471, %v455, %v487
  %v504 = vsel %vm472, %v456, %v488
  %v505 = vsel %vm473, %v457, %v489
  %v506 = vsel %vm474, %v458, %v490
  %v507 = vsel %vm475, %v459, %v491
  %v508 = vsel %vm476, %v460, %v492
  %v509 = vsel %vm477, %v461, %v493
  %v510 = vsel %vm478, %v462, %v494
  %v511 = vsel %vm479, %v463, %v495
  %v512 = vsel %vm480, %v464, %v496
  %v513 = vsel %vm481, %v465, %v497
  %v514 = vsel %vm482, %v466, %v498
  %v515 = vsel %vm483, %v467, %v499
  %v516 = vsel %vm484, %v468, %v500
  %v517 = vpack.c.bf16 %v501, %v501
  %v518 = vpack.c.bf16 %v502, %v502
  %v519 = vpack.c.bf16 %v503, %v503
  %v520 = vpack.c.bf16 %v504, %v504
  %v521 = vpack.c.bf16 %v505, %v505
  %v522 = vpack.c.bf16 %v506, %v506
  %v523 = vpack.c.bf16 %v507, %v507
  %v524 = vpack.c.bf16 %v508, %v508
  %v525 = vpack.c.bf16 %v509, %v509
  %v526 = vpack.c.bf16 %v510, %v510
  %v527 = vpack.c.bf16 %v511, %v511
  %v528 = vpack.c.bf16 %v512, %v512
  %v529 = vpack.c.bf16 %v513, %v513
  %v530 = vpack.c.bf16 %v514, %v514
  %v531 = vpack.c.bf16 %v515, %v515
  %v532 = vpack.c.bf16 %v516, %v516
  %533 = vst [vmem:[%s4] sm:$0xf] %v517
  %534 = vst [vmem:[%s4 + $0x4] sm:$0xf] %v518
  %535 = vst [vmem:[%s4 + $0x8] sm:$0xf] %v519
  %536 = vst [vmem:[%s4 + $0xc] sm:$0xf] %v520
  %537 = vst [vmem:[%s4 + $0x10] sm:$0xf] %v521
  %538 = vst [vmem:[%s4 + $0x14] sm:$0xf] %v522
  %539 = vst [vmem:[%s4 + $0x18] sm:$0xf] %v523
  %540 = vst [vmem:[%s4 + $0x1c] sm:$0xf] %v524
  %541 = vst [vmem:[%s4 + $0x20] sm:$0xf] %v525
  %542 = vst [vmem:[%s4 + $0x24] sm:$0xf] %v526
  %543 = vst [vmem:[%s4 + $0x28] sm:$0xf] %v527
  %544 = vst [vmem:[%s4 + $0x2c] sm:$0xf] %v528
  %545 = vst [vmem:[%s4 + $0x30] sm:$0xf] %v529
  %546 = vst [vmem:[%s4 + $0x34] sm:$0xf] %v530
  %547 = vst [vmem:[%s4 + $0x38] sm:$0xf] %v531
  %548 = vst [vmem:[%s4 + $0x3c] sm:$0xf] %v532
  // Predicated region
  $region18: #{discriminator_forward.7} parent=0 // pred_check
    _
  $region19: #{discriminator_forward.7} parent=0 // pred_check_branch
    %550 = sbr.rel (0) target = $region21
  $region20: #{discriminator_forward.7} parent=0 // pred_region
    _
  $region21: #{discriminator_forward.7} parent=0 // pred_fallthru
    _
  // Predicated region
  $region22: #{discriminator_forward.7} parent=0 // pred_check
    _
  $region23: #{discriminator_forward.7} parent=0 // pred_check_branch
    %552 = sbr.rel (0) target = $region25
  $region24: #{discriminator_forward.7} parent=0 // pred_region
    _
  $region25: #{discriminator_forward.7} parent=0 // pred_fallthru
    _

// kernel: discriminator_forward.8
$region0: #{discriminator_forward.8}
  #allocation0 [shape = 'u32[]', space=smem, size = 0x4, offset = 0x4, fixed_abs, tag = 'smem constant byte address 0x4 - core index']
  #allocation1 [shape = 'u32[72,128]{1,0:T(1,128)}', space=vmem, size = 0x9000, scoped, tag = 'internal scratch']
  %s0 = inlined_call_operand.vmem [shape: bf16[32,512], index: 0, kind: input, shape index: {}]
  %s1 = inlined_call_operand.vmem [shape: bf16[512,128], index: 1, kind: input, shape index: {}]
  %s2 = inlined_call_operand.vmem [shape: f32[1,128], index: 2, kind: input, shape index: {}]
  %s3 = inlined_call_operand.vmem [shape: f32[1,128], index: 3, kind: input, shape index: {}]
  %s4 = inlined_call_operand.vmem [shape: bf16[32,128], index: 4, kind: output, shape index: {}]
  %s5 = sld [smem:[#allocation0]]
  $region26: #{discriminator_forward.8} parent=0
    _
  %s7 = ssub.s32 1, %s5
  %s8 = scalar_select 0, %s7, %s5
  // Predicated region
  $region2: #{discriminator_forward.8} parent=0 // pred_check
    _
  $region3: #{discriminator_forward.8} parent=0 // pred_check_branch
    %10 = sbr.rel (0) target = $region5
  $region4: #{discriminator_forward.8} parent=0 // pred_region
    _
  $region5: #{discriminator_forward.8} parent=0 // pred_fallthru
    _
  // Predicated region
  $region6: #{discriminator_forward.8} parent=0 // pred_check
    _
  $region7: #{discriminator_forward.8} parent=0 // pred_check_branch
    %12 = sbr.rel (0) target = $region9
  $region8: #{discriminator_forward.8} parent=0 // pred_region
    _
  $region9: #{discriminator_forward.8} parent=0 // pred_fallthru
    _
  // Predicated region
  $region10: #{discriminator_forward.8} parent=0 // pred_check
    _
  $region11: #{discriminator_forward.8} parent=0 // pred_check_branch
    %14 = sbr.rel (0) target = $region13
  $region12: #{discriminator_forward.8} parent=0 // pred_region
    _
  $region13: #{discriminator_forward.8} parent=0 // pred_fallthru
    _
  // Predicated region
  $region14: #{discriminator_forward.8} parent=0 // pred_check
    _
  $region15: #{discriminator_forward.8} parent=0 // pred_check_branch
    %16 = sbr.rel (0) target = $region17
  $region16: #{discriminator_forward.8} parent=0 // pred_region
    _
  $region17: #{discriminator_forward.8} parent=0 // pred_fallthru
    _
  %v17 = vld [vmem:[%s0] sm:$0xff]
  %v18 = vld [vmem:[%s0 + $0x8] sm:$0xff]
  %v19 = vld [vmem:[%s0 + $0x10] sm:$0xff]
  %v20 = vld [vmem:[%s0 + $0x18] sm:$0xff]
  %v21 = vld [vmem:[%s0 + $0x20] sm:$0xff]
  %v22 = vld [vmem:[%s0 + $0x28] sm:$0xff]
  %v23 = vld [vmem:[%s0 + $0x30] sm:$0xff]
  %v24 = vld [vmem:[%s0 + $0x38] sm:$0xff]
  %v25 = vld [vmem:[%s1] sm:$0xf]
  %v26 = vld [vmem:[%s1 + $0x4] sm:$0xf]
  %v27 = vld [vmem:[%s1 + $0x8] sm:$0xf]
  %v28 = vld [vmem:[%s1 + $0xc] sm:$0xf]
  %v29 = vld [vmem:[%s1 + $0x10] sm:$0xf]
  %v30 = vld [vmem:[%s1 + $0x14] sm:$0xf]
  %v31 = vld [vmem:[%s1 + $0x18] sm:$0xf]
  %v32 = vld [vmem:[%s1 + $0x1c] sm:$0xf]
  %v33 = vld [vmem:[%s1 + $0x20] sm:$0xf]
  %v34 = vld [vmem:[%s1 + $0x24] sm:$0xf]
  %v35 = vld [vmem:[%s1 + $0x28] sm:$0xf]
  %v36 = vld [vmem:[%s1 + $0x2c] sm:$0xf]
  %v37 = vld [vmem:[%s1 + $0x30] sm:$0xf]
  %v38 = vld [vmem:[%s1 + $0x34] sm:$0xf]
  %v39 = vld [vmem:[%s1 + $0x38] sm:$0xf]
  %v40 = vld [vmem:[%s1 + $0x3c] sm:$0xf]
  %v41 = vld [vmem:[%s1 + $0x40] sm:$0xf]
  %v42 = vld [vmem:[%s1 + $0x44] sm:$0xf]
  %v43 = vld [vmem:[%s1 + $0x48] sm:$0xf]
  %v44 = vld [vmem:[%s1 + $0x4c] sm:$0xf]
  %v45 = vld [vmem:[%s1 + $0x50] sm:$0xf]
  %v46 = vld [vmem:[%s1 + $0x54] sm:$0xf]
  %v47 = vld [vmem:[%s1 + $0x58] sm:$0xf]
  %v48 = vld [vmem:[%s1 + $0x5c] sm:$0xf]
  %v49 = vld [vmem:[%s1 + $0x60] sm:$0xf]
  %v50 = vld [vmem:[%s1 + $0x64] sm:$0xf]
  %v51 = vld [vmem:[%s1 + $0x68] sm:$0xf]
  %v52 = vld [vmem:[%s1 + $0x6c] sm:$0xf]
  %v53 = vld [vmem:[%s1 + $0x70] sm:$0xf]
  %v54 = vld [vmem:[%s1 + $0x74] sm:$0xf]
  %v55 = vld [vmem:[%s1 + $0x78] sm:$0xf]
  %v56 = vld [vmem:[%s1 + $0x7c] sm:$0xf]
  %v57 = vld [vmem:[%s1 + $0x80] sm:$0xf]
  %v58 = vld [vmem:[%s1 + $0x84] sm:$0xf]
  %v59 = vld [vmem:[%s1 + $0x88] sm:$0xf]
  %v60 = vld [vmem:[%s1 + $0x8c] sm:$0xf]
  %v61 = vld [vmem:[%s1 + $0x90] sm:$0xf]
  %v62 = vld [vmem:[%s1 + $0x94] sm:$0xf]
  %v63 = vld [vmem:[%s1 + $0x98] sm:$0xf]
  %v64 = vld [vmem:[%s1 + $0x9c] sm:$0xf]
  %v65 = vld [vmem:[%s1 + $0xa0] sm:$0xf]
  %v66 = vld [vmem:[%s1 + $0xa4] sm:$0xf]
  %v67 = vld [vmem:[%s1 + $0xa8] sm:$0xf]
  %v68 = vld [vmem:[%s1 + $0xac] sm:$0xf]
  %v69 = vld [vmem:[%s1 + $0xb0] sm:$0xf]
  %v70 = vld [vmem:[%s1 + $0xb4] sm:$0xf]
  %v71 = vld [vmem:[%s1 + $0xb8] sm:$0xf]
  %v72 = vld [vmem:[%s1 + $0xbc] sm:$0xf]
  %v73 = vld [vmem:[%s1 + $0xc0] sm:$0xf]
  %v74 = vld [vmem:[%s1 + $0xc4] sm:$0xf]
  %v75 = vld [vmem:[%s1 + $0xc8] sm:$0xf]
  %v76 = vld [vmem:[%s1 + $0xcc] sm:$0xf]
  %v77 = vld [vmem:[%s1 + $0xd0] sm:$0xf]
  %v78 = vld [vmem:[%s1 + $0xd4] sm:$0xf]
  %v79 = vld [vmem:[%s1 + $0xd8] sm:$0xf]
  %v80 = vld [vmem:[%s1 + $0xdc] sm:$0xf]
  %v81 = vld [vmem:[%s1 + $0xe0] sm:$0xf]
  %v82 = vld [vmem:[%s1 + $0xe4] sm:$0xf]
  %v83 = vld [vmem:[%s1 + $0xe8] sm:$0xf]
  %v84 = vld [vmem:[%s1 + $0xec] sm:$0xf]
  %v85 = vld [vmem:[%s1 + $0xf0] sm:$0xf]
  %v86 = vld [vmem:[%s1 + $0xf4] sm:$0xf]
  %v87 = vld [vmem:[%s1 + $0xf8] sm:$0xf]
  %v88 = vld [vmem:[%s1 + $0xfc] sm:$0xf]
  %v97 = vunpack.c.l.b16 %v17
  %v98 = vunpack.c.h.b16 %v17
  %v99 = vunpack.c.l.b16 %v18
  %v100 = vunpack.c.h.b16 %v18
  %v101 = vunpack.c.l.b16 %v19
  %v102 = vunpack.c.h.b16 %v19
  %v103 = vunpack.c.l.b16 %v20
  %v104 = vunpack.c.h.b16 %v20
  %v105 = vunpack.c.l.b16 %v21
  %v106 = vunpack.c.h.b16 %v21
  %v107 = vunpack.c.l.b16 %v22
  %v108 = vunpack.c.h.b16 %v22
  %v109 = vunpack.c.l.b16 %v23
  %v110 = vunpack.c.h.b16 %v23
  %v111 = vunpack.c.l.b16 %v24
  %v112 = vunpack.c.h.b16 %v24
  %v113 = vpack.c.b16 %v101, %v97
  %v114 = vpack.c.b16 %v102, %v98
  %v115 = vpack.c.b16 %v103, %v99
  %v116 = vpack.c.b16 %v104, %v100
  %v117 = vpack.c.b16 %v109, %v105
  %v118 = vpack.c.b16 %v110, %v106
  %v119 = vpack.c.b16 %v111, %v107
  %v120 = vpack.c.b16 %v112, %v108
  %v193 = vunpack.c.l.b16 %v25
  %v194 = vunpack.c.l.b16 %v26
  %v195 = vunpack.c.l.b16 %v27
  %v196 = vunpack.c.l.b16 %v28
  %v197 = vunpack.c.l.b16 %v29
  %v198 = vunpack.c.l.b16 %v30
  %v199 = vunpack.c.l.b16 %v31
  %v200 = vunpack.c.l.b16 %v32
  %v201 = vunpack.c.l.b16 %v33
  %v202 = vunpack.c.l.b16 %v34
  %v203 = vunpack.c.l.b16 %v35
  %v204 = vunpack.c.l.b16 %v36
  %v205 = vunpack.c.l.b16 %v37
  %v206 = vunpack.c.l.b16 %v38
  %v207 = vunpack.c.l.b16 %v39
  %v208 = vunpack.c.l.b16 %v40
  %v209 = vunpack.c.l.b16 %v41
  %v210 = vunpack.c.l.b16 %v42
  %v211 = vunpack.c.l.b16 %v43
  %v212 = vunpack.c.l.b16 %v44
  %v213 = vunpack.c.l.b16 %v45
  %v214 = vunpack.c.l.b16 %v46
  %v215 = vunpack.c.l.b16 %v47
  %v216 = vunpack.c.l.b16 %v48
  %v217 = vunpack.c.l.b16 %v49
  %v218 = vunpack.c.l.b16 %v50
  %v219 = vunpack.c.l.b16 %v51
  %v220 = vunpack.c.l.b16 %v52
  %v221 = vunpack.c.l.b16 %v53
  %v222 = vunpack.c.l.b16 %v54
  %v223 = vunpack.c.l.b16 %v55
  %v224 = vunpack.c.l.b16 %v56
  %v225 = vunpack.c.l.b16 %v57
  %v226 = vunpack.c.l.b16 %v58
  %v227 = vunpack.c.l.b16 %v59
  %v228 = vunpack.c.l.b16 %v60
  %v229 = vunpack.c.l.b16 %v61
  %v230 = vunpack.c.l.b16 %v62
  %v231 = vunpack.c.l.b16 %v63
  %v232 = vunpack.c.l.b16 %v64
  %v233 = vunpack.c.l.b16 %v65
  %v234 = vunpack.c.l.b16 %v66
  %v235 = vunpack.c.l.b16 %v67
  %v236 = vunpack.c.l.b16 %v68
  %v237 = vunpack.c.l.b16 %v69
  %v238 = vunpack.c.l.b16 %v70
  %v239 = vunpack.c.l.b16 %v71
  %v240 = vunpack.c.l.b16 %v72
  %v241 = vunpack.c.l.b16 %v73
  %v242 = vunpack.c.l.b16 %v74
  %v243 = vunpack.c.l.b16 %v75
  %v244 = vunpack.c.l.b16 %v76
  %v245 = vunpack.c.l.b16 %v77
  %v246 = vunpack.c.l.b16 %v78
  %v247 = vunpack.c.l.b16 %v79
  %v248 = vunpack.c.l.b16 %v80
  %v249 = vunpack.c.l.b16 %v81
  %v250 = vunpack.c.l.b16 %v82
  %v251 = vunpack.c.l.b16 %v83
  %v252 = vunpack.c.l.b16 %v84
  %v253 = vunpack.c.l.b16 %v85
  %v254 = vunpack.c.l.b16 %v86
  %v255 = vunpack.c.l.b16 %v87
  %v256 = vunpack.c.l.b16 %v88
  %v257 = vpack.c.b16 %v194, %v193
  %v258 = vpack.c.b16 %v196, %v195
  %v259 = vpack.c.b16 %v198, %v197
  %v260 = vpack.c.b16 %v200, %v199
  %v261 = vpack.c.b16 %v202, %v201
  %v262 = vpack.c.b16 %v204, %v203
  %v263 = vpack.c.b16 %v206, %v205
  %v264 = vpack.c.b16 %v208, %v207
  %v265 = vpack.c.b16 %v210, %v209
  %v266 = vpack.c.b16 %v212, %v211
  %v267 = vpack.c.b16 %v214, %v213
  %v268 = vpack.c.b16 %v216, %v215
  %v269 = vpack.c.b16 %v218, %v217
  %v270 = vpack.c.b16 %v220, %v219
  %v271 = vpack.c.b16 %v222, %v221
  %v272 = vpack.c.b16 %v224, %v223
  %v273 = vpack.c.b16 %v226, %v225
  %v274 = vpack.c.b16 %v228, %v227
  %v275 = vpack.c.b16 %v230, %v229
  %v276 = vpack.c.b16 %v232, %v231
  %v277 = vpack.c.b16 %v234, %v233
  %v278 = vpack.c.b16 %v236, %v235
  %v279 = vpack.c.b16 %v238, %v237
  %v280 = vpack.c.b16 %v240, %v239
  %v281 = vpack.c.b16 %v242, %v241
  %v282 = vpack.c.b16 %v244, %v243
  %v283 = vpack.c.b16 %v246, %v245
  %v284 = vpack.c.b16 %v248, %v247
  %v285 = vpack.c.b16 %v250, %v249
  %v286 = vpack.c.b16 %v252, %v251
  %v287 = vpack.c.b16 %v254, %v253
  %v288 = vpack.c.b16 %v256, %v255
  %321 = vmatpush.bf16.msra.mxu0 %v264
  %322 = vmatpush.bf16.msra.mxu0 %v263
  %323 = vmatpush.bf16.msra.mxu0 %v262
  %324 = vmatpush.bf16.msra.mxu0 %v261
  %325 = vmatpush.bf16.msra.mxu0 %v260
  %326 = vmatpush.bf16.msra.mxu0 %v259
  %327 = vmatpush.bf16.msra.mxu0 %v258
  %328 = vmatpush.bf16.msra.mxu0 %v257
  %329 = vmatmul.bf16.gmra.mxu0 %v113
  %v330 = vpop.f32.mrf.mxu0
  %v331 = vadd.f32 0.0, %v330
  %v332 = vpop.f32.mrf.mxu0
  %v333 = vadd.f32 0.0, %v332
  %334 = vmatmul.bf16.gmra.mxu0 %v117
  %v335 = vpop.f32.mrf.mxu0
  %v336 = vadd.f32 0.0, %v335
  %v337 = vpop.f32.mrf.mxu0
  %v338 = vadd.f32 0.0, %v337
  %339 = vdwg.mxu0
  %340 = vmatpush.bf16.msra.mxu0 %v272
  %341 = vmatpush.bf16.msra.mxu0 %v271
  %342 = vmatpush.bf16.msra.mxu0 %v270
  %343 = vmatpush.bf16.msra.mxu0 %v269
  %344 = vmatpush.bf16.msra.mxu0 %v268
  %345 = vmatpush.bf16.msra.mxu0 %v267
  %346 = vmatpush.bf16.msra.mxu0 %v266
  %347 = vmatpush.bf16.msra.mxu0 %v265
  %348 = vmatmul.bf16.gmra.mxu0 %v114
  %v349 = vpop.f32.mrf.mxu0
  %v350 = vadd.f32 %v331, %v349
  %v351 = vpop.f32.mrf.mxu0
  %v352 = vadd.f32 %v333, %v351
  %353 = vmatmul.bf16.gmra.mxu0 %v118
  %v354 = vpop.f32.mrf.mxu0
  %v355 = vadd.f32 %v336, %v354
  %v356 = vpop.f32.mrf.mxu0
  %v357 = vadd.f32 %v338, %v356
  %358 = vdwg.mxu0
  %359 = vmatpush.bf16.msra.mxu0 %v280
  %360 = vmatpush.bf16.msra.mxu0 %v279
  %361 = vmatpush.bf16.msra.mxu0 %v278
  %362 = vmatpush.bf16.msra.mxu0 %v277
  %363 = vmatpush.bf16.msra.mxu0 %v276
  %364 = vmatpush.bf16.msra.mxu0 %v275
  %365 = vmatpush.bf16.msra.mxu0 %v274
  %366 = vmatpush.bf16.msra.mxu0 %v273
  %367 = vmatmul.bf16.gmra.mxu0 %v115
  %v368 = vpop.f32.mrf.mxu0
  %v369 = vadd.f32 %v350, %v368
  %v370 = vpop.f32.mrf.mxu0
  %v371 = vadd.f32 %v352, %v370
  %372 = vmatmul.bf16.gmra.mxu0 %v119
  %v373 = vpop.f32.mrf.mxu0
  %v374 = vadd.f32 %v355, %v373
  %v375 = vpop.f32.mrf.mxu0
  %v376 = vadd.f32 %v357, %v375
  %377 = vdwg.mxu0
  %378 = vmatpush.bf16.msra.mxu0 %v288
  %379 = vmatpush.bf16.msra.mxu0 %v287
  %380 = vmatpush.bf16.msra.mxu0 %v286
  %381 = vmatpush.bf16.msra.mxu0 %v285
  %382 = vmatpush.bf16.msra.mxu0 %v284
  %383 = vmatpush.bf16.msra.mxu0 %v283
  %384 = vmatpush.bf16.msra.mxu0 %v282
  %385 = vmatpush.bf16.msra.mxu0 %v281
  %386 = vmatmul.bf16.gmra.mxu0 %v116
  %v387 = vpop.f32.mrf.mxu0
  %v388 = vadd.f32 %v369, %v387
  %v389 = vpop.f32.mrf.mxu0
  %v390 = vadd.f32 %v371, %v389
  %391 = vmatmul.bf16.gmra.mxu0 %v120
  %v392 = vpop.f32.mrf.mxu0
  %v393 = vadd.f32 %v374, %v392
  %v394 = vpop.f32.mrf.mxu0
  %v395 = vadd.f32 %v376, %v394
  %396 = vdwg.mxu0
  %v397 = vadd.f32 %v388, %v390
  %v398 = vadd.f32 %v397, %v393
  %v399 = vadd.f32 %v398, %v395
  %v400 = vrot.slane %v399, 4
  %v401 = vadd.f32 %v399, %v400
  %v402 = vrot.slane %v401, 2
  %v403 = vadd.f32 %v401, %v402
  %v404 = vrot.slane %v403, 1
  %v405 = vadd.f32 %v403, %v404
  %v406 = vmul.f32 %v405, 0.03125
  %v407 = vsub.f32 %v388, %v406
  %v408 = vsub.f32 %v390, %v406
  %v409 = vsub.f32 %v393, %v406
  %v410 = vsub.f32 %v395, %v406
  %v411 = vmul.f32 %v407, %v407
  %v412 = vmul.f32 %v408, %v408
  %v413 = vmul.f32 %v409, %v409
  %v414 = vmul.f32 %v410, %v410
  %v415 = vadd.f32 %v411, %v412
  %v416 = vadd.f32 %v415, %v413
  %v417 = vadd.f32 %v416, %v414
  %v418 = vrot.slane %v417, 4
  %v419 = vadd.f32 %v417, %v418
  %v420 = vrot.slane %v419, 2
  %v421 = vadd.f32 %v419, %v420
  %v422 = vrot.slane %v421, 1
  %v423 = vadd.f32 %v421, %v422
  %v424 = vmul.f32 %v423, 0.03125
  %v425 = vld [vmem:[%s2] sm:$0x1]
  %v426 = vadd.f32 %v424, 1e-05
  %v427 = vrsqrt.pop %v426
  %v428 = vmul.f32 %v427, %v426
  %v429 = vmul.f32 %v428, %v427
  %v430 = vmul.f32 0.5, %v429
  %v431 = vsub.f32 1.5, %v430
  %v432 = vmul.f32 %v427, %v431
  %vm433 = vweird.f32 %v426
  %vm434 = vweird.f32 %v427
  %vm435 = vmor %vm433, %vm434
  %v436 = vsel %vm435, %v427, %v432
  %v437 = vmul.f32 %v425, %v436
  %v438 = vld [vmem:[%s3] sm:$0x1]
  %v439 = vmul.f32 %v406, %v437
  %v440 = vsub.f32 %v438, %v439
  %v442 = vperm.slane %v437, 0
  %v444 = vmul.f32 %v388, %v442
  %v445 = vmul.f32 %v390, %v442
  %v446 = vmul.f32 %v393, %v442
  %v447 = vmul.f32 %v395, %v442
  %v449 = vperm.slane %v440, 0
  %v451 = vadd.f32 %v444, %v449
  %v452 = vadd.f32 %v445, %v449
  %v453 = vadd.f32 %v446, %v449
  %v454 = vadd.f32 %v447, %v449
  %vm455 = vcmp.ge.f32.partialorder %v451, 0.0
  %vm456 = vcmp.ge.f32.partialorder %v452, 0.0
  %vm457 = vcmp.ge.f32.partialorder %v453, 0.0
  %vm458 = vcmp.ge.f32.partialorder %v454, 0.0
  %v459 = vmul.f32 %v451, 0.2
  %v460 = vmul.f32 %v452, 0.2
  %v461 = vmul.f32 %v453, 0.2
  %v462 = vmul.f32 %v454, 0.2
  %v463 = vsel %vm455, %v451, %v459
  %v464 = vsel %vm456, %v452, %v460
  %v465 = vsel %vm457, %v453, %v461
  %v466 = vsel %vm458, %v454, %v462
  %v467 = vpack.c.bf16 %v463, %v463
  %v468 = vpack.c.bf16 %v464, %v464
  %v469 = vpack.c.bf16 %v465, %v465
  %v470 = vpack.c.bf16 %v466, %v466
  %471 = vst [vmem:[%s4] sm:$0xf] %v467
  %472 = vst [vmem:[%s4 + $0x4] sm:$0xf] %v468
  %473 = vst [vmem:[%s4 + $0x8] sm:$0xf] %v469
  %474 = vst [vmem:[%s4 + $0xc] sm:$0xf] %v470
  // Predicated region
  $region18: #{discriminator_forward.8} parent=0 // pred_check
    _
  $region19: #{discriminator_forward.8} parent=0 // pred_check_branch
    %476 = sbr.rel (0) target = $region21
  $region20: #{discriminator_forward.8} parent=0 // pred_region
    _
  $region21: #{discriminator_forward.8} parent=0 // pred_fallthru
    _
  // Predicated region
  $region22: #{discriminator_forward.8} parent=0 // pred_check
    _
  $region23: #{discriminator_forward.8} parent=0 // pred_check_branch
    %478 = sbr.rel (0) target = $region25
  $region24: #{discriminator_forward.8} parent=0 // pred_region
    _
  $region25: #{discriminator_forward.8} parent=0 // pred_fallthru
    _

// kernel: discriminator_forward.9
$region0: #{discriminator_forward.9}
  #allocation0 [shape = 'u32[]', space=smem, size = 0x4, offset = 0x4, fixed_abs, tag = 'smem constant byte address 0x4 - core index']
  #allocation1 [shape = 'u32[72,128]{1,0:T(1,128)}', space=vmem, size = 0x9000, scoped, tag = 'internal scratch']
  %s0 = inlined_call_operand.vmem [shape: bf16[8,1024], index: 0, kind: input, shape index: {}]
  %s1 = inlined_call_operand.vmem [shape: bf16[1024,128], index: 1, kind: input, shape index: {}]
  %s2 = inlined_call_operand.vmem [shape: f32[8,128], index: 2, kind: output, shape index: {}]
  %s3 = sld [smem:[#allocation0]]
  $region18: #{discriminator_forward.9} parent=0
    _
  %s5 = ssub.s32 1, %s3
  %s6 = scalar_select 0, %s5, %s3
  // Predicated region
  $region2: #{discriminator_forward.9} parent=0 // pred_check
    _
  $region3: #{discriminator_forward.9} parent=0 // pred_check_branch
    %8 = sbr.rel (0) target = $region5
  $region4: #{discriminator_forward.9} parent=0 // pred_region
    _
  $region5: #{discriminator_forward.9} parent=0 // pred_fallthru
    _
  // Predicated region
  $region6: #{discriminator_forward.9} parent=0 // pred_check
    _
  $region7: #{discriminator_forward.9} parent=0 // pred_check_branch
    %10 = sbr.rel (0) target = $region9
  $region8: #{discriminator_forward.9} parent=0 // pred_region
    _
  $region9: #{discriminator_forward.9} parent=0 // pred_fallthru
    _
  %v11 = vld [vmem:[%s0] sm:$0xff]
  %v12 = vld [vmem:[%s0 + $0x8] sm:$0xff]
  %v13 = vld [vmem:[%s0 + $0x10] sm:$0xff]
  %v14 = vld [vmem:[%s0 + $0x18] sm:$0xff]
  %v15 = vld [vmem:[%s1] sm:$0xf]
  %v16 = vld [vmem:[%s1 + $0x4] sm:$0xf]
  %v17 = vld [vmem:[%s1 + $0x8] sm:$0xf]
  %v18 = vld [vmem:[%s1 + $0xc] sm:$0xf]
  %v19 = vld [vmem:[%s1 + $0x10] sm:$0xf]
  %v20 = vld [vmem:[%s1 + $0x14] sm:$0xf]
  %v21 = vld [vmem:[%s1 + $0x18] sm:$0xf]
  %v22 = vld [vmem:[%s1 + $0x1c] sm:$0xf]
  %v23 = vld [vmem:[%s1 + $0x20] sm:$0xf]
  %v24 = vld [vmem:[%s1 + $0x24] sm:$0xf]
  %v25 = vld [vmem:[%s1 + $0x28] sm:$0xf]
  %v26 = vld [vmem:[%s1 + $0x2c] sm:$0xf]
  %v27 = vld [vmem:[%s1 + $0x30] sm:$0xf]
  %v28 = vld [vmem:[%s1 + $0x34] sm:$0xf]
  %v29 = vld [vmem:[%s1 + $0x38] sm:$0xf]
  %v30 = vld [vmem:[%s1 + $0x3c] sm:$0xf]
  %v31 = vld [vmem:[%s1 + $0x40] sm:$0xf]
  %v32 = vld [vmem:[%s1 + $0x44] sm:$0xf]
  %v33 = vld [vmem:[%s1 + $0x48] sm:$0xf]
  %v34 = vld [vmem:[%s1 + $0x4c] sm:$0xf]
  %v35 = vld [vmem:[%s1 + $0x50] sm:$0xf]
  %v36 = vld [vmem:[%s1 + $0x54] sm:$0xf]
  %v37 = vld [vmem:[%s1 + $0x58] sm:$0xf]
  %v38 = vld [vmem:[%s1 + $0x5c] sm:$0xf]
  %v39 = vld [vmem:[%s1 + $0x60] sm:$0xf]
  %v40 = vld [vmem:[%s1 + $0x64] sm:$0xf]
  %v41 = vld [vmem:[%s1 + $0x68] sm:$0xf]
  %v42 = vld [vmem:[%s1 + $0x6c] sm:$0xf]
  %v43 = vld [vmem:[%s1 + $0x70] sm:$0xf]
  %v44 = vld [vmem:[%s1 + $0x74] sm:$0xf]
  %v45 = vld [vmem:[%s1 + $0x78] sm:$0xf]
  %v46 = vld [vmem:[%s1 + $0x7c] sm:$0xf]
  %v47 = vld [vmem:[%s1 + $0x80] sm:$0xf]
  %v48 = vld [vmem:[%s1 + $0x84] sm:$0xf]
  %v49 = vld [vmem:[%s1 + $0x88] sm:$0xf]
  %v50 = vld [vmem:[%s1 + $0x8c] sm:$0xf]
  %v51 = vld [vmem:[%s1 + $0x90] sm:$0xf]
  %v52 = vld [vmem:[%s1 + $0x94] sm:$0xf]
  %v53 = vld [vmem:[%s1 + $0x98] sm:$0xf]
  %v54 = vld [vmem:[%s1 + $0x9c] sm:$0xf]
  %v55 = vld [vmem:[%s1 + $0xa0] sm:$0xf]
  %v56 = vld [vmem:[%s1 + $0xa4] sm:$0xf]
  %v57 = vld [vmem:[%s1 + $0xa8] sm:$0xf]
  %v58 = vld [vmem:[%s1 + $0xac] sm:$0xf]
  %v59 = vld [vmem:[%s1 + $0xb0] sm:$0xf]
  %v60 = vld [vmem:[%s1 + $0xb4] sm:$0xf]
  %v61 = vld [vmem:[%s1 + $0xb8] sm:$0xf]
  %v62 = vld [vmem:[%s1 + $0xbc] sm:$0xf]
  %v63 = vld [vmem:[%s1 + $0xc0] sm:$0xf]
  %v64 = vld [vmem:[%s1 + $0xc4] sm:$0xf]
  %v65 = vld [vmem:[%s1 + $0xc8] sm:$0xf]
  %v66 = vld [vmem:[%s1 + $0xcc] sm:$0xf]
  %v67 = vld [vmem:[%s1 + $0xd0] sm:$0xf]
  %v68 = vld [vmem:[%s1 + $0xd4] sm:$0xf]
  %v69 = vld [vmem:[%s1 + $0xd8] sm:$0xf]
  %v70 = vld [vmem:[%s1 + $0xdc] sm:$0xf]
  %v71 = vld [vmem:[%s1 + $0xe0] sm:$0xf]
  %v72 = vld [vmem:[%s1 + $0xe4] sm:$0xf]
  %v73 = vld [vmem:[%s1 + $0xe8] sm:$0xf]
  %v74 = vld [vmem:[%s1 + $0xec] sm:$0xf]
  %v75 = vld [vmem:[%s1 + $0xf0] sm:$0xf]
  %v76 = vld [vmem:[%s1 + $0xf4] sm:$0xf]
  %v77 = vld [vmem:[%s1 + $0xf8] sm:$0xf]
  %v78 = vld [vmem:[%s1 + $0xfc] sm:$0xf]
  %v79 = vld [vmem:[%s1 + $0x100] sm:$0xf]
  %v80 = vld [vmem:[%s1 + $0x104] sm:$0xf]
  %v81 = vld [vmem:[%s1 + $0x108] sm:$0xf]
  %v82 = vld [vmem:[%s1 + $0x10c] sm:$0xf]
  %v83 = vld [vmem:[%s1 + $0x110] sm:$0xf]
  %v84 = vld [vmem:[%s1 + $0x114] sm:$0xf]
  %v85 = vld [vmem:[%s1 + $0x118] sm:$0xf]
  %v86 = vld [vmem:[%s1 + $0x11c] sm:$0xf]
  %v87 = vld [vmem:[%s1 + $0x120] sm:$0xf]
  %v88 = vld [vmem:[%s1 + $0x124] sm:$0xf]
  %v89 = vld [vmem:[%s1 + $0x128] sm:$0xf]
  %v90 = vld [vmem:[%s1 + $0x12c] sm:$0xf]
  %v91 = vld [vmem:[%s1 + $0x130] sm:$0xf]
  %v92 = vld [vmem:[%s1 + $0x134] sm:$0xf]
  %v93 = vld [vmem:[%s1 + $0x138] sm:$0xf]
  %v94 = vld [vmem:[%s1 + $0x13c] sm:$0xf]
  %v95 = vld [vmem:[%s1 + $0x140] sm:$0xf]
  %v96 = vld [vmem:[%s1 + $0x144] sm:$0xf]
  %v97 = vld [vmem:[%s1 + $0x148] sm:$0xf]
  %v98 = vld [vmem:[%s1 + $0x14c] sm:$0xf]
  %v99 = vld [vmem:[%s1 + $0x150] sm:$0xf]
  %v100 = vld [vmem:[%s1 + $0x154] sm:$0xf]
  %v101 = vld [vmem:[%s1 + $0x158] sm:$0xf]
  %v102 = vld [vmem:[%s1 + $0x15c] sm:$0xf]
  %v103 = vld [vmem:[%s1 + $0x160] sm:$0xf]
  %v104 = vld [vmem:[%s1 + $0x164] sm:$0xf]
  %v105 = vld [vmem:[%s1 + $0x168] sm:$0xf]
  %v106 = vld [vmem:[%s1 + $0x16c] sm:$0xf]
  %v107 = vld [vmem:[%s1 + $0x170] sm:$0xf]
  %v108 = vld [vmem:[%s1 + $0x174] sm:$0xf]
  %v109 = vld [vmem:[%s1 + $0x178] sm:$0xf]
  %v110 = vld [vmem:[%s1 + $0x17c] sm:$0xf]
  %v111 = vld [vmem:[%s1 + $0x180] sm:$0xf]
  %v112 = vld [vmem:[%s1 + $0x184] sm:$0xf]
  %v113 = vld [vmem:[%s1 + $0x188] sm:$0xf]
  %v114 = vld [vmem:[%s1 + $0x18c] sm:$0xf]
  %v115 = vld [vmem:[%s1 + $0x190] sm:$0xf]
  %v116 = vld [vmem:[%s1 + $0x194] sm:$0xf]
  %v117 = vld [vmem:[%s1 + $0x198] sm:$0xf]
  %v118 = vld [vmem:[%s1 + $0x19c] sm:$0xf]
  %v119 = vld [vmem:[%s1 + $0x1a0] sm:$0xf]
  %v120 = vld [vmem:[%s1 + $0x1a4] sm:$0xf]
  %v121 = vld [vmem:[%s1 + $0x1a8] sm:$0xf]
  %v122 = vld [vmem:[%s1 + $0x1ac] sm:$0xf]
  %v123 = vld [vmem:[%s1 + $0x1b0] sm:$0xf]
  %v124 = vld [vmem:[%s1 + $0x1b4] sm:$0xf]
  %v125 = vld [vmem:[%s1 + $0x1b8] sm:$0xf]
  %v126 = vld [vmem:[%s1 + $0x1bc] sm:$0xf]
  %v127 = vld [vmem:[%s1 + $0x1c0] sm:$0xf]
  %v128 = vld [vmem:[%s1 + $0x1c4] sm:$0xf]
  %v129 = vld [vmem:[%s1 + $0x1c8] sm:$0xf]
  %v130 = vld [vmem:[%s1 + $0x1cc] sm:$0xf]
  %v131 = vld [vmem:[%s1 + $0x1d0] sm:$0xf]
  %v132 = vld [vmem:[%s1 + $0x1d4] sm:$0xf]
  %v133 = vld [vmem:[%s1 + $0x1d8] sm:$0xf]
  %v134 = vld [vmem:[%s1 + $0x1dc] sm:$0xf]
  %v135 = vld [vmem:[%s1 + $0x1e0] sm:$0xf]
  %v136 = vld [vmem:[%s1 + $0x1e4] sm:$0xf]
  %v137 = vld [vmem:[%s1 + $0x1e8] sm:$0xf]
  %v138 = vld [vmem:[%s1 + $0x1ec] sm:$0xf]
  %v139 = vld [vmem:[%s1 + $0x1f0] sm:$0xf]
  %v140 = vld [vmem:[%s1 + $0x1f4] sm:$0xf]
  %v141 = vld [vmem:[%s1 + $0x1f8] sm:$0xf]
  %v142 = vld [vmem:[%s1 + $0x1fc] sm:$0xf]
  %v147 = vunpack.c.l.b16 %v11
  %v148 = vunpack.c.h.b16 %v11
  %v149 = vunpack.c.l.b16 %v12
  %v150 = vunpack.c.h.b16 %v12
  %v151 = vunpack.c.l.b16 %v13
  %v152 = vunpack.c.h.b16 %v13
  %v153 = vunpack.c.l.b16 %v14
  %v154 = vunpack.c.h.b16 %v14
  %v155 = vpack.c.b16 %v147, %v147
  %v156 = vpack.c.b16 %v148, %v148
  %v157 = vpack.c.b16 %v149, %v149
  %v158 = vpack.c.b16 %v150, %v150
  %v159 = vpack.c.b16 %v151, %v151
  %v160 = vpack.c.b16 %v152, %v152
  %v161 = vpack.c.b16 %v153, %v153
  %v162 = vpack.c.b16 %v154, %v154
  %v299 = vunpack.c.l.b16 %v15
  %v300 = vunpack.c.l.b16 %v16
  %v301 = vunpack.c.l.b16 %v17
  %v302 = vunpack.c.l.b16 %v18
  %v303 = vunpack.c.l.b16 %v19
  %v304 = vunpack.c.l.b16 %v20
  %v305 = vunpack.c.l.b16 %v21
  %v306 = vunpack.c.l.b16 %v22
  %v307 = vunpack.c.l.b16 %v23
  %v308 = vunpack.c.l.b16 %v24
  %v309 = vunpack.c.l.b16 %v25
  %v310 = vunpack.c.l.b16 %v26
  %v311 = vunpack.c.l.b16 %v27
  %v312 = vunpack.c.l.b16 %v28
  %v313 = vunpack.c.l.b16 %v29
  %v314 = vunpack.c.l.b16 %v30
  %v315 = vunpack.c.l.b16 %v31
  %v316 = vunpack.c.l.b16 %v32
  %v317 = vunpack.c.l.b16 %v33
  %v318 = vunpack.c.l.b16 %v34
  %v319 = vunpack.c.l.b16 %v35
  %v320 = vunpack.c.l.b16 %v36
  %v321 = vunpack.c.l.b16 %v37
  %v322 = vunpack.c.l.b16 %v38
  %v323 = vunpack.c.l.b16 %v39
  %v324 = vunpack.c.l.b16 %v40
  %v325 = vunpack.c.l.b16 %v41
  %v326 = vunpack.c.l.b16 %v42
  %v327 = vunpack.c.l.b16 %v43
  %v328 = vunpack.c.l.b16 %v44
  %v329 = vunpack.c.l.b16 %v45
  %v330 = vunpack.c.l.b16 %v46
  %v331 = vunpack.c.l.b16 %v47
  %v332 = vunpack.c.l.b16 %v48
  %v333 = vunpack.c.l.b16 %v49
  %v334 = vunpack.c.l.b16 %v50
  %v335 = vunpack.c.l.b16 %v51
  %v336 = vunpack.c.l.b16 %v52
  %v337 = vunpack.c.l.b16 %v53
  %v338 = vunpack.c.l.b16 %v54
  %v339 = vunpack.c.l.b16 %v55
  %v340 = vunpack.c.l.b16 %v56
  %v341 = vunpack.c.l.b16 %v57
  %v342 = vunpack.c.l.b16 %v58
  %v343 = vunpack.c.l.b16 %v59
  %v344 = vunpack.c.l.b16 %v60
  %v345 = vunpack.c.l.b16 %v61
  %v346 = vunpack.c.l.b16 %v62
  %v347 = vunpack.c.l.b16 %v63
  %v348 = vunpack.c.l.b16 %v64
  %v349 = vunpack.c.l.b16 %v65
  %v350 = vunpack.c.l.b16 %v66
  %v351 = vunpack.c.l.b16 %v67
  %v352 = vunpack.c.l.b16 %v68
  %v353 = vunpack.c.l.b16 %v69
  %v354 = vunpack.c.l.b16 %v70
  %v355 = vunpack.c.l.b16 %v71
  %v356 = vunpack.c.l.b16 %v72
  %v357 = vunpack.c.l.b16 %v73
  %v358 = vunpack.c.l.b16 %v74
  %v359 = vunpack.c.l.b16 %v75
  %v360 = vunpack.c.l.b16 %v76
  %v361 = vunpack.c.l.b16 %v77
  %v362 = vunpack.c.l.b16 %v78
  %v363 = vunpack.c.l.b16 %v79
  %v364 = vunpack.c.l.b16 %v80
  %v365 = vunpack.c.l.b16 %v81
  %v366 = vunpack.c.l.b16 %v82
  %v367 = vunpack.c.l.b16 %v83
  %v368 = vunpack.c.l.b16 %v84
  %v369 = vunpack.c.l.b16 %v85
  %v370 = vunpack.c.l.b16 %v86
  %v371 = vunpack.c.l.b16 %v87
  %v372 = vunpack.c.l.b16 %v88
  %v373 = vunpack.c.l.b16 %v89
  %v374 = vunpack.c.l.b16 %v90
  %v375 = vunpack.c.l.b16 %v91
  %v376 = vunpack.c.l.b16 %v92
  %v377 = vunpack.c.l.b16 %v93
  %v378 = vunpack.c.l.b16 %v94
  %v379 = vunpack.c.l.b16 %v95
  %v380 = vunpack.c.l.b16 %v96
  %v381 = vunpack.c.l.b16 %v97
  %v382 = vunpack.c.l.b16 %v98
  %v383 = vunpack.c.l.b16 %v99
  %v384 = vunpack.c.l.b16 %v100
  %v385 = vunpack.c.l.b16 %v101
  %v386 = vunpack.c.l.b16 %v102
  %v387 = vunpack.c.l.b16 %v103
  %v388 = vunpack.c.l.b16 %v104
  %v389 = vunpack.c.l.b16 %v105
  %v390 = vunpack.c.l.b16 %v106
  %v391 = vunpack.c.l.b16 %v107
  %v392 = vunpack.c.l.b16 %v108
  %v393 = vunpack.c.l.b16 %v109
  %v394 = vunpack.c.l.b16 %v110
  %v395 = vunpack.c.l.b16 %v111
  %v396 = vunpack.c.l.b16 %v112
  %v397 = vunpack.c.l.b16 %v113
  %v398 = vunpack.c.l.b16 %v114
  %v399 = vunpack.c.l.b16 %v115
  %v400 = vunpack.c.l.b16 %v116
  %v401 = vunpack.c.l.b16 %v117
  %v402 = vunpack.c.l.b16 %v118
  %v403 = vunpack.c.l.b16 %v119
  %v404 = vunpack.c.l.b16 %v120
  %v405 = vunpack.c.l.b16 %v121
  %v406 = vunpack.c.l.b16 %v122
  %v407 = vunpack.c.l.b16 %v123
  %v408 = vunpack.c.l.b16 %v124
  %v409 = vunpack.c.l.b16 %v125
  %v410 = vunpack.c.l.b16 %v126
  %v411 = vunpack.c.l.b16 %v127
  %v412 = vunpack.c.l.b16 %v128
  %v413 = vunpack.c.l.b16 %v129
  %v414 = vunpack.c.l.b16 %v130
  %v415 = vunpack.c.l.b16 %v131
  %v416 = vunpack.c.l.b16 %v132
  %v417 = vunpack.c.l.b16 %v133
  %v418 = vunpack.c.l.b16 %v134
  %v419 = vunpack.c.l.b16 %v135
  %v420 = vunpack.c.l.b16 %v136
  %v421 = vunpack.c.l.b16 %v137
  %v422 = vunpack.c.l.b16 %v138
  %v423 = vunpack.c.l.b16 %v139
  %v424 = vunpack.c.l.b16 %v140
  %v425 = vunpack.c.l.b16 %v141
  %v426 = vunpack.c.l.b16 %v142
  %v427 = vpack.c.b16 %v300, %v299
  %v428 = vpack.c.b16 %v302, %v301
  %v429 = vpack.c.b16 %v304, %v303
  %v430 = vpack.c.b16 %v306, %v305
  %v431 = vpack.c.b16 %v308, %v307
  %v432 = vpack.c.b16 %v310, %v309
  %v433 = vpack.c.b16 %v312, %v311
  %v434 = vpack.c.b16 %v314, %v313
  %v435 = vpack.c.b16 %v316, %v315
  %v436 = vpack.c.b16 %v318, %v317
  %v437 = vpack.c.b16 %v320, %v319
  %v438 = vpack.c.b16 %v322, %v321
  %v439 = vpack.c.b16 %v324, %v323
  %v440 = vpack.c.b16 %v326, %v325
  %v441 = vpack.c.b16 %v328, %v327
  %v442 = vpack.c.b16 %v330, %v329
  %v443 = vpack.c.b16 %v332, %v331
  %v444 = vpack.c.b16 %v334, %v333
  %v445 = vpack.c.b16 %v336, %v335
  %v446 = vpack.c.b16 %v338, %v337
  %v447 = vpack.c.b16 %v340, %v339
  %v448 = vpack.c.b16 %v342, %v341
  %v449 = vpack.c.b16 %v344, %v343
  %v450 = vpack.c.b16 %v346, %v345
  %v451 = vpack.c.b16 %v348, %v347
  %v452 = vpack.c.b16 %v350, %v349
  %v453 = vpack.c.b16 %v352, %v351
  %v454 = vpack.c.b16 %v354, %v353
  %v455 = vpack.c.b16 %v356, %v355
  %v456 = vpack.c.b16 %v358, %v357
  %v457 = vpack.c.b16 %v360, %v359
  %v458 = vpack.c.b16 %v362, %v361
  %v459 = vpack.c.b16 %v364, %v363
  %v460 = vpack.c.b16 %v366, %v365
  %v461 = vpack.c.b16 %v368, %v367
  %v462 = vpack.c.b16 %v370, %v369
  %v463 = vpack.c.b16 %v372, %v371
  %v464 = vpack.c.b16 %v374, %v373
  %v465 = vpack.c.b16 %v376, %v375
  %v466 = vpack.c.b16 %v378, %v377
  %v467 = vpack.c.b16 %v380, %v379
  %v468 = vpack.c.b16 %v382, %v381
  %v469 = vpack.c.b16 %v384, %v383
  %v470 = vpack.c.b16 %v386, %v385
  %v471 = vpack.c.b16 %v388, %v387
  %v472 = vpack.c.b16 %v390, %v389
  %v473 = vpack.c.b16 %v392, %v391
  %v474 = vpack.c.b16 %v394, %v393
  %v475 = vpack.c.b16 %v396, %v395
  %v476 = vpack.c.b16 %v398, %v397
  %v477 = vpack.c.b16 %v400, %v399
  %v478 = vpack.c.b16 %v402, %v401
  %v479 = vpack.c.b16 %v404, %v403
  %v480 = vpack.c.b16 %v406, %v405
  %v481 = vpack.c.b16 %v408, %v407
  %v482 = vpack.c.b16 %v410, %v409
  %v483 = vpack.c.b16 %v412, %v411
  %v484 = vpack.c.b16 %v414, %v413
  %v485 = vpack.c.b16 %v416, %v415
  %v486 = vpack.c.b16 %v418, %v417
  %v487 = vpack.c.b16 %v420, %v419
  %v488 = vpack.c.b16 %v422, %v421
  %v489 = vpack.c.b16 %v424, %v423
  %v490 = vpack.c.b16 %v426, %v425
  %555 = vmatpush.bf16.msra.mxu0 %v434
  %556 = vmatpush.bf16.msra.mxu0 %v433
  %557 = vmatpush.bf16.msra.mxu0 %v432
  %558 = vmatpush.bf16.msra.mxu0 %v431
  %559 = vmatpush.bf16.msra.mxu0 %v430
  %560 = vmatpush.bf16.msra.mxu0 %v429
  %561 = vmatpush.bf16.msra.mxu0 %v428
  %562 = vmatpush.bf16.msra.mxu0 %v427
  %563 = vmatmul.bf16.gmra.mxu0 %v155
  %v564 = vpop.f32.mrf.mxu0
  %v565 = vadd.f32 0.0, %v564
  %v566 = vpop.f32.mrf.mxu0
  %567 = vdwg.mxu0
  %568 = vmatpush.bf16.msra.mxu0 %v442
  %569 = vmatpush.bf16.msra.mxu0 %v441
  %570 = vmatpush.bf16.msra.mxu0 %v440
  %571 = vmatpush.bf16.msra.mxu0 %v439
  %572 = vmatpush.bf16.msra.mxu0 %v438
  %573 = vmatpush.bf16.msra.mxu0 %v437
  %574 = vmatpush.bf16.msra.mxu0 %v436
  %575 = vmatpush.bf16.msra.mxu0 %v435
  %576 = vmatmul.bf16.gmra.mxu0 %v156
  %v577 = vpop.f32.mrf.mxu0
  %v578 = vadd.f32 %v565, %v577
  %v579 = vpop.f32.mrf.mxu0
  %580 = vdwg.mxu0
  %581 = vmatpush.bf16.msra.mxu0 %v450
  %582 = vmatpush.bf16.msra.mxu0 %v449
  %583 = vmatpush.bf16.msra.mxu0 %v448
  %584 = vmatpush.bf16.msra.mxu0 %v447
  %585 = vmatpush.bf16.msra.mxu0 %v446
  %586 = vmatpush.bf16.msra.mxu0 %v445
  %587 = vmatpush.bf16.msra.mxu0 %v444
  %588 = vmatpush.bf16.msra.mxu0 %v443
  %589 = vmatmul.bf16.gmra.mxu0 %v157
  %v590 = vpop.f32.mrf.mxu0
  %v591 = vadd.f32 %v578, %v590
  %v592 = vpop.f32.mrf.mxu0
  %593 = vdwg.mxu0
  %594 = vmatpush.bf16.msra.mxu0 %v458
  %595 = vmatpush.bf16.msra.mxu0 %v457
  %596 = vmatpush.bf16.msra.mxu0 %v456
  %597 = vmatpush.bf16.msra.mxu0 %v455
  %598 = vmatpush.bf16.msra.mxu0 %v454
  %599 = vmatpush.bf16.msra.mxu0 %v453
  %600 = vmatpush.bf16.msra.mxu0 %v452
  %601 = vmatpush.bf16.msra.mxu0 %v451
  %602 = vmatmul.bf16.gmra.mxu0 %v158
  %v603 = vpop.f32.mrf.mxu0
  %v604 = vadd.f32 %v591, %v603
  %v605 = vpop.f32.mrf.mxu0
  %606 = vdwg.mxu0
  %607 = vmatpush.bf16.msra.mxu0 %v466
  %608 = vmatpush.bf16.msra.mxu0 %v465
  %609 = vmatpush.bf16.msra.mxu0 %v464
  %610 = vmatpush.bf16.msra.mxu0 %v463
  %611 = vmatpush.bf16.msra.mxu0 %v462
  %612 = vmatpush.bf16.msra.mxu0 %v461
  %613 = vmatpush.bf16.msra.mxu0 %v460
  %614 = vmatpush.bf16.msra.mxu0 %v459
  %615 = vmatmul.bf16.gmra.mxu0 %v159
  %v616 = vpop.f32.mrf.mxu0
  %v617 = vadd.f32 %v604, %v616
  %v618 = vpop.f32.mrf.mxu0
  %619 = vdwg.mxu0
  %620 = vmatpush.bf16.msra.mxu0 %v474
  %621 = vmatpush.bf16.msra.mxu0 %v473
  %622 = vmatpush.bf16.msra.mxu0 %v472
  %623 = vmatpush.bf16.msra.mxu0 %v471
  %624 = vmatpush.bf16.msra.mxu0 %v470
  %625 = vmatpush.bf16.msra.mxu0 %v469
  %626 = vmatpush.bf16.msra.mxu0 %v468
  %627 = vmatpush.bf16.msra.mxu0 %v467
  %628 = vmatmul.bf16.gmra.mxu0 %v160
  %v629 = vpop.f32.mrf.mxu0
  %v630 = vadd.f32 %v617, %v629
  %v631 = vpop.f32.mrf.mxu0
  %632 = vdwg.mxu0
  %633 = vmatpush.bf16.msra.mxu0 %v482
  %634 = vmatpush.bf16.msra.mxu0 %v481
  %635 = vmatpush.bf16.msra.mxu0 %v480
  %636 = vmatpush.bf16.msra.mxu0 %v479
  %637 = vmatpush.bf16.msra.mxu0 %v478
  %638 = vmatpush.bf16.msra.mxu0 %v477
  %639 = vmatpush.bf16.msra.mxu0 %v476
  %640 = vmatpush.bf16.msra.mxu0 %v475
  %641 = vmatmul.bf16.gmra.mxu0 %v161
  %v642 = vpop.f32.mrf.mxu0
  %v643 = vadd.f32 %v630, %v642
  %v644 = vpop.f32.mrf.mxu0
  %645 = vdwg.mxu0
  %646 = vmatpush.bf16.msra.mxu0 %v490
  %647 = vmatpush.bf16.msra.mxu0 %v489
  %648 = vmatpush.bf16.msra.mxu0 %v488
  %649 = vmatpush.bf16.msra.mxu0 %v487
  %650 = vmatpush.bf16.msra.mxu0 %v486
  %651 = vmatpush.bf16.msra.mxu0 %v485
  %652 = vmatpush.bf16.msra.mxu0 %v484
  %653 = vmatpush.bf16.msra.mxu0 %v483
  %654 = vmatmul.bf16.gmra.mxu0 %v162
  %v655 = vpop.f32.mrf.mxu0
  %v656 = vadd.f32 %v643, %v655
  %v657 = vpop.f32.mrf.mxu0
  %658 = vdwg.mxu0
  %v659 = vsub.f32 0.0, %v656
  %v660 = vmul.f32 %v659, 1.442695
  %v661 = vpow.pop %v660
  %v662 = vadd.f32 %v661, 1.0
  %v663 = vrcp.pop %v662
  %v664 = vmul.f32 %v662, %v663
  %v665 = vsub.f32 1.0, %v664
  %v666 = vmul.f32 %v663, %v665
  %v667 = vadd.f32 %v663, %v666
  %vm668 = vweird.f32 %v662
  %vm669 = vweird.f32 %v663
  %vm670 = vmor %vm668, %vm669
  %v671 = vsel %vm670, %v663, %v667
  %v672 = vand.u32 2147483647, %v662
  %vm673 = vcmp.eq.f32.partialorder %v672, 8.507059e+37
  %v674 = vand.u32 %v662, 2147483648
  %v675 = vor.u32 1.1754944e-38, %v674
  %v676 = vsel %vm673, %v675, %v671
  %v677 = vmul.f32 1.0, %v676
  %678 = vst [vmem:[%s2] sm:$0xff] %v677
  // Predicated region
  $region10: #{discriminator_forward.9} parent=0 // pred_check
    _
  $region11: #{discriminator_forward.9} parent=0 // pred_check_branch
    %680 = sbr.rel (0) target = $region13
  $region12: #{discriminator_forward.9} parent=0 // pred_region
    _
  $region13: #{discriminator_forward.9} parent=0 // pred_fallthru
    _
  // Predicated region
  $region14: #{discriminator_forward.9} parent=0 // pred_check
    _
  $region15: #{discriminator_forward.9} parent=0 // pred_check_branch
    %682 = sbr.rel (0) target = $region17
  $region16: #{discriminator_forward.9} parent=0 // pred_region
    _
  $region17: #{discriminator_forward.9} parent=0 // pred_fallthru
    _

</llo_original>
